<compile_context>
chip_gen: v6e
topology: v6e:2x2x1
jax: 0.10.0
libtpu: 0.0.40
codegen_flags: <defaults>
</compile_context>

<pallas_src>
import jax
import jax.numpy as jnp
import numpy as np
from jax.experimental import pallas as pl
from jax.experimental.pallas import tpu as pltpu

KH = KW = 3  # stem conv kernel size (stride 1, pad 1 -> same spatial size)


def _tecno_kernel(xp_ref, wc_ref, bc_ref, wf_ref, bf_ref, out_ref):
    """One batch tile (B_TILE images) per grid step.

    xp_ref : (B_TILE, H+2, W+2, Cin)   spatially padded NHWC images (bf16)
    wc_ref : (KH*KW*Cin, Cout)         folded conv weights (bf16)
    bc_ref : (1, Cout)                 conv bias (f32)
    wf_ref : (Cout, NCP)               classifier weight, 1/(H*W) folded in,
                                       zero-padded to lane-dense NCP (bf16)
    bf_ref : (1, NCP)                  classifier bias, zero-padded (f32)
    out_ref: (1, B_TILE, NCP)          lane-dense logits block (f32)
    """
    bt, hp, wp, cin = xp_ref.shape
    H = hp - (KH - 1)
    W = wp - (KW - 1)
    cout = wc_ref.shape[1]

    # In-VMEM im2col directly in bf16 (no f32 round trip): 9 static shifted
    # views of the resident tile, packed along the channel axis.
    x = xp_ref[...]                                       # (bt, H+2, W+2, Cin)
    taps = [x[:, kh:kh + H, kw:kw + W, :]
            for kh in range(KH) for kw in range(KW)]
    cols = jnp.concatenate(taps, axis=-1)                 # (bt, H, W, 9*Cin)
    cols = cols.reshape(bt * H * W, KH * KW * cin)        # (bt*H*W, 9*Cin) bf16

    # Single fused conv matmul on the MXU: bf16 x bf16 -> f32 accumulate.
    acc = jnp.dot(cols, wc_ref[...],
                  preferred_element_type=jnp.float32)     # (bt*H*W, Cout) f32

    # Bias + ReLU on the VPU (f32).
    acc = jnp.maximum(acc + bc_ref[...], 0.0)

    # Global average pool: the 1/(H*W) scale is folded into wf in the wrapper,
    # so only the sublane sum is needed here.
    pooled = acc.reshape(bt, H * W, cout).sum(axis=1)     # (bt, Cout) f32
    # TODO(synk): at real image sizes compute this sum as a ones-row matmul
    # against acc (MXU) instead of a long cross-row VPU/XLU reduction.

    # Classifier head: weight travels bf16 (HBM/VMEM) but is up-cast here so
    # this tiny matmul keeps full f32 precision.
    logits = jnp.dot(pooled, wf_ref[...].astype(jnp.float32),
                     preferred_element_type=jnp.float32) + bf_ref[...]
    out_ref[0] = logits.astype(out_ref.dtype)


def init_params(key, in_chans, hidden, n_classes):
    """Deterministic synthetic weights (stand-in for the timm checkpoint)."""
    k1, k2, k3, k4 = jax.random.split(key, 4)
    return dict(
        wc=jax.random.normal(k1, (KH * KW, in_chans, hidden), jnp.float32) * 0.1,
        bc=jax.random.normal(k2, (1, hidden), jnp.float32) * 0.1,
        wf=jax.random.normal(k3, (hidden, n_classes), jnp.float32) * 0.1,
        bf=jax.random.normal(k4, (1, n_classes), jnp.float32) * 0.1,
    )


def _fold_weights(params, in_chans, H, W):
    """Shared weight folding so kernel wrapper and reference match bit-exactly."""
    hidden = params["wc"].shape[2]
    wc_flat = params["wc"].reshape(KH * KW * in_chans, hidden).astype(jnp.bfloat16)
    wf_scaled = (params["wf"] * (1.0 / (H * W))).astype(jnp.bfloat16)  # GAP folded in
    return wc_flat, wf_scaled


def tecno_forward(params, x_nchw, y=None, *, b_tile=4):
    """Mirrors TECNOTimm.forward: returns {'logits': ..., 'loss': 0}."""
    N, C, H, W = x_nchw.shape
    hidden = params["wc"].shape[2]
    n_classes = params["wf"].shape[1]
    ncp = max(128, ((n_classes + 127) // 128) * 128)   # lane-dense output width

    # TODO(synk): choose b_tile per TPU generation (keep the batch grid >= 2 on
    # v7x so both TensorCores get work; prefer the largest single block on
    # single-TC v5e/v6e) and re-derive vmem_limit_bytes once spatial tiling for
    # real image sizes is added.
    b_tile = max(1, min(b_tile, N))
    n_pad = (-N) % b_tile
    g = (N + n_pad) // b_tile                           # grid length (batch tiles)

    # --- layout plumbing only (cheap XLA glue): NCHW -> NHWC, bf16 cast,
    # spatial pad for the 3x3/s1/p1 stem, batch pad to a multiple of b_tile,
    # classifier weight/bias zero-padded to a 128-lane-dense head. -----------
    x = jnp.transpose(x_nchw, (0, 2, 3, 1)).astype(jnp.bfloat16)
    xp = jnp.pad(x, ((0, n_pad), (1, 1), (1, 1), (0, 0)))   # (Np, H+2, W+2, C)

    wc_flat, wf_scaled = _fold_weights(params, C, H, W)
    wf_pad = jnp.zeros((hidden, ncp), jnp.bfloat16).at[:, :n_classes].set(wf_scaled)
    bf_pad = jnp.zeros((1, ncp), jnp.float32).at[:, :n_classes].set(params["bf"])

    out = pl.pallas_call(
        _tecno_kernel,
        out_shape=jax.ShapeDtypeStruct((g, b_tile, ncp), jnp.float32),
        grid_spec=pltpu.PrefetchScalarGridSpec(
            num_scalar_prefetch=0,
            grid=(g,),
            in_specs=[
                pl.BlockSpec((b_tile, H + 2, W + 2, C), lambda b: (b, 0, 0, 0)),
                pl.BlockSpec((KH * KW * C, hidden), lambda b: (0, 0)),
                pl.BlockSpec((1, hidden), lambda b: (0, 0)),
                pl.BlockSpec((hidden, ncp), lambda b: (0, 0)),
                pl.BlockSpec((1, ncp), lambda b: (0, 0)),
            ],
            out_specs=pl.BlockSpec((1, b_tile, ncp), lambda b: (b, 0, 0)),
        ),
        compiler_params=pltpu.CompilerParams(
            dimension_semantics=("parallel",),
            vmem_limit_bytes=32 * 1024 * 1024,   # tiny tiles; safe on all gens
        ),
    )(xp, wc_flat, params["bc"], wf_pad, bf_pad)

    logits = out.reshape(g * b_tile, ncp)[:N, :n_classes]

    output = {"logits": logits}
    loss = 0
    if y is not None:
        loss = 0
        # TODO(synk): reference evaluates preds = loss_fn(logits, y) and then
        # discards it; the returned loss is the literal 0, so loss_fn is not
        # reproduced here.
    output["loss"] = loss
    return output


def tecno_reference(params, x_nchw):
    """Pure-JAX reference with matching bf16-weight / f32-accumulate numerics."""
    N, C, H, W = x_nchw.shape
    hidden = params["wc"].shape[2]
    xb = jnp.transpose(x_nchw, (0, 2, 3, 1)).astype(jnp.bfloat16).astype(jnp.float32)
    xp = jnp.pad(xb, ((0, 0), (1, 1), (1, 1), (0, 0)))
    wc_flat, wf_scaled = _fold_weights(params, C, H, W)
    wcf = wc_flat.astype(jnp.float32)
    acc = jnp.zeros((N, H, W, hidden), jnp.float32)
    for t in range(KH * KW):
        kh, kw = divmod(t, KW)
        acc = acc + jnp.einsum("nhwc,co->nhwo",
                               xp[:, kh:kh + H, kw:kw + W, :],
                               wcf[t * C:(t + 1) * C])
    acc = jnp.maximum(acc + params["bc"][0], 0.0)
    pooled = acc.reshape(N, H * W, hidden).sum(axis=1)
    return pooled @ wf_scaled.astype(jnp.float32) + params["bf"][0]


if __name__ == "__main__":
    key = jax.random.PRNGKey(0)
    kx, ky, kp = jax.random.split(key, 3)

    N, C, H, W = 8, 4, 16, 16        # batch, in_chans, spatial
    hidden, n_classes = 32, 8        # backbone width, num_classes

    x = jax.random.normal(kx, (N, C, H, W), jnp.float32)   # NCHW like PyTorch
    y = jax.random.randint(ky, (N,), 0, n_classes)

    params = init_params(kp, C, hidden, n_classes)

    # b_tile=4 -> M = 4*16*16 = 1024 rows per fused conv matmul, grid=(2,) so
    # both v7x TensorCores get a parallel step.
    out = tecno_forward(params, x, y, b_tile=4)
    logits = jax.block_until_ready(out["logits"])

    ref = tecno_reference(params, x)
    assert logits.shape == (N, n_classes)
    assert out["loss"] == 0
    np.testing.assert_allclose(np.asarray(logits), np.asarray(ref),
                               rtol=1e-3, atol=1e-3)

    # Inference-only call must not crash.
    out_inf = tecno_forward(params, x)
    jax.block_until_ready(out_inf["logits"])
    assert out_inf["logits"].shape == (N, n_classes)

    print("KERNEL_OK")
</pallas_src>

<mosaic_0001>
module attributes {stable_mosaic.version = 11 : i64} {
  func.func @_tecno_kernel(%arg0: i32, %arg1: memref<4x18x18x4xbf16, #tpu.memory_space<vmem>>, %arg2: memref<36x32xbf16, #tpu.memory_space<vmem>>, %arg3: memref<1x32xf32, #tpu.memory_space<vmem>>, %arg4: memref<32x128xbf16, #tpu.memory_space<vmem>>, %arg5: memref<1x128xf32, #tpu.memory_space<vmem>>, %arg6: memref<1x4x128xf32, #tpu.memory_space<vmem>>) attributes {dimension_semantics = [#tpu.dimension_semantics<parallel>], iteration_bounds = array<i64: 2>, scalar_prefetch = 0 : i64, scratch_operands = 0 : i64, tpu.core_type = #tpu.core_type<tc>, window_params = [{transform_indices = @transform_0, window_bounds = array<i64: 4, 18, 18, 4>}, {pipeline_mode = #tpu.pipeline_mode<synchronous>, transform_indices = @transform_1, window_bounds = array<i64: 36, 32>}, {pipeline_mode = #tpu.pipeline_mode<synchronous>, transform_indices = @transform_2, window_bounds = array<i64: 1, 32>}, {pipeline_mode = #tpu.pipeline_mode<synchronous>, transform_indices = @transform_3, window_bounds = array<i64: 32, 128>}, {pipeline_mode = #tpu.pipeline_mode<synchronous>, transform_indices = @transform_4, window_bounds = array<i64: 1, 128>}, {transform_indices = @transform_5, window_bounds = array<i64: 1, 4, 128>}]} {
    %c0 = arith.constant 0 : index
    %c0_0 = arith.constant 0 : index
    %c0_1 = arith.constant 0 : index
    %c0_2 = arith.constant 0 : index
    %0 = vector.load %arg1[%c0, %c0_0, %c0_1, %c0_2] : memref<4x18x18x4xbf16, #tpu.memory_space<vmem>>, vector<4x18x18x4xbf16>
    %1 = vector.extract_strided_slice %0 {offsets = [0, 0, 0, 0], sizes = [4, 16, 16, 4], strides = [1, 1, 1, 1]} : vector<4x18x18x4xbf16> to vector<4x16x16x4xbf16>
    %2 = vector.extract_strided_slice %0 {offsets = [0, 0, 1, 0], sizes = [4, 16, 16, 4], strides = [1, 1, 1, 1]} : vector<4x18x18x4xbf16> to vector<4x16x16x4xbf16>
    %3 = vector.extract_strided_slice %0 {offsets = [0, 0, 2, 0], sizes = [4, 16, 16, 4], strides = [1, 1, 1, 1]} : vector<4x18x18x4xbf16> to vector<4x16x16x4xbf16>
    %4 = vector.extract_strided_slice %0 {offsets = [0, 1, 0, 0], sizes = [4, 16, 16, 4], strides = [1, 1, 1, 1]} : vector<4x18x18x4xbf16> to vector<4x16x16x4xbf16>
    %5 = vector.extract_strided_slice %0 {offsets = [0, 1, 1, 0], sizes = [4, 16, 16, 4], strides = [1, 1, 1, 1]} : vector<4x18x18x4xbf16> to vector<4x16x16x4xbf16>
    %6 = vector.extract_strided_slice %0 {offsets = [0, 1, 2, 0], sizes = [4, 16, 16, 4], strides = [1, 1, 1, 1]} : vector<4x18x18x4xbf16> to vector<4x16x16x4xbf16>
    %7 = vector.extract_strided_slice %0 {offsets = [0, 2, 0, 0], sizes = [4, 16, 16, 4], strides = [1, 1, 1, 1]} : vector<4x18x18x4xbf16> to vector<4x16x16x4xbf16>
    %8 = vector.extract_strided_slice %0 {offsets = [0, 2, 1, 0], sizes = [4, 16, 16, 4], strides = [1, 1, 1, 1]} : vector<4x18x18x4xbf16> to vector<4x16x16x4xbf16>
    %9 = vector.extract_strided_slice %0 {offsets = [0, 2, 2, 0], sizes = [4, 16, 16, 4], strides = [1, 1, 1, 1]} : vector<4x18x18x4xbf16> to vector<4x16x16x4xbf16>
    %10 = tpu.concatenate %1, %2, %3, %4, %5, %6, %7, %8, %9 in 3 : vector<4x16x16x4xbf16>, vector<4x16x16x4xbf16>, vector<4x16x16x4xbf16>, vector<4x16x16x4xbf16>, vector<4x16x16x4xbf16>, vector<4x16x16x4xbf16>, vector<4x16x16x4xbf16>, vector<4x16x16x4xbf16>, vector<4x16x16x4xbf16> -> vector<4x16x16x36xbf16>
    %11 = vector.shape_cast %10 : vector<4x16x16x36xbf16> to vector<1024x36xbf16>
    %c0_3 = arith.constant 0 : index
    %c0_4 = arith.constant 0 : index
    %12 = vector.load %arg2[%c0_3, %c0_4] : memref<36x32xbf16, #tpu.memory_space<vmem>>, vector<36x32xbf16>
    %cst = arith.constant dense<0.000000e+00> : vector<1024x32xf32>
    %13 = tpu.matmul %11, %12, %cst {dimension_numbers = #tpu.dot_dimension_numbers<[1], [0], [0], [1], [0, 0, 1, 1], [], []>} : vector<1024x36xbf16>, vector<36x32xbf16>, vector<1024x32xf32> -> vector<1024x32xf32>
    %c0_5 = arith.constant 0 : index
    %c0_6 = arith.constant 0 : index
    %14 = vector.load %arg3[%c0_5, %c0_6] : memref<1x32xf32, #tpu.memory_space<vmem>>, vector<1x32xf32>
    %15 = vector.broadcast %14 : vector<1x32xf32> to vector<1024x32xf32>
    %16 = arith.addf %13, %15 : vector<1024x32xf32>
    %cst_7 = arith.constant 0.000000e+00 : f32
    %17 = vector.broadcast %cst_7 : f32 to vector<1024x32xf32>
    %18 = arith.maximumf %16, %17 : vector<1024x32xf32>
    %19 = vector.shape_cast %18 : vector<1024x32xf32> to vector<4x256x32xf32>
    %cst_8 = arith.constant dense<0.000000e+00> : vector<4x32xf32>
    %20 = vector.multi_reduction <add>, %19, %cst_8 [1] : vector<4x256x32xf32> to vector<4x32xf32>
    %c0_9 = arith.constant 0 : index
    %c0_10 = arith.constant 0 : index
    %21 = vector.load %arg4[%c0_9, %c0_10] : memref<32x128xbf16, #tpu.memory_space<vmem>>, vector<32x128xbf16>
    %22 = arith.extf %21 : vector<32x128xbf16> to vector<32x128xf32>
    %cst_11 = arith.constant dense<0.000000e+00> : vector<4x128xf32>
    %23 = tpu.matmul %20, %22, %cst_11 {dimension_numbers = #tpu.dot_dimension_numbers<[1], [0], [0], [1], [0, 0, 1, 1], [], []>} : vector<4x32xf32>, vector<32x128xf32>, vector<4x128xf32> -> vector<4x128xf32>
    %c0_12 = arith.constant 0 : index
    %c0_13 = arith.constant 0 : index
    %24 = vector.load %arg5[%c0_12, %c0_13] : memref<1x128xf32, #tpu.memory_space<vmem>>, vector<1x128xf32>
    %25 = vector.broadcast %24 : vector<1x128xf32> to vector<4x128xf32>
    %26 = arith.addf %23, %25 : vector<4x128xf32>
    %c0_14 = arith.constant 0 : index
    %c0_15 = arith.constant 0 : index
    %c0_16 = arith.constant 0 : index
    %27 = vector.load %arg6[%c0_14, %c0_15, %c0_16] : memref<1x4x128xf32, #tpu.memory_space<vmem>>, vector<1x4x128xf32>
    %28 = vector.shape_cast %27 : vector<1x4x128xf32> to vector<4x128xf32>
    %29 = vector.shape_cast %26 : vector<4x128xf32> to vector<1x4x128xf32>
    tpu.vector_store %arg6[%c0_14, %c0_15, %c0_16], %29 {strides = array<i32>} : memref<1x4x128xf32, #tpu.memory_space<vmem>>, vector<1x4x128xf32>,
    return
  }
  func.func @transform_0(%arg0: i32) -> (i32, i32, i32, i32) {
    %c0_i32 = arith.constant 0 : i32
    %c0_i32_0 = arith.constant 0 : i32
    %c0_i32_1 = arith.constant 0 : i32
    %c0_i32_2 = arith.constant 0 : i32
    return %arg0, %c0_i32, %c0_i32_0, %c0_i32_1 : i32, i32, i32, i32
  }
  func.func @transform_1(%arg0: i32) -> (i32, i32) {
    %c0_i32 = arith.constant 0 : i32
    %c0_i32_0 = arith.constant 0 : i32
    %c0_i32_1 = arith.constant 0 : i32
    return %c0_i32, %c0_i32_0 : i32, i32
  }
  func.func @transform_2(%arg0: i32) -> (i32, i32) {
    %c0_i32 = arith.constant 0 : i32
    %c0_i32_0 = arith.constant 0 : i32
    %c0_i32_1 = arith.constant 0 : i32
    return %c0_i32, %c0_i32_0 : i32, i32
  }
  func.func @transform_3(%arg0: i32) -> (i32, i32) {
    %c0_i32 = arith.constant 0 : i32
    %c0_i32_0 = arith.constant 0 : i32
    %c0_i32_1 = arith.constant 0 : i32
    return %c0_i32, %c0_i32_0 : i32, i32
  }
  func.func @transform_4(%arg0: i32) -> (i32, i32) {
    %c0_i32 = arith.constant 0 : i32
    %c0_i32_0 = arith.constant 0 : i32
    %c0_i32_1 = arith.constant 0 : i32
    return %c0_i32, %c0_i32_0 : i32, i32
  }
  func.func @transform_5(%arg0: i32) -> (i32, i32, i32) {
    %c0_i32 = arith.constant 0 : i32
    %c0_i32_0 = arith.constant 0 : i32
    %c0_i32_1 = arith.constant 0 : i32
    return %arg0, %c0_i32, %c0_i32_0 : i32, i32, i32
  }
}

</mosaic_0001>

<llo_original>
// kernel: tpu_custom_call.1
$region0: #{tpu_custom_call.1}
  #allocation0 [shape = 'u32[]', space=smem, size = 0x4, offset = 0x4, fixed_abs, tag = 'smem constant byte address 0x4 - core index']
  #allocation1 [shape = 'u32[144,128]{1,0:T(1,128)}', space=vmem, size = 0x12000, scoped, tag = 'internal scratch']
  %s0 = inlined_call_operand.vmem [shape: bf16[8,18,18,4], index: 0, kind: input, shape index: {}]
  %s1 = inlined_call_operand.vmem [shape: bf16[36,32], index: 1, kind: input, shape index: {}]
  %s2 = inlined_call_operand.vmem [shape: f32[1,32], index: 2, kind: input, shape index: {}]
  %s3 = inlined_call_operand.vmem [shape: bf16[32,128], index: 3, kind: input, shape index: {}]
  %s4 = inlined_call_operand.vmem [shape: f32[1,128], index: 4, kind: input, shape index: {}]
  %s5 = inlined_call_operand.hbm [shape: f32[2,4,128], index: 5, kind: output, shape index: {}]
  %s6 = sld [smem:[#allocation0]]
  $region53: #{tpu_custom_call.1} parent=0
    _
  %s8 = ssub.s32 1, %s6
  %s9 = scalar_select 0, %s8, %s6
  $region1: #{tpu_custom_call.1} parent=0
    #allocation2 [shape = 'u8[4096]{0}', space=vmem, size = 0x1000, scoped, tag = 'output window, operand 0']
    #allocation3 [shape = 's32[2]{0}', space=sflag, size = 0x8, scoped, tag = 'scoped memory for tpu_custom_call.1']
    %10 = vsyncpa [#allocation3], 0
    %s11 = scalar_lea.sflag [#allocation3], 1
    %12 = vsyncpa %s11, 0
    loop: start=0, step=1, limit=4
    $region2: #{tpu_custom_call.1} parent=1 // loop_pre_header
      _
    $region3: #{tpu_custom_call.1} parent=1 // loop_header
      %s14 = sphi 0, %s18
      %p15 = scmp.ge.s32.totalorder %s14, 4
      %s24 = sphi 0, %s26
      %s27 = sphi 0, %s24
      %s28 = sphi 0, %s27
      %s44 = sphi 0, %s28
      %s48 = sphi 0, %s48
      %s50 = sphi 0, %s48
      %s51 = sphi 0, %s50
      %s65 = sphi 0, %s51
      %s69 = sphi 0, %s69
      %s71 = sphi 0, %s69
      %s72 = sphi 0, %s71
      %s86 = sphi 0, %s72
      %s90 = sphi 0, %s90
      %s92 = sphi 0, %s90
      %s93 = sphi 0, %s92
      %s107 = sphi 0, %s93
      %s111 = sphi 0, %s111
      %s113 = sphi 0, %s111
      %s114 = sphi 0, %s113
      %s128 = sphi 0, %s114
      %s134 = sphi 0, %s136
      %s137 = sphi 0, %s134
      %s138 = sphi 0, %s137
      %s154 = sphi 0, %s138
    $region4: #{tpu_custom_call.1} parent=1 // loop_header_branch
      %17 = sbr.rel (%p15) target = $region8
    $region5: #{tpu_custom_call.1} parent=1 // loop_body
      %s19 = ssub.s32 %s14, 1
      %s20 = ssub.s32 %s14, 2
      %s21 = sadd.s32 %s14, 1
      %s22 = ssub.s32 %s14, %s21
      %p23 = scmp.eq.s32.totalorder %s22, 0
      %s25 = sadd.s32 %s24, 1
      %s26 = scalar_select %p23, %s24, %s25
      %p29 = pneg %p23
      %p30 = scmp.eq.s32.totalorder %s14, 1
      %p31 = por %p29, %p30
      %p32 = scmp.ne.s32.totalorder %s24, %s27
      %p33 = scmp.eq.s32.totalorder %s14, 0
      %p34 = por %p32, %p33
      %p35 = scmp.ne.s32.totalorder %s24, %s27
      %p36 = scmp.eq.s32.totalorder %s19, 1
      %p37 = por %p35, %p36
      %p38 = scmp.ne.s32.totalorder %s27, %s28
      %p39 = scmp.eq.s32.totalorder %s19, 0
      %p40 = por %p38, %p39
      %p41 = scmp.ne.s32.totalorder %s27, %s28
      %p42 = scmp.eq.s32.totalorder %s20, 1
      %p43 = por %p41, %p42
      %p45 = scmp.ne.s32.totalorder %s28, %s44
      %p46 = scmp.eq.s32.totalorder %s20, 0
      %p47 = por %p45, %p46
      %s49 = sadd.s32 %s48, 1
      %p52 = scmp.eq.s32.totalorder %s14, 1
      %p53 = scmp.ne.s32.totalorder %s48, %s50
      %p54 = scmp.eq.s32.totalorder %s14, 0
      %p55 = por %p53, %p54
      %p56 = scmp.ne.s32.totalorder %s48, %s50
      %p57 = scmp.eq.s32.totalorder %s19, 1
      %p58 = por %p56, %p57
      %p59 = scmp.ne.s32.totalorder %s50, %s51
      %p60 = scmp.eq.s32.totalorder %s19, 0
      %p61 = por %p59, %p60
      %p62 = scmp.ne.s32.totalorder %s50, %s51
      %p63 = scmp.eq.s32.totalorder %s20, 1
      %p64 = por %p62, %p63
      %p66 = scmp.ne.s32.totalorder %s51, %s65
      %p67 = scmp.eq.s32.totalorder %s20, 0
      %p68 = por %p66, %p67
      %s70 = sadd.s32 %s69, 1
      %p73 = scmp.eq.s32.totalorder %s14, 1
      %p74 = scmp.ne.s32.totalorder %s69, %s71
      %p75 = scmp.eq.s32.totalorder %s14, 0
      %p76 = por %p74, %p75
      %p77 = scmp.ne.s32.totalorder %s69, %s71
      %p78 = scmp.eq.s32.totalorder %s19, 1
      %p79 = por %p77, %p78
      %p80 = scmp.ne.s32.totalorder %s71, %s72
      %p81 = scmp.eq.s32.totalorder %s19, 0
      %p82 = por %p80, %p81
      %p83 = scmp.ne.s32.totalorder %s71, %s72
      %p84 = scmp.eq.s32.totalorder %s20, 1
      %p85 = por %p83, %p84
      %p87 = scmp.ne.s32.totalorder %s72, %s86
      %p88 = scmp.eq.s32.totalorder %s20, 0
      %p89 = por %p87, %p88
      %s91 = sadd.s32 %s90, 1
      %p94 = scmp.eq.s32.totalorder %s14, 1
      %p95 = scmp.ne.s32.totalorder %s90, %s92
      %p96 = scmp.eq.s32.totalorder %s14, 0
      %p97 = por %p95, %p96
      %p98 = scmp.ne.s32.totalorder %s90, %s92
      %p99 = scmp.eq.s32.totalorder %s19, 1
      %p100 = por %p98, %p99
      %p101 = scmp.ne.s32.totalorder %s92, %s93
      %p102 = scmp.eq.s32.totalorder %s19, 0
      %p103 = por %p101, %p102
      %p104 = scmp.ne.s32.totalorder %s92, %s93
      %p105 = scmp.eq.s32.totalorder %s20, 1
      %p106 = por %p104, %p105
      %p108 = scmp.ne.s32.totalorder %s93, %s107
      %p109 = scmp.eq.s32.totalorder %s20, 0
      %p110 = por %p108, %p109
      %s112 = sadd.s32 %s111, 1
      %p115 = scmp.eq.s32.totalorder %s14, 1
      %p116 = scmp.ne.s32.totalorder %s111, %s113
      %p117 = scmp.eq.s32.totalorder %s14, 0
      %p118 = por %p116, %p117
      %p119 = scmp.ne.s32.totalorder %s111, %s113
      %p120 = scmp.eq.s32.totalorder %s19, 1
      %p121 = por %p119, %p120
      %p122 = scmp.ne.s32.totalorder %s113, %s114
      %p123 = scmp.eq.s32.totalorder %s19, 0
      %p124 = por %p122, %p123
      %p125 = scmp.ne.s32.totalorder %s113, %s114
      %p126 = scmp.eq.s32.totalorder %s20, 1
      %p127 = por %p125, %p126
      %p129 = scmp.ne.s32.totalorder %s114, %s128
      %p130 = scmp.eq.s32.totalorder %s20, 0
      %p131 = por %p129, %p130
      %s132 = ssub.s32 %s14, %s21
      %p133 = scmp.eq.s32.totalorder %s132, 0
      %s135 = sadd.s32 %s134, 1
      %s136 = scalar_select %p133, %s134, %s135
      %p139 = pneg %p133
      %p140 = scmp.eq.s32.totalorder %s14, 1
      %p141 = por %p139, %p140
      %p142 = scmp.ne.s32.totalorder %s134, %s137
      %p143 = scmp.eq.s32.totalorder %s14, 0
      %p144 = por %p142, %p143
      %p145 = scmp.ne.s32.totalorder %s134, %s137
      %p146 = scmp.eq.s32.totalorder %s19, 1
      %p147 = por %p145, %p146
      %p148 = scmp.ne.s32.totalorder %s137, %s138
      %p149 = scmp.eq.s32.totalorder %s19, 0
      %p150 = por %p148, %p149
      %p151 = scmp.ne.s32.totalorder %s137, %s138
      %p152 = scmp.eq.s32.totalorder %s20, 1
      %p153 = por %p151, %p152
      %p155 = scmp.ne.s32.totalorder %s138, %s154
      %p156 = scmp.eq.s32.totalorder %s20, 0
      %p157 = por %p155, %p156
      %p158 = scmp.le.s32.totalorder 1, %s14
      %p159 = scmp.lt.s32.totalorder %s14, 3
      %p160 = pnand %p158, %p159
      %p161 = pneg %p160
      // Predicated region
      $region9: #{tpu_custom_call.1} parent=5 // pred_check
        _
      $region10: #{tpu_custom_call.1} parent=5 // pred_check_branch
        %163 = sbr.rel (%p160) target = $region12
      $region11: #{tpu_custom_call.1} parent=5 // pred_region
        %s164 = ssub.s32 %s14, 1
        // Predicated region
        $region13: #{tpu_custom_call.1} parent=11 // pred_check
          %p165 = pneg %p61
        $region14: #{tpu_custom_call.1} parent=11 // pred_check_branch
          %167 = sbr.rel (%p165) target = $region16
        $region15: #{tpu_custom_call.1} parent=11 // pred_region
          _
        $region16: #{tpu_custom_call.1} parent=11 // pred_fallthru
          _
        // Predicated region
        $region17: #{tpu_custom_call.1} parent=11 // pred_check
          %p168 = pneg %p82
        $region18: #{tpu_custom_call.1} parent=11 // pred_check_branch
          %170 = sbr.rel (%p168) target = $region20
        $region19: #{tpu_custom_call.1} parent=11 // pred_region
          _
        $region20: #{tpu_custom_call.1} parent=11 // pred_fallthru
          _
        // Predicated region
        $region21: #{tpu_custom_call.1} parent=11 // pred_check
          %p171 = pneg %p103
        $region22: #{tpu_custom_call.1} parent=11 // pred_check_branch
          %173 = sbr.rel (%p171) target = $region24
        $region23: #{tpu_custom_call.1} parent=11 // pred_region
          _
        $region24: #{tpu_custom_call.1} parent=11 // pred_fallthru
          _
        // Predicated region
        $region25: #{tpu_custom_call.1} parent=11 // pred_check
          %p174 = pneg %p124
        $region26: #{tpu_custom_call.1} parent=11 // pred_check_branch
          %176 = sbr.rel (%p174) target = $region28
        $region27: #{tpu_custom_call.1} parent=11 // pred_region
          _
        $region28: #{tpu_custom_call.1} parent=11 // pred_fallthru
          _
      $region12: #{tpu_custom_call.1} parent=5 // pred_fallthru
        _
      %p177 = scmp.lt.s32.totalorder %s14, 2
      // Predicated region
      $region29: #{tpu_custom_call.1} parent=5 // pred_check
        %p178 = pneg %p177
      $region30: #{tpu_custom_call.1} parent=5 // pred_check_branch
        %180 = sbr.rel (%p178) target = $region32
      $region31: #{tpu_custom_call.1} parent=5 // pred_region
        // Predicated region
        $region33: #{tpu_custom_call.1} parent=31 // pred_check
          %p181 = pneg %p34
        $region34: #{tpu_custom_call.1} parent=31 // pred_check_branch
          %183 = sbr.rel (%p181) target = $region36
        $region35: #{tpu_custom_call.1} parent=31 // pred_region
          %s184 = smul.u32 4, %s14
          %p185 = scmp.lt.s32.totalorder %s184, 7
          %s186 = scalar_select %p185, %s184, 7
          %s187 = smul.addr %s186, 54
          %s188 = smul.addr %s187, 4
          %s189 = scalar_lea.vmem %s0, %s188
          %s190 = smul.u32 4, %s14
        $region36: #{tpu_custom_call.1} parent=31 // pred_fallthru
          _
      $region32: #{tpu_custom_call.1} parent=5 // pred_fallthru
        _
      %p191 = scmp.le.s32.totalorder 1, %s14
      %p192 = scmp.lt.s32.totalorder %s14, 3
      %p193 = pnand %p191, %p192
      %p194 = pneg %p193
      // Predicated region
      $region37: #{tpu_custom_call.1} parent=5 // pred_check
        _
      $region38: #{tpu_custom_call.1} parent=5 // pred_check_branch
        %196 = sbr.rel (%p193) target = $region40
      $region39: #{tpu_custom_call.1} parent=5 // pred_region
        %s197 = ssub.s32 %s14, 1
        %s198 = smul.u32 4, %s19
        %p199 = scmp.lt.s32.totalorder %s198, 7
        %s200 = scalar_select %p199, %s198, 7
        %s201 = smul.addr %s200, 54
        %s202 = smul.addr %s201, 4
        %s203 = scalar_lea.vmem %s0, %s202
        %p204 = pneg %p40
        %p205 = pneg %p37
        %p206 = pneg %p61
        %p207 = pneg %p58
        %p208 = pneg %p82
        %p209 = pneg %p79
        %p210 = pneg %p103
        %p211 = pneg %p100
        %p212 = pneg %p124
        %p213 = pneg %p121
        %p214 = pneg %p150
        %p215 = pneg %p147
        %s216 = sand.u32 %s137, 1
        %s217 = scalar_lea.sflag [#allocation3], %s216
        %s218 = sand.u32 %s137, 1
        %s219 = smul.addr %s218, 4
        %s220 = scalar_lea.vmem [#allocation2], %s219
        %s221 = smul.u32 4, %s19
        %p222 = scmp.lt.s32.totalorder %s221, 7
        %s223 = scalar_select %p222, %s221, 7
        %s224 = smul.addr %s223, 54
        %s225 = smul.addr %s224, 4
        %s226 = scalar_lea.vmem %s0, %s225
        %s227 = smul.u32 4, %s19
        %v229 = vld [vmem:[%s226] sm:$0xf]
        %v230 = vld [vmem:[%s226 + $0x4] sm:$0xf]
        %v231 = vld [vmem:[%s226 + $0x8] sm:$0x1]
        %v232 = vld [vmem:[%s226 + $0xc] sm:$0xf]
        %v233 = vld [vmem:[%s226 + $0x10] sm:$0xf]
        %v234 = vld [vmem:[%s226 + $0x14] sm:$0x1]
        %v235 = vld [vmem:[%s226 + $0x18] sm:$0xf]
        %v236 = vld [vmem:[%s226 + $0x1c] sm:$0xf]
        %v237 = vld [vmem:[%s226 + $0x20] sm:$0x1]
        %v238 = vld [vmem:[%s226 + $0x24] sm:$0xf]
        %v239 = vld [vmem:[%s226 + $0x28] sm:$0xf]
        %v240 = vld [vmem:[%s226 + $0x2c] sm:$0x1]
        %v241 = vld [vmem:[%s226 + $0x30] sm:$0xf]
        %v242 = vld [vmem:[%s226 + $0x34] sm:$0xf]
        %v243 = vld [vmem:[%s226 + $0x38] sm:$0x1]
        %v244 = vld [vmem:[%s226 + $0x3c] sm:$0xf]
        %v245 = vld [vmem:[%s226 + $0x40] sm:$0xf]
        %v246 = vld [vmem:[%s226 + $0x44] sm:$0x1]
        %v247 = vld [vmem:[%s226 + $0x48] sm:$0xf]
        %v248 = vld [vmem:[%s226 + $0x4c] sm:$0xf]
        %v249 = vld [vmem:[%s226 + $0x50] sm:$0x1]
        %v250 = vld [vmem:[%s226 + $0x54] sm:$0xf]
        %v251 = vld [vmem:[%s226 + $0x58] sm:$0xf]
        %v252 = vld [vmem:[%s226 + $0x5c] sm:$0x1]
        %v253 = vld [vmem:[%s226 + $0x60] sm:$0xf]
        %v254 = vld [vmem:[%s226 + $0x64] sm:$0xf]
        %v255 = vld [vmem:[%s226 + $0x68] sm:$0x1]
        %v256 = vld [vmem:[%s226 + $0x6c] sm:$0xf]
        %v257 = vld [vmem:[%s226 + $0x70] sm:$0xf]
        %v258 = vld [vmem:[%s226 + $0x74] sm:$0x1]
        %v259 = vld [vmem:[%s226 + $0x78] sm:$0xf]
        %v260 = vld [vmem:[%s226 + $0x7c] sm:$0xf]
        %v261 = vld [vmem:[%s226 + $0x80] sm:$0x1]
        %v262 = vld [vmem:[%s226 + $0x84] sm:$0xf]
        %v263 = vld [vmem:[%s226 + $0x88] sm:$0xf]
        %v264 = vld [vmem:[%s226 + $0x8c] sm:$0x1]
        %v265 = vld [vmem:[%s226 + $0x90] sm:$0xf]
        %v266 = vld [vmem:[%s226 + $0x94] sm:$0xf]
        %v267 = vld [vmem:[%s226 + $0x98] sm:$0x1]
        %v268 = vld [vmem:[%s226 + $0x9c] sm:$0xf]
        %v269 = vld [vmem:[%s226 + $0xa0] sm:$0xf]
        %v270 = vld [vmem:[%s226 + $0xa4] sm:$0x1]
        %v271 = vld [vmem:[%s226 + $0xa8] sm:$0xf]
        %v272 = vld [vmem:[%s226 + $0xac] sm:$0xf]
        %v273 = vld [vmem:[%s226 + $0xb0] sm:$0x1]
        %v274 = vld [vmem:[%s226 + $0xb4] sm:$0xf]
        %v275 = vld [vmem:[%s226 + $0xb8] sm:$0xf]
        %v276 = vld [vmem:[%s226 + $0xbc] sm:$0x1]
        %v277 = vld [vmem:[%s226 + $0xc0] sm:$0xf]
        %v278 = vld [vmem:[%s226 + $0xc4] sm:$0xf]
        %v279 = vld [vmem:[%s226 + $0xc8] sm:$0x1]
        %v280 = vld [vmem:[%s226 + $0xcc] sm:$0xf]
        %v281 = vld [vmem:[%s226 + $0xd0] sm:$0xf]
        %v282 = vld [vmem:[%s226 + $0xd4] sm:$0x1]
        %v283 = vld [vmem:[%s226 + $0xd8] sm:$0xf]
        %v284 = vld [vmem:[%s226 + $0xdc] sm:$0xf]
        %v285 = vld [vmem:[%s226 + $0xe0] sm:$0x1]
        %v286 = vld [vmem:[%s226 + $0xe4] sm:$0xf]
        %v287 = vld [vmem:[%s226 + $0xe8] sm:$0xf]
        %v288 = vld [vmem:[%s226 + $0xec] sm:$0x1]
        %v289 = vld [vmem:[%s226 + $0xf0] sm:$0xf]
        %v290 = vld [vmem:[%s226 + $0xf4] sm:$0xf]
        %v291 = vld [vmem:[%s226 + $0xf8] sm:$0x1]
        %v292 = vld [vmem:[%s226 + $0xfc] sm:$0xf]
        %v293 = vld [vmem:[%s226 + $0x100] sm:$0xf]
        %v294 = vld [vmem:[%s226 + $0x104] sm:$0x1]
        %v295 = vld [vmem:[%s226 + $0x108] sm:$0xf]
        %v296 = vld [vmem:[%s226 + $0x10c] sm:$0xf]
        %v297 = vld [vmem:[%s226 + $0x110] sm:$0x1]
        %v298 = vld [vmem:[%s226 + $0x114] sm:$0xf]
        %v299 = vld [vmem:[%s226 + $0x118] sm:$0xf]
        %v300 = vld [vmem:[%s226 + $0x11c] sm:$0x1]
        %v301 = vld [vmem:[%s226 + $0x120] sm:$0xf]
        %v302 = vld [vmem:[%s226 + $0x124] sm:$0xf]
        %v303 = vld [vmem:[%s226 + $0x128] sm:$0x1]
        %v304 = vld [vmem:[%s226 + $0x12c] sm:$0xf]
        %v305 = vld [vmem:[%s226 + $0x130] sm:$0xf]
        %v306 = vld [vmem:[%s226 + $0x134] sm:$0x1]
        %v307 = vld [vmem:[%s226 + $0x138] sm:$0xf]
        %v308 = vld [vmem:[%s226 + $0x13c] sm:$0xf]
        %v309 = vld [vmem:[%s226 + $0x140] sm:$0x1]
        %v310 = vld [vmem:[%s226 + $0x144] sm:$0xf]
        %v311 = vld [vmem:[%s226 + $0x148] sm:$0xf]
        %v312 = vld [vmem:[%s226 + $0x14c] sm:$0x1]
        %v313 = vld [vmem:[%s226 + $0x150] sm:$0xf]
        %v314 = vld [vmem:[%s226 + $0x154] sm:$0xf]
        %v315 = vld [vmem:[%s226 + $0x158] sm:$0x1]
        %v316 = vld [vmem:[%s226 + $0x15c] sm:$0xf]
        %v317 = vld [vmem:[%s226 + $0x160] sm:$0xf]
        %v318 = vld [vmem:[%s226 + $0x164] sm:$0x1]
        %v319 = vld [vmem:[%s226 + $0x168] sm:$0xf]
        %v320 = vld [vmem:[%s226 + $0x16c] sm:$0xf]
        %v321 = vld [vmem:[%s226 + $0x170] sm:$0x1]
        %v322 = vld [vmem:[%s226 + $0x174] sm:$0xf]
        %v323 = vld [vmem:[%s226 + $0x178] sm:$0xf]
        %v324 = vld [vmem:[%s226 + $0x17c] sm:$0x1]
        %v325 = vld [vmem:[%s226 + $0x180] sm:$0xf]
        %v326 = vld [vmem:[%s226 + $0x184] sm:$0xf]
        %v327 = vld [vmem:[%s226 + $0x188] sm:$0x1]
        %v328 = vld [vmem:[%s226 + $0x18c] sm:$0xf]
        %v329 = vld [vmem:[%s226 + $0x190] sm:$0xf]
        %v330 = vld [vmem:[%s226 + $0x194] sm:$0x1]
        %v331 = vld [vmem:[%s226 + $0x198] sm:$0xf]
        %v332 = vld [vmem:[%s226 + $0x19c] sm:$0xf]
        %v333 = vld [vmem:[%s226 + $0x1a0] sm:$0x1]
        %v334 = vld [vmem:[%s226 + $0x1a4] sm:$0xf]
        %v335 = vld [vmem:[%s226 + $0x1a8] sm:$0xf]
        %v336 = vld [vmem:[%s226 + $0x1ac] sm:$0x1]
        %v337 = vld [vmem:[%s226 + $0x1b0] sm:$0xf]
        %v338 = vld [vmem:[%s226 + $0x1b4] sm:$0xf]
        %v339 = vld [vmem:[%s226 + $0x1b8] sm:$0x1]
        %v340 = vld [vmem:[%s226 + $0x1bc] sm:$0xf]
        %v341 = vld [vmem:[%s226 + $0x1c0] sm:$0xf]
        %v342 = vld [vmem:[%s226 + $0x1c4] sm:$0x1]
        %v343 = vld [vmem:[%s226 + $0x1c8] sm:$0xf]
        %v344 = vld [vmem:[%s226 + $0x1cc] sm:$0xf]
        %v345 = vld [vmem:[%s226 + $0x1d0] sm:$0x1]
        %v346 = vld [vmem:[%s226 + $0x1d4] sm:$0xf]
        %v347 = vld [vmem:[%s226 + $0x1d8] sm:$0xf]
        %v348 = vld [vmem:[%s226 + $0x1dc] sm:$0x1]
        %v349 = vld [vmem:[%s226 + $0x1e0] sm:$0xf]
        %v350 = vld [vmem:[%s226 + $0x1e4] sm:$0xf]
        %v351 = vld [vmem:[%s226 + $0x1e8] sm:$0x1]
        %v352 = vld [vmem:[%s226 + $0x1ec] sm:$0xf]
        %v353 = vld [vmem:[%s226 + $0x1f0] sm:$0xf]
        %v354 = vld [vmem:[%s226 + $0x1f4] sm:$0x1]
        %v355 = vld [vmem:[%s226 + $0x1f8] sm:$0xf]
        %v356 = vld [vmem:[%s226 + $0x1fc] sm:$0xf]
        %v357 = vld [vmem:[%s226 + $0x200] sm:$0x1]
        %v358 = vld [vmem:[%s226 + $0x204] sm:$0xf]
        %v359 = vld [vmem:[%s226 + $0x208] sm:$0xf]
        %v360 = vld [vmem:[%s226 + $0x20c] sm:$0x1]
        %v361 = vld [vmem:[%s226 + $0x210] sm:$0xf]
        %v362 = vld [vmem:[%s226 + $0x214] sm:$0xf]
        %v363 = vld [vmem:[%s226 + $0x218] sm:$0x1]
        %v364 = vld [vmem:[%s226 + $0x21c] sm:$0xf]
        %v365 = vld [vmem:[%s226 + $0x220] sm:$0xf]
        %v366 = vld [vmem:[%s226 + $0x224] sm:$0x1]
        %v367 = vld [vmem:[%s226 + $0x228] sm:$0xf]
        %v368 = vld [vmem:[%s226 + $0x22c] sm:$0xf]
        %v369 = vld [vmem:[%s226 + $0x230] sm:$0x1]
        %v370 = vld [vmem:[%s226 + $0x234] sm:$0xf]
        %v371 = vld [vmem:[%s226 + $0x238] sm:$0xf]
        %v372 = vld [vmem:[%s226 + $0x23c] sm:$0x1]
        %v373 = vld [vmem:[%s226 + $0x240] sm:$0xf]
        %v374 = vld [vmem:[%s226 + $0x244] sm:$0xf]
        %v375 = vld [vmem:[%s226 + $0x248] sm:$0x1]
        %v376 = vld [vmem:[%s226 + $0x24c] sm:$0xf]
        %v377 = vld [vmem:[%s226 + $0x250] sm:$0xf]
        %v378 = vld [vmem:[%s226 + $0x254] sm:$0x1]
        %v379 = vld [vmem:[%s226 + $0x258] sm:$0xf]
        %v380 = vld [vmem:[%s226 + $0x25c] sm:$0xf]
        %v381 = vld [vmem:[%s226 + $0x260] sm:$0x1]
        %v382 = vld [vmem:[%s226 + $0x264] sm:$0xf]
        %v383 = vld [vmem:[%s226 + $0x268] sm:$0xf]
        %v384 = vld [vmem:[%s226 + $0x26c] sm:$0x1]
        %v385 = vld [vmem:[%s226 + $0x270] sm:$0xf]
        %v386 = vld [vmem:[%s226 + $0x274] sm:$0xf]
        %v387 = vld [vmem:[%s226 + $0x278] sm:$0x1]
        %v388 = vld [vmem:[%s226 + $0x27c] sm:$0xf]
        %v389 = vld [vmem:[%s226 + $0x280] sm:$0xf]
        %v390 = vld [vmem:[%s226 + $0x284] sm:$0x1]
        %v391 = vld [vmem:[%s226 + $0x288] sm:$0xf]
        %v392 = vld [vmem:[%s226 + $0x28c] sm:$0xf]
        %v393 = vld [vmem:[%s226 + $0x290] sm:$0x1]
        %v394 = vld [vmem:[%s226 + $0x294] sm:$0xf]
        %v395 = vld [vmem:[%s226 + $0x298] sm:$0xf]
        %v396 = vld [vmem:[%s226 + $0x29c] sm:$0x1]
        %v397 = vld [vmem:[%s226 + $0x2a0] sm:$0xf]
        %v398 = vld [vmem:[%s226 + $0x2a4] sm:$0xf]
        %v399 = vld [vmem:[%s226 + $0x2a8] sm:$0x1]
        %v400 = vld [vmem:[%s226 + $0x2ac] sm:$0xf]
        %v401 = vld [vmem:[%s226 + $0x2b0] sm:$0xf]
        %v402 = vld [vmem:[%s226 + $0x2b4] sm:$0x1]
        %v403 = vld [vmem:[%s226 + $0x2b8] sm:$0xf]
        %v404 = vld [vmem:[%s226 + $0x2bc] sm:$0xf]
        %v405 = vld [vmem:[%s226 + $0x2c0] sm:$0x1]
        %v406 = vld [vmem:[%s226 + $0x2c4] sm:$0xf]
        %v407 = vld [vmem:[%s226 + $0x2c8] sm:$0xf]
        %v408 = vld [vmem:[%s226 + $0x2cc] sm:$0x1]
        %v409 = vld [vmem:[%s226 + $0x2d0] sm:$0xf]
        %v410 = vld [vmem:[%s226 + $0x2d4] sm:$0xf]
        %v411 = vld [vmem:[%s226 + $0x2d8] sm:$0x1]
        %v412 = vld [vmem:[%s226 + $0x2dc] sm:$0xf]
        %v413 = vld [vmem:[%s226 + $0x2e0] sm:$0xf]
        %v414 = vld [vmem:[%s226 + $0x2e4] sm:$0x1]
        %v415 = vld [vmem:[%s226 + $0x2e8] sm:$0xf]
        %v416 = vld [vmem:[%s226 + $0x2ec] sm:$0xf]
        %v417 = vld [vmem:[%s226 + $0x2f0] sm:$0x1]
        %v418 = vld [vmem:[%s226 + $0x2f4] sm:$0xf]
        %v419 = vld [vmem:[%s226 + $0x2f8] sm:$0xf]
        %v420 = vld [vmem:[%s226 + $0x2fc] sm:$0x1]
        %v421 = vld [vmem:[%s226 + $0x300] sm:$0xf]
        %v422 = vld [vmem:[%s226 + $0x304] sm:$0xf]
        %v423 = vld [vmem:[%s226 + $0x308] sm:$0x1]
        %v424 = vld [vmem:[%s226 + $0x30c] sm:$0xf]
        %v425 = vld [vmem:[%s226 + $0x310] sm:$0xf]
        %v426 = vld [vmem:[%s226 + $0x314] sm:$0x1]
        %v427 = vld [vmem:[%s226 + $0x318] sm:$0xf]
        %v428 = vld [vmem:[%s226 + $0x31c] sm:$0xf]
        %v429 = vld [vmem:[%s226 + $0x320] sm:$0x1]
        %v430 = vld [vmem:[%s226 + $0x324] sm:$0xf]
        %v431 = vld [vmem:[%s226 + $0x328] sm:$0xf]
        %v432 = vld [vmem:[%s226 + $0x32c] sm:$0x1]
        %v433 = vld [vmem:[%s226 + $0x330] sm:$0xf]
        %v434 = vld [vmem:[%s226 + $0x334] sm:$0xf]
        %v435 = vld [vmem:[%s226 + $0x338] sm:$0x1]
        %v436 = vld [vmem:[%s226 + $0x33c] sm:$0xf]
        %v437 = vld [vmem:[%s226 + $0x340] sm:$0xf]
        %v438 = vld [vmem:[%s226 + $0x344] sm:$0x1]
        %v439 = vld [vmem:[%s226 + $0x348] sm:$0xf]
        %v440 = vld [vmem:[%s226 + $0x34c] sm:$0xf]
        %v441 = vld [vmem:[%s226 + $0x350] sm:$0x1]
        %v442 = vld [vmem:[%s226 + $0x354] sm:$0xf]
        %v443 = vld [vmem:[%s226 + $0x358] sm:$0xf]
        %v444 = vld [vmem:[%s226 + $0x35c] sm:$0x1]
        %v573 = vunpack.c.l.b16 %v229
        %v574 = vunpack.c.l.b16 %v230
        %v575 = vunpack.c.l.b16 %v232
        %v576 = vunpack.c.l.b16 %v233
        %v577 = vunpack.c.l.b16 %v235
        %v578 = vunpack.c.l.b16 %v236
        %v579 = vunpack.c.l.b16 %v238
        %v580 = vunpack.c.l.b16 %v239
        %v581 = vunpack.c.l.b16 %v241
        %v582 = vunpack.c.l.b16 %v242
        %v583 = vunpack.c.l.b16 %v244
        %v584 = vunpack.c.l.b16 %v245
        %v585 = vunpack.c.l.b16 %v247
        %v586 = vunpack.c.l.b16 %v248
        %v587 = vunpack.c.l.b16 %v250
        %v588 = vunpack.c.l.b16 %v251
        %v589 = vunpack.c.l.b16 %v253
        %v590 = vunpack.c.l.b16 %v254
        %v591 = vunpack.c.l.b16 %v256
        %v592 = vunpack.c.l.b16 %v257
        %v593 = vunpack.c.l.b16 %v259
        %v594 = vunpack.c.l.b16 %v260
        %v595 = vunpack.c.l.b16 %v262
        %v596 = vunpack.c.l.b16 %v263
        %v597 = vunpack.c.l.b16 %v265
        %v598 = vunpack.c.l.b16 %v266
        %v599 = vunpack.c.l.b16 %v268
        %v600 = vunpack.c.l.b16 %v269
        %v601 = vunpack.c.l.b16 %v271
        %v602 = vunpack.c.l.b16 %v272
        %v603 = vunpack.c.l.b16 %v274
        %v604 = vunpack.c.l.b16 %v275
        %v605 = vunpack.c.l.b16 %v283
        %v606 = vunpack.c.l.b16 %v284
        %v607 = vunpack.c.l.b16 %v286
        %v608 = vunpack.c.l.b16 %v287
        %v609 = vunpack.c.l.b16 %v289
        %v610 = vunpack.c.l.b16 %v290
        %v611 = vunpack.c.l.b16 %v292
        %v612 = vunpack.c.l.b16 %v293
        %v613 = vunpack.c.l.b16 %v295
        %v614 = vunpack.c.l.b16 %v296
        %v615 = vunpack.c.l.b16 %v298
        %v616 = vunpack.c.l.b16 %v299
        %v617 = vunpack.c.l.b16 %v301
        %v618 = vunpack.c.l.b16 %v302
        %v619 = vunpack.c.l.b16 %v304
        %v620 = vunpack.c.l.b16 %v305
        %v621 = vunpack.c.l.b16 %v307
        %v622 = vunpack.c.l.b16 %v308
        %v623 = vunpack.c.l.b16 %v310
        %v624 = vunpack.c.l.b16 %v311
        %v625 = vunpack.c.l.b16 %v313
        %v626 = vunpack.c.l.b16 %v314
        %v627 = vunpack.c.l.b16 %v316
        %v628 = vunpack.c.l.b16 %v317
        %v629 = vunpack.c.l.b16 %v319
        %v630 = vunpack.c.l.b16 %v320
        %v631 = vunpack.c.l.b16 %v322
        %v632 = vunpack.c.l.b16 %v323
        %v633 = vunpack.c.l.b16 %v325
        %v634 = vunpack.c.l.b16 %v326
        %v635 = vunpack.c.l.b16 %v328
        %v636 = vunpack.c.l.b16 %v329
        %v637 = vunpack.c.l.b16 %v337
        %v638 = vunpack.c.l.b16 %v338
        %v639 = vunpack.c.l.b16 %v340
        %v640 = vunpack.c.l.b16 %v341
        %v641 = vunpack.c.l.b16 %v343
        %v642 = vunpack.c.l.b16 %v344
        %v643 = vunpack.c.l.b16 %v346
        %v644 = vunpack.c.l.b16 %v347
        %v645 = vunpack.c.l.b16 %v349
        %v646 = vunpack.c.l.b16 %v350
        %v647 = vunpack.c.l.b16 %v352
        %v648 = vunpack.c.l.b16 %v353
        %v649 = vunpack.c.l.b16 %v355
        %v650 = vunpack.c.l.b16 %v356
        %v651 = vunpack.c.l.b16 %v358
        %v652 = vunpack.c.l.b16 %v359
        %v653 = vunpack.c.l.b16 %v361
        %v654 = vunpack.c.l.b16 %v362
        %v655 = vunpack.c.l.b16 %v364
        %v656 = vunpack.c.l.b16 %v365
        %v657 = vunpack.c.l.b16 %v367
        %v658 = vunpack.c.l.b16 %v368
        %v659 = vunpack.c.l.b16 %v370
        %v660 = vunpack.c.l.b16 %v371
        %v661 = vunpack.c.l.b16 %v373
        %v662 = vunpack.c.l.b16 %v374
        %v663 = vunpack.c.l.b16 %v376
        %v664 = vunpack.c.l.b16 %v377
        %v665 = vunpack.c.l.b16 %v379
        %v666 = vunpack.c.l.b16 %v380
        %v667 = vunpack.c.l.b16 %v382
        %v668 = vunpack.c.l.b16 %v383
        %v669 = vunpack.c.l.b16 %v391
        %v670 = vunpack.c.l.b16 %v392
        %v671 = vunpack.c.l.b16 %v394
        %v672 = vunpack.c.l.b16 %v395
        %v673 = vunpack.c.l.b16 %v397
        %v674 = vunpack.c.l.b16 %v398
        %v675 = vunpack.c.l.b16 %v400
        %v676 = vunpack.c.l.b16 %v401
        %v677 = vunpack.c.l.b16 %v403
        %v678 = vunpack.c.l.b16 %v404
        %v679 = vunpack.c.l.b16 %v406
        %v680 = vunpack.c.l.b16 %v407
        %v681 = vunpack.c.l.b16 %v409
        %v682 = vunpack.c.l.b16 %v410
        %v683 = vunpack.c.l.b16 %v412
        %v684 = vunpack.c.l.b16 %v413
        %v685 = vunpack.c.l.b16 %v415
        %v686 = vunpack.c.l.b16 %v416
        %v687 = vunpack.c.l.b16 %v418
        %v688 = vunpack.c.l.b16 %v419
        %v689 = vunpack.c.l.b16 %v421
        %v690 = vunpack.c.l.b16 %v422
        %v691 = vunpack.c.l.b16 %v424
        %v692 = vunpack.c.l.b16 %v425
        %v693 = vunpack.c.l.b16 %v427
        %v694 = vunpack.c.l.b16 %v428
        %v695 = vunpack.c.l.b16 %v430
        %v696 = vunpack.c.l.b16 %v431
        %v697 = vunpack.c.l.b16 %v433
        %v698 = vunpack.c.l.b16 %v434
        %v699 = vunpack.c.l.b16 %v436
        %v700 = vunpack.c.l.b16 %v437
        %v701 = vpack.c.b16 %v574, %v573
        %v702 = vpack.c.b16 %v576, %v575
        %v703 = vpack.c.b16 %v578, %v577
        %v704 = vpack.c.b16 %v580, %v579
        %v705 = vpack.c.b16 %v582, %v581
        %v706 = vpack.c.b16 %v584, %v583
        %v707 = vpack.c.b16 %v586, %v585
        %v708 = vpack.c.b16 %v588, %v587
        %v709 = vpack.c.b16 %v590, %v589
        %v710 = vpack.c.b16 %v592, %v591
        %v711 = vpack.c.b16 %v594, %v593
        %v712 = vpack.c.b16 %v596, %v595
        %v713 = vpack.c.b16 %v598, %v597
        %v714 = vpack.c.b16 %v600, %v599
        %v715 = vpack.c.b16 %v602, %v601
        %v716 = vpack.c.b16 %v604, %v603
        %v717 = vpack.c.b16 %v606, %v605
        %v718 = vpack.c.b16 %v608, %v607
        %v719 = vpack.c.b16 %v610, %v609
        %v720 = vpack.c.b16 %v612, %v611
        %v721 = vpack.c.b16 %v614, %v613
        %v722 = vpack.c.b16 %v616, %v615
        %v723 = vpack.c.b16 %v618, %v617
        %v724 = vpack.c.b16 %v620, %v619
        %v725 = vpack.c.b16 %v622, %v621
        %v726 = vpack.c.b16 %v624, %v623
        %v727 = vpack.c.b16 %v626, %v625
        %v728 = vpack.c.b16 %v628, %v627
        %v729 = vpack.c.b16 %v630, %v629
        %v730 = vpack.c.b16 %v632, %v631
        %v731 = vpack.c.b16 %v634, %v633
        %v732 = vpack.c.b16 %v636, %v635
        %v733 = vpack.c.b16 %v638, %v637
        %v734 = vpack.c.b16 %v640, %v639
        %v735 = vpack.c.b16 %v642, %v641
        %v736 = vpack.c.b16 %v644, %v643
        %v737 = vpack.c.b16 %v646, %v645
        %v738 = vpack.c.b16 %v648, %v647
        %v739 = vpack.c.b16 %v650, %v649
        %v740 = vpack.c.b16 %v652, %v651
        %v741 = vpack.c.b16 %v654, %v653
        %v742 = vpack.c.b16 %v656, %v655
        %v743 = vpack.c.b16 %v658, %v657
        %v744 = vpack.c.b16 %v660, %v659
        %v745 = vpack.c.b16 %v662, %v661
        %v746 = vpack.c.b16 %v664, %v663
        %v747 = vpack.c.b16 %v666, %v665
        %v748 = vpack.c.b16 %v668, %v667
        %v749 = vpack.c.b16 %v670, %v669
        %v750 = vpack.c.b16 %v672, %v671
        %v751 = vpack.c.b16 %v674, %v673
        %v752 = vpack.c.b16 %v676, %v675
        %v753 = vpack.c.b16 %v678, %v677
        %v754 = vpack.c.b16 %v680, %v679
        %v755 = vpack.c.b16 %v682, %v681
        %v756 = vpack.c.b16 %v684, %v683
        %v757 = vpack.c.b16 %v686, %v685
        %v758 = vpack.c.b16 %v688, %v687
        %v759 = vpack.c.b16 %v690, %v689
        %v760 = vpack.c.b16 %v692, %v691
        %v761 = vpack.c.b16 %v694, %v693
        %v762 = vpack.c.b16 %v696, %v695
        %v763 = vpack.c.b16 %v698, %v697
        %v764 = vpack.c.b16 %v700, %v699
        %v829 = vunpack.c.l.b16 %v231
        %v830 = vunpack.c.l.b16 %v234
        %v831 = vunpack.c.l.b16 %v237
        %v832 = vunpack.c.l.b16 %v240
        %v833 = vunpack.c.l.b16 %v243
        %v834 = vunpack.c.l.b16 %v246
        %v835 = vunpack.c.l.b16 %v249
        %v836 = vunpack.c.l.b16 %v252
        %v837 = vunpack.c.l.b16 %v255
        %v838 = vunpack.c.l.b16 %v258
        %v839 = vunpack.c.l.b16 %v261
        %v840 = vunpack.c.l.b16 %v264
        %v841 = vunpack.c.l.b16 %v267
        %v842 = vunpack.c.l.b16 %v270
        %v843 = vunpack.c.l.b16 %v273
        %v844 = vunpack.c.l.b16 %v276
        %v845 = vunpack.c.l.b16 %v285
        %v846 = vunpack.c.l.b16 %v288
        %v847 = vunpack.c.l.b16 %v291
        %v848 = vunpack.c.l.b16 %v294
        %v849 = vunpack.c.l.b16 %v297
        %v850 = vunpack.c.l.b16 %v300
        %v851 = vunpack.c.l.b16 %v303
        %v852 = vunpack.c.l.b16 %v306
        %v853 = vunpack.c.l.b16 %v309
        %v854 = vunpack.c.l.b16 %v312
        %v855 = vunpack.c.l.b16 %v315
        %v856 = vunpack.c.l.b16 %v318
        %v857 = vunpack.c.l.b16 %v321
        %v858 = vunpack.c.l.b16 %v324
        %v859 = vunpack.c.l.b16 %v327
        %v860 = vunpack.c.l.b16 %v330
        %v861 = vunpack.c.l.b16 %v339
        %v862 = vunpack.c.l.b16 %v342
        %v863 = vunpack.c.l.b16 %v345
        %v864 = vunpack.c.l.b16 %v348
        %v865 = vunpack.c.l.b16 %v351
        %v866 = vunpack.c.l.b16 %v354
        %v867 = vunpack.c.l.b16 %v357
        %v868 = vunpack.c.l.b16 %v360
        %v869 = vunpack.c.l.b16 %v363
        %v870 = vunpack.c.l.b16 %v366
        %v871 = vunpack.c.l.b16 %v369
        %v872 = vunpack.c.l.b16 %v372
        %v873 = vunpack.c.l.b16 %v375
        %v874 = vunpack.c.l.b16 %v378
        %v875 = vunpack.c.l.b16 %v381
        %v876 = vunpack.c.l.b16 %v384
        %v877 = vunpack.c.l.b16 %v393
        %v878 = vunpack.c.l.b16 %v396
        %v879 = vunpack.c.l.b16 %v399
        %v880 = vunpack.c.l.b16 %v402
        %v881 = vunpack.c.l.b16 %v405
        %v882 = vunpack.c.l.b16 %v408
        %v883 = vunpack.c.l.b16 %v411
        %v884 = vunpack.c.l.b16 %v414
        %v885 = vunpack.c.l.b16 %v417
        %v886 = vunpack.c.l.b16 %v420
        %v887 = vunpack.c.l.b16 %v423
        %v888 = vunpack.c.l.b16 %v426
        %v889 = vunpack.c.l.b16 %v429
        %v890 = vunpack.c.l.b16 %v432
        %v891 = vunpack.c.l.b16 %v435
        %v892 = vunpack.c.l.b16 %v438
        %v893 = vpack.c.b16 %v829, %v829
        %v894 = vpack.c.b16 %v830, %v830
        %v895 = vpack.c.b16 %v831, %v831
        %v896 = vpack.c.b16 %v832, %v832
        %v897 = vpack.c.b16 %v833, %v833
        %v898 = vpack.c.b16 %v834, %v834
        %v899 = vpack.c.b16 %v835, %v835
        %v900 = vpack.c.b16 %v836, %v836
        %v901 = vpack.c.b16 %v837, %v837
        %v902 = vpack.c.b16 %v838, %v838
        %v903 = vpack.c.b16 %v839, %v839
        %v904 = vpack.c.b16 %v840, %v840
        %v905 = vpack.c.b16 %v841, %v841
        %v906 = vpack.c.b16 %v842, %v842
        %v907 = vpack.c.b16 %v843, %v843
        %v908 = vpack.c.b16 %v844, %v844
        %v909 = vpack.c.b16 %v845, %v845
        %v910 = vpack.c.b16 %v846, %v846
        %v911 = vpack.c.b16 %v847, %v847
        %v912 = vpack.c.b16 %v848, %v848
        %v913 = vpack.c.b16 %v849, %v849
        %v914 = vpack.c.b16 %v850, %v850
        %v915 = vpack.c.b16 %v851, %v851
        %v916 = vpack.c.b16 %v852, %v852
        %v917 = vpack.c.b16 %v853, %v853
        %v918 = vpack.c.b16 %v854, %v854
        %v919 = vpack.c.b16 %v855, %v855
        %v920 = vpack.c.b16 %v856, %v856
        %v921 = vpack.c.b16 %v857, %v857
        %v922 = vpack.c.b16 %v858, %v858
        %v923 = vpack.c.b16 %v859, %v859
        %v924 = vpack.c.b16 %v860, %v860
        %v925 = vpack.c.b16 %v861, %v861
        %v926 = vpack.c.b16 %v862, %v862
        %v927 = vpack.c.b16 %v863, %v863
        %v928 = vpack.c.b16 %v864, %v864
        %v929 = vpack.c.b16 %v865, %v865
        %v930 = vpack.c.b16 %v866, %v866
        %v931 = vpack.c.b16 %v867, %v867
        %v932 = vpack.c.b16 %v868, %v868
        %v933 = vpack.c.b16 %v869, %v869
        %v934 = vpack.c.b16 %v870, %v870
        %v935 = vpack.c.b16 %v871, %v871
        %v936 = vpack.c.b16 %v872, %v872
        %v937 = vpack.c.b16 %v873, %v873
        %v938 = vpack.c.b16 %v874, %v874
        %v939 = vpack.c.b16 %v875, %v875
        %v940 = vpack.c.b16 %v876, %v876
        %v941 = vpack.c.b16 %v877, %v877
        %v942 = vpack.c.b16 %v878, %v878
        %v943 = vpack.c.b16 %v879, %v879
        %v944 = vpack.c.b16 %v880, %v880
        %v945 = vpack.c.b16 %v881, %v881
        %v946 = vpack.c.b16 %v882, %v882
        %v947 = vpack.c.b16 %v883, %v883
        %v948 = vpack.c.b16 %v884, %v884
        %v949 = vpack.c.b16 %v885, %v885
        %v950 = vpack.c.b16 %v886, %v886
        %v951 = vpack.c.b16 %v887, %v887
        %v952 = vpack.c.b16 %v888, %v888
        %v953 = vpack.c.b16 %v889, %v889
        %v954 = vpack.c.b16 %v890, %v890
        %v955 = vpack.c.b16 %v891, %v891
        %v956 = vpack.c.b16 %v892, %v892
        %vm957 = vsmask.f32 7424
        %v959 = vshrl.u32 %v701, 16
        %v961 = vshll.u32 %v701, 16
        %v963 = vrot.slane %v961, 1
        %v964 = vor.u32 %v959, %v963
        %v966 = vshll.u32 %v893, 16
        %v968 = vrot.slane %v966, 1
        %v969 = vsel %vm957, %v964, %v968
        %v971 = vshrl.u32 %v702, 16
        %v973 = vshll.u32 %v702, 16
        %v975 = vrot.slane %v973, 1
        %v976 = vor.u32 %v971, %v975
        %v978 = vshll.u32 %v894, 16
        %v980 = vrot.slane %v978, 1
        %v981 = vsel %vm957, %v976, %v980
        %v983 = vshrl.u32 %v703, 16
        %v985 = vshll.u32 %v703, 16
        %v987 = vrot.slane %v985, 1
        %v988 = vor.u32 %v983, %v987
        %v990 = vshll.u32 %v895, 16
        %v992 = vrot.slane %v990, 1
        %v993 = vsel %vm957, %v988, %v992
        %v995 = vshrl.u32 %v704, 16
        %v997 = vshll.u32 %v704, 16
        %v999 = vrot.slane %v997, 1
        %v1000 = vor.u32 %v995, %v999
        %v1002 = vshll.u32 %v896, 16
        %v1004 = vrot.slane %v1002, 1
        %v1005 = vsel %vm957, %v1000, %v1004
        %v1007 = vshrl.u32 %v705, 16
        %v1009 = vshll.u32 %v705, 16
        %v1011 = vrot.slane %v1009, 1
        %v1012 = vor.u32 %v1007, %v1011
        %v1014 = vshll.u32 %v897, 16
        %v1016 = vrot.slane %v1014, 1
        %v1017 = vsel %vm957, %v1012, %v1016
        %v1019 = vshrl.u32 %v706, 16
        %v1021 = vshll.u32 %v706, 16
        %v1023 = vrot.slane %v1021, 1
        %v1024 = vor.u32 %v1019, %v1023
        %v1026 = vshll.u32 %v898, 16
        %v1028 = vrot.slane %v1026, 1
        %v1029 = vsel %vm957, %v1024, %v1028
        %v1031 = vshrl.u32 %v707, 16
        %v1033 = vshll.u32 %v707, 16
        %v1035 = vrot.slane %v1033, 1
        %v1036 = vor.u32 %v1031, %v1035
        %v1038 = vshll.u32 %v899, 16
        %v1040 = vrot.slane %v1038, 1
        %v1041 = vsel %vm957, %v1036, %v1040
        %v1043 = vshrl.u32 %v708, 16
        %v1045 = vshll.u32 %v708, 16
        %v1047 = vrot.slane %v1045, 1
        %v1048 = vor.u32 %v1043, %v1047
        %v1050 = vshll.u32 %v900, 16
        %v1052 = vrot.slane %v1050, 1
        %v1053 = vsel %vm957, %v1048, %v1052
        %v1055 = vshrl.u32 %v709, 16
        %v1057 = vshll.u32 %v709, 16
        %v1059 = vrot.slane %v1057, 1
        %v1060 = vor.u32 %v1055, %v1059
        %v1062 = vshll.u32 %v901, 16
        %v1064 = vrot.slane %v1062, 1
        %v1065 = vsel %vm957, %v1060, %v1064
        %v1067 = vshrl.u32 %v710, 16
        %v1069 = vshll.u32 %v710, 16
        %v1071 = vrot.slane %v1069, 1
        %v1072 = vor.u32 %v1067, %v1071
        %v1074 = vshll.u32 %v902, 16
        %v1076 = vrot.slane %v1074, 1
        %v1077 = vsel %vm957, %v1072, %v1076
        %v1079 = vshrl.u32 %v711, 16
        %v1081 = vshll.u32 %v711, 16
        %v1083 = vrot.slane %v1081, 1
        %v1084 = vor.u32 %v1079, %v1083
        %v1086 = vshll.u32 %v903, 16
        %v1088 = vrot.slane %v1086, 1
        %v1089 = vsel %vm957, %v1084, %v1088
        %v1091 = vshrl.u32 %v712, 16
        %v1093 = vshll.u32 %v712, 16
        %v1095 = vrot.slane %v1093, 1
        %v1096 = vor.u32 %v1091, %v1095
        %v1098 = vshll.u32 %v904, 16
        %v1100 = vrot.slane %v1098, 1
        %v1101 = vsel %vm957, %v1096, %v1100
        %v1103 = vshrl.u32 %v713, 16
        %v1105 = vshll.u32 %v713, 16
        %v1107 = vrot.slane %v1105, 1
        %v1108 = vor.u32 %v1103, %v1107
        %v1110 = vshll.u32 %v905, 16
        %v1112 = vrot.slane %v1110, 1
        %v1113 = vsel %vm957, %v1108, %v1112
        %v1115 = vshrl.u32 %v714, 16
        %v1117 = vshll.u32 %v714, 16
        %v1119 = vrot.slane %v1117, 1
        %v1120 = vor.u32 %v1115, %v1119
        %v1122 = vshll.u32 %v906, 16
        %v1124 = vrot.slane %v1122, 1
        %v1125 = vsel %vm957, %v1120, %v1124
        %v1127 = vshrl.u32 %v715, 16
        %v1129 = vshll.u32 %v715, 16
        %v1131 = vrot.slane %v1129, 1
        %v1132 = vor.u32 %v1127, %v1131
        %v1134 = vshll.u32 %v907, 16
        %v1136 = vrot.slane %v1134, 1
        %v1137 = vsel %vm957, %v1132, %v1136
        %v1139 = vshrl.u32 %v716, 16
        %v1141 = vshll.u32 %v716, 16
        %v1143 = vrot.slane %v1141, 1
        %v1144 = vor.u32 %v1139, %v1143
        %v1146 = vshll.u32 %v908, 16
        %v1148 = vrot.slane %v1146, 1
        %v1149 = vsel %vm957, %v1144, %v1148
        %v1151 = vshrl.u32 %v717, 16
        %v1153 = vshll.u32 %v717, 16
        %v1155 = vrot.slane %v1153, 1
        %v1156 = vor.u32 %v1151, %v1155
        %v1158 = vshll.u32 %v909, 16
        %v1160 = vrot.slane %v1158, 1
        %v1161 = vsel %vm957, %v1156, %v1160
        %v1163 = vshrl.u32 %v718, 16
        %v1165 = vshll.u32 %v718, 16
        %v1167 = vrot.slane %v1165, 1
        %v1168 = vor.u32 %v1163, %v1167
        %v1170 = vshll.u32 %v910, 16
        %v1172 = vrot.slane %v1170, 1
        %v1173 = vsel %vm957, %v1168, %v1172
        %v1175 = vshrl.u32 %v719, 16
        %v1177 = vshll.u32 %v719, 16
        %v1179 = vrot.slane %v1177, 1
        %v1180 = vor.u32 %v1175, %v1179
        %v1182 = vshll.u32 %v911, 16
        %v1184 = vrot.slane %v1182, 1
        %v1185 = vsel %vm957, %v1180, %v1184
        %v1187 = vshrl.u32 %v720, 16
        %v1189 = vshll.u32 %v720, 16
        %v1191 = vrot.slane %v1189, 1
        %v1192 = vor.u32 %v1187, %v1191
        %v1194 = vshll.u32 %v912, 16
        %v1196 = vrot.slane %v1194, 1
        %v1197 = vsel %vm957, %v1192, %v1196
        %v1199 = vshrl.u32 %v721, 16
        %v1201 = vshll.u32 %v721, 16
        %v1203 = vrot.slane %v1201, 1
        %v1204 = vor.u32 %v1199, %v1203
        %v1206 = vshll.u32 %v913, 16
        %v1208 = vrot.slane %v1206, 1
        %v1209 = vsel %vm957, %v1204, %v1208
        %v1211 = vshrl.u32 %v722, 16
        %v1213 = vshll.u32 %v722, 16
        %v1215 = vrot.slane %v1213, 1
        %v1216 = vor.u32 %v1211, %v1215
        %v1218 = vshll.u32 %v914, 16
        %v1220 = vrot.slane %v1218, 1
        %v1221 = vsel %vm957, %v1216, %v1220
        %v1223 = vshrl.u32 %v723, 16
        %v1225 = vshll.u32 %v723, 16
        %v1227 = vrot.slane %v1225, 1
        %v1228 = vor.u32 %v1223, %v1227
        %v1230 = vshll.u32 %v915, 16
        %v1232 = vrot.slane %v1230, 1
        %v1233 = vsel %vm957, %v1228, %v1232
        %v1235 = vshrl.u32 %v724, 16
        %v1237 = vshll.u32 %v724, 16
        %v1239 = vrot.slane %v1237, 1
        %v1240 = vor.u32 %v1235, %v1239
        %v1242 = vshll.u32 %v916, 16
        %v1244 = vrot.slane %v1242, 1
        %v1245 = vsel %vm957, %v1240, %v1244
        %v1247 = vshrl.u32 %v725, 16
        %v1249 = vshll.u32 %v725, 16
        %v1251 = vrot.slane %v1249, 1
        %v1252 = vor.u32 %v1247, %v1251
        %v1254 = vshll.u32 %v917, 16
        %v1256 = vrot.slane %v1254, 1
        %v1257 = vsel %vm957, %v1252, %v1256
        %v1259 = vshrl.u32 %v726, 16
        %v1261 = vshll.u32 %v726, 16
        %v1263 = vrot.slane %v1261, 1
        %v1264 = vor.u32 %v1259, %v1263
        %v1266 = vshll.u32 %v918, 16
        %v1268 = vrot.slane %v1266, 1
        %v1269 = vsel %vm957, %v1264, %v1268
        %v1271 = vshrl.u32 %v727, 16
        %v1273 = vshll.u32 %v727, 16
        %v1275 = vrot.slane %v1273, 1
        %v1276 = vor.u32 %v1271, %v1275
        %v1278 = vshll.u32 %v919, 16
        %v1280 = vrot.slane %v1278, 1
        %v1281 = vsel %vm957, %v1276, %v1280
        %v1283 = vshrl.u32 %v728, 16
        %v1285 = vshll.u32 %v728, 16
        %v1287 = vrot.slane %v1285, 1
        %v1288 = vor.u32 %v1283, %v1287
        %v1290 = vshll.u32 %v920, 16
        %v1292 = vrot.slane %v1290, 1
        %v1293 = vsel %vm957, %v1288, %v1292
        %v1295 = vshrl.u32 %v729, 16
        %v1297 = vshll.u32 %v729, 16
        %v1299 = vrot.slane %v1297, 1
        %v1300 = vor.u32 %v1295, %v1299
        %v1302 = vshll.u32 %v921, 16
        %v1304 = vrot.slane %v1302, 1
        %v1305 = vsel %vm957, %v1300, %v1304
        %v1307 = vshrl.u32 %v730, 16
        %v1309 = vshll.u32 %v730, 16
        %v1311 = vrot.slane %v1309, 1
        %v1312 = vor.u32 %v1307, %v1311
        %v1314 = vshll.u32 %v922, 16
        %v1316 = vrot.slane %v1314, 1
        %v1317 = vsel %vm957, %v1312, %v1316
        %v1319 = vshrl.u32 %v731, 16
        %v1321 = vshll.u32 %v731, 16
        %v1323 = vrot.slane %v1321, 1
        %v1324 = vor.u32 %v1319, %v1323
        %v1326 = vshll.u32 %v923, 16
        %v1328 = vrot.slane %v1326, 1
        %v1329 = vsel %vm957, %v1324, %v1328
        %v1331 = vshrl.u32 %v732, 16
        %v1333 = vshll.u32 %v732, 16
        %v1335 = vrot.slane %v1333, 1
        %v1336 = vor.u32 %v1331, %v1335
        %v1338 = vshll.u32 %v924, 16
        %v1340 = vrot.slane %v1338, 1
        %v1341 = vsel %vm957, %v1336, %v1340
        %v1343 = vshrl.u32 %v733, 16
        %v1345 = vshll.u32 %v733, 16
        %v1347 = vrot.slane %v1345, 1
        %v1348 = vor.u32 %v1343, %v1347
        %v1350 = vshll.u32 %v925, 16
        %v1352 = vrot.slane %v1350, 1
        %v1353 = vsel %vm957, %v1348, %v1352
        %v1355 = vshrl.u32 %v734, 16
        %v1357 = vshll.u32 %v734, 16
        %v1359 = vrot.slane %v1357, 1
        %v1360 = vor.u32 %v1355, %v1359
        %v1362 = vshll.u32 %v926, 16
        %v1364 = vrot.slane %v1362, 1
        %v1365 = vsel %vm957, %v1360, %v1364
        %v1367 = vshrl.u32 %v735, 16
        %v1369 = vshll.u32 %v735, 16
        %v1371 = vrot.slane %v1369, 1
        %v1372 = vor.u32 %v1367, %v1371
        %v1374 = vshll.u32 %v927, 16
        %v1376 = vrot.slane %v1374, 1
        %v1377 = vsel %vm957, %v1372, %v1376
        %v1379 = vshrl.u32 %v736, 16
        %v1381 = vshll.u32 %v736, 16
        %v1383 = vrot.slane %v1381, 1
        %v1384 = vor.u32 %v1379, %v1383
        %v1386 = vshll.u32 %v928, 16
        %v1388 = vrot.slane %v1386, 1
        %v1389 = vsel %vm957, %v1384, %v1388
        %v1391 = vshrl.u32 %v737, 16
        %v1393 = vshll.u32 %v737, 16
        %v1395 = vrot.slane %v1393, 1
        %v1396 = vor.u32 %v1391, %v1395
        %v1398 = vshll.u32 %v929, 16
        %v1400 = vrot.slane %v1398, 1
        %v1401 = vsel %vm957, %v1396, %v1400
        %v1403 = vshrl.u32 %v738, 16
        %v1405 = vshll.u32 %v738, 16
        %v1407 = vrot.slane %v1405, 1
        %v1408 = vor.u32 %v1403, %v1407
        %v1410 = vshll.u32 %v930, 16
        %v1412 = vrot.slane %v1410, 1
        %v1413 = vsel %vm957, %v1408, %v1412
        %v1415 = vshrl.u32 %v739, 16
        %v1417 = vshll.u32 %v739, 16
        %v1419 = vrot.slane %v1417, 1
        %v1420 = vor.u32 %v1415, %v1419
        %v1422 = vshll.u32 %v931, 16
        %v1424 = vrot.slane %v1422, 1
        %v1425 = vsel %vm957, %v1420, %v1424
        %v1427 = vshrl.u32 %v740, 16
        %v1429 = vshll.u32 %v740, 16
        %v1431 = vrot.slane %v1429, 1
        %v1432 = vor.u32 %v1427, %v1431
        %v1434 = vshll.u32 %v932, 16
        %v1436 = vrot.slane %v1434, 1
        %v1437 = vsel %vm957, %v1432, %v1436
        %v1439 = vshrl.u32 %v741, 16
        %v1441 = vshll.u32 %v741, 16
        %v1443 = vrot.slane %v1441, 1
        %v1444 = vor.u32 %v1439, %v1443
        %v1446 = vshll.u32 %v933, 16
        %v1448 = vrot.slane %v1446, 1
        %v1449 = vsel %vm957, %v1444, %v1448
        %v1451 = vshrl.u32 %v742, 16
        %v1453 = vshll.u32 %v742, 16
        %v1455 = vrot.slane %v1453, 1
        %v1456 = vor.u32 %v1451, %v1455
        %v1458 = vshll.u32 %v934, 16
        %v1460 = vrot.slane %v1458, 1
        %v1461 = vsel %vm957, %v1456, %v1460
        %v1463 = vshrl.u32 %v743, 16
        %v1465 = vshll.u32 %v743, 16
        %v1467 = vrot.slane %v1465, 1
        %v1468 = vor.u32 %v1463, %v1467
        %v1470 = vshll.u32 %v935, 16
        %v1472 = vrot.slane %v1470, 1
        %v1473 = vsel %vm957, %v1468, %v1472
        %v1475 = vshrl.u32 %v744, 16
        %v1477 = vshll.u32 %v744, 16
        %v1479 = vrot.slane %v1477, 1
        %v1480 = vor.u32 %v1475, %v1479
        %v1482 = vshll.u32 %v936, 16
        %v1484 = vrot.slane %v1482, 1
        %v1485 = vsel %vm957, %v1480, %v1484
        %v1487 = vshrl.u32 %v745, 16
        %v1489 = vshll.u32 %v745, 16
        %v1491 = vrot.slane %v1489, 1
        %v1492 = vor.u32 %v1487, %v1491
        %v1494 = vshll.u32 %v937, 16
        %v1496 = vrot.slane %v1494, 1
        %v1497 = vsel %vm957, %v1492, %v1496
        %v1499 = vshrl.u32 %v746, 16
        %v1501 = vshll.u32 %v746, 16
        %v1503 = vrot.slane %v1501, 1
        %v1504 = vor.u32 %v1499, %v1503
        %v1506 = vshll.u32 %v938, 16
        %v1508 = vrot.slane %v1506, 1
        %v1509 = vsel %vm957, %v1504, %v1508
        %v1511 = vshrl.u32 %v747, 16
        %v1513 = vshll.u32 %v747, 16
        %v1515 = vrot.slane %v1513, 1
        %v1516 = vor.u32 %v1511, %v1515
        %v1518 = vshll.u32 %v939, 16
        %v1520 = vrot.slane %v1518, 1
        %v1521 = vsel %vm957, %v1516, %v1520
        %v1523 = vshrl.u32 %v748, 16
        %v1525 = vshll.u32 %v748, 16
        %v1527 = vrot.slane %v1525, 1
        %v1528 = vor.u32 %v1523, %v1527
        %v1530 = vshll.u32 %v940, 16
        %v1532 = vrot.slane %v1530, 1
        %v1533 = vsel %vm957, %v1528, %v1532
        %v1535 = vshrl.u32 %v749, 16
        %v1537 = vshll.u32 %v749, 16
        %v1539 = vrot.slane %v1537, 1
        %v1540 = vor.u32 %v1535, %v1539
        %v1542 = vshll.u32 %v941, 16
        %v1544 = vrot.slane %v1542, 1
        %v1545 = vsel %vm957, %v1540, %v1544
        %v1547 = vshrl.u32 %v750, 16
        %v1549 = vshll.u32 %v750, 16
        %v1551 = vrot.slane %v1549, 1
        %v1552 = vor.u32 %v1547, %v1551
        %v1554 = vshll.u32 %v942, 16
        %v1556 = vrot.slane %v1554, 1
        %v1557 = vsel %vm957, %v1552, %v1556
        %v1559 = vshrl.u32 %v751, 16
        %v1561 = vshll.u32 %v751, 16
        %v1563 = vrot.slane %v1561, 1
        %v1564 = vor.u32 %v1559, %v1563
        %v1566 = vshll.u32 %v943, 16
        %v1568 = vrot.slane %v1566, 1
        %v1569 = vsel %vm957, %v1564, %v1568
        %v1571 = vshrl.u32 %v752, 16
        %v1573 = vshll.u32 %v752, 16
        %v1575 = vrot.slane %v1573, 1
        %v1576 = vor.u32 %v1571, %v1575
        %v1578 = vshll.u32 %v944, 16
        %v1580 = vrot.slane %v1578, 1
        %v1581 = vsel %vm957, %v1576, %v1580
        %v1583 = vshrl.u32 %v753, 16
        %v1585 = vshll.u32 %v753, 16
        %v1587 = vrot.slane %v1585, 1
        %v1588 = vor.u32 %v1583, %v1587
        %v1590 = vshll.u32 %v945, 16
        %v1592 = vrot.slane %v1590, 1
        %v1593 = vsel %vm957, %v1588, %v1592
        %v1595 = vshrl.u32 %v754, 16
        %v1597 = vshll.u32 %v754, 16
        %v1599 = vrot.slane %v1597, 1
        %v1600 = vor.u32 %v1595, %v1599
        %v1602 = vshll.u32 %v946, 16
        %v1604 = vrot.slane %v1602, 1
        %v1605 = vsel %vm957, %v1600, %v1604
        %v1607 = vshrl.u32 %v755, 16
        %v1609 = vshll.u32 %v755, 16
        %v1611 = vrot.slane %v1609, 1
        %v1612 = vor.u32 %v1607, %v1611
        %v1614 = vshll.u32 %v947, 16
        %v1616 = vrot.slane %v1614, 1
        %v1617 = vsel %vm957, %v1612, %v1616
        %v1619 = vshrl.u32 %v756, 16
        %v1621 = vshll.u32 %v756, 16
        %v1623 = vrot.slane %v1621, 1
        %v1624 = vor.u32 %v1619, %v1623
        %v1626 = vshll.u32 %v948, 16
        %v1628 = vrot.slane %v1626, 1
        %v1629 = vsel %vm957, %v1624, %v1628
        %v1631 = vshrl.u32 %v757, 16
        %v1633 = vshll.u32 %v757, 16
        %v1635 = vrot.slane %v1633, 1
        %v1636 = vor.u32 %v1631, %v1635
        %v1638 = vshll.u32 %v949, 16
        %v1640 = vrot.slane %v1638, 1
        %v1641 = vsel %vm957, %v1636, %v1640
        %v1643 = vshrl.u32 %v758, 16
        %v1645 = vshll.u32 %v758, 16
        %v1647 = vrot.slane %v1645, 1
        %v1648 = vor.u32 %v1643, %v1647
        %v1650 = vshll.u32 %v950, 16
        %v1652 = vrot.slane %v1650, 1
        %v1653 = vsel %vm957, %v1648, %v1652
        %v1655 = vshrl.u32 %v759, 16
        %v1657 = vshll.u32 %v759, 16
        %v1659 = vrot.slane %v1657, 1
        %v1660 = vor.u32 %v1655, %v1659
        %v1662 = vshll.u32 %v951, 16
        %v1664 = vrot.slane %v1662, 1
        %v1665 = vsel %vm957, %v1660, %v1664
        %v1667 = vshrl.u32 %v760, 16
        %v1669 = vshll.u32 %v760, 16
        %v1671 = vrot.slane %v1669, 1
        %v1672 = vor.u32 %v1667, %v1671
        %v1674 = vshll.u32 %v952, 16
        %v1676 = vrot.slane %v1674, 1
        %v1677 = vsel %vm957, %v1672, %v1676
        %v1679 = vshrl.u32 %v761, 16
        %v1681 = vshll.u32 %v761, 16
        %v1683 = vrot.slane %v1681, 1
        %v1684 = vor.u32 %v1679, %v1683
        %v1686 = vshll.u32 %v953, 16
        %v1688 = vrot.slane %v1686, 1
        %v1689 = vsel %vm957, %v1684, %v1688
        %v1691 = vshrl.u32 %v762, 16
        %v1693 = vshll.u32 %v762, 16
        %v1695 = vrot.slane %v1693, 1
        %v1696 = vor.u32 %v1691, %v1695
        %v1698 = vshll.u32 %v954, 16
        %v1700 = vrot.slane %v1698, 1
        %v1701 = vsel %vm957, %v1696, %v1700
        %v1703 = vshrl.u32 %v763, 16
        %v1705 = vshll.u32 %v763, 16
        %v1707 = vrot.slane %v1705, 1
        %v1708 = vor.u32 %v1703, %v1707
        %v1710 = vshll.u32 %v955, 16
        %v1712 = vrot.slane %v1710, 1
        %v1713 = vsel %vm957, %v1708, %v1712
        %v1715 = vshrl.u32 %v764, 16
        %v1717 = vshll.u32 %v764, 16
        %v1719 = vrot.slane %v1717, 1
        %v1720 = vor.u32 %v1715, %v1719
        %v1722 = vshll.u32 %v956, 16
        %v1724 = vrot.slane %v1722, 1
        %v1725 = vsel %vm957, %v1720, %v1724
        %1726 = vrot.lane.b32.xlu0 %v969, 4
        %v1727 = vpop.permute.xlu0 %1726
        %1728 = vrot.lane.b32.xlu0 %v981, 4
        %v1729 = vpop.permute.xlu0 %1728
        %1730 = vrot.lane.b32.xlu0 %v993, 4
        %v1731 = vpop.permute.xlu0 %1730
        %1732 = vrot.lane.b32.xlu0 %v1005, 4
        %v1733 = vpop.permute.xlu0 %1732
        %1734 = vrot.lane.b32.xlu0 %v1017, 4
        %v1735 = vpop.permute.xlu0 %1734
        %1736 = vrot.lane.b32.xlu0 %v1029, 4
        %v1737 = vpop.permute.xlu0 %1736
        %1738 = vrot.lane.b32.xlu0 %v1041, 4
        %v1739 = vpop.permute.xlu0 %1738
        %1740 = vrot.lane.b32.xlu0 %v1053, 4
        %v1741 = vpop.permute.xlu0 %1740
        %1742 = vrot.lane.b32.xlu0 %v1065, 4
        %v1743 = vpop.permute.xlu0 %1742
        %1744 = vrot.lane.b32.xlu0 %v1077, 4
        %v1745 = vpop.permute.xlu0 %1744
        %1746 = vrot.lane.b32.xlu0 %v1089, 4
        %v1747 = vpop.permute.xlu0 %1746
        %1748 = vrot.lane.b32.xlu0 %v1101, 4
        %v1749 = vpop.permute.xlu0 %1748
        %1750 = vrot.lane.b32.xlu0 %v1113, 4
        %v1751 = vpop.permute.xlu0 %1750
        %1752 = vrot.lane.b32.xlu0 %v1125, 4
        %v1753 = vpop.permute.xlu0 %1752
        %1754 = vrot.lane.b32.xlu0 %v1137, 4
        %v1755 = vpop.permute.xlu0 %1754
        %1756 = vrot.lane.b32.xlu0 %v1149, 4
        %v1757 = vpop.permute.xlu0 %1756
        %1758 = vrot.lane.b32.xlu0 %v1161, 4
        %v1759 = vpop.permute.xlu0 %1758
        %1760 = vrot.lane.b32.xlu0 %v1173, 4
        %v1761 = vpop.permute.xlu0 %1760
        %1762 = vrot.lane.b32.xlu0 %v1185, 4
        %v1763 = vpop.permute.xlu0 %1762
        %1764 = vrot.lane.b32.xlu0 %v1197, 4
        %v1765 = vpop.permute.xlu0 %1764
        %1766 = vrot.lane.b32.xlu0 %v1209, 4
        %v1767 = vpop.permute.xlu0 %1766
        %1768 = vrot.lane.b32.xlu0 %v1221, 4
        %v1769 = vpop.permute.xlu0 %1768
        %1770 = vrot.lane.b32.xlu0 %v1233, 4
        %v1771 = vpop.permute.xlu0 %1770
        %1772 = vrot.lane.b32.xlu0 %v1245, 4
        %v1773 = vpop.permute.xlu0 %1772
        %1774 = vrot.lane.b32.xlu0 %v1257, 4
        %v1775 = vpop.permute.xlu0 %1774
        %1776 = vrot.lane.b32.xlu0 %v1269, 4
        %v1777 = vpop.permute.xlu0 %1776
        %1778 = vrot.lane.b32.xlu0 %v1281, 4
        %v1779 = vpop.permute.xlu0 %1778
        %1780 = vrot.lane.b32.xlu0 %v1293, 4
        %v1781 = vpop.permute.xlu0 %1780
        %1782 = vrot.lane.b32.xlu0 %v1305, 4
        %v1783 = vpop.permute.xlu0 %1782
        %1784 = vrot.lane.b32.xlu0 %v1317, 4
        %v1785 = vpop.permute.xlu0 %1784
        %1786 = vrot.lane.b32.xlu0 %v1329, 4
        %v1787 = vpop.permute.xlu0 %1786
        %1788 = vrot.lane.b32.xlu0 %v1341, 4
        %v1789 = vpop.permute.xlu0 %1788
        %1790 = vrot.lane.b32.xlu0 %v1353, 4
        %v1791 = vpop.permute.xlu0 %1790
        %1792 = vrot.lane.b32.xlu0 %v1365, 4
        %v1793 = vpop.permute.xlu0 %1792
        %1794 = vrot.lane.b32.xlu0 %v1377, 4
        %v1795 = vpop.permute.xlu0 %1794
        %1796 = vrot.lane.b32.xlu0 %v1389, 4
        %v1797 = vpop.permute.xlu0 %1796
        %1798 = vrot.lane.b32.xlu0 %v1401, 4
        %v1799 = vpop.permute.xlu0 %1798
        %1800 = vrot.lane.b32.xlu0 %v1413, 4
        %v1801 = vpop.permute.xlu0 %1800
        %1802 = vrot.lane.b32.xlu0 %v1425, 4
        %v1803 = vpop.permute.xlu0 %1802
        %1804 = vrot.lane.b32.xlu0 %v1437, 4
        %v1805 = vpop.permute.xlu0 %1804
        %1806 = vrot.lane.b32.xlu0 %v1449, 4
        %v1807 = vpop.permute.xlu0 %1806
        %1808 = vrot.lane.b32.xlu0 %v1461, 4
        %v1809 = vpop.permute.xlu0 %1808
        %1810 = vrot.lane.b32.xlu0 %v1473, 4
        %v1811 = vpop.permute.xlu0 %1810
        %1812 = vrot.lane.b32.xlu0 %v1485, 4
        %v1813 = vpop.permute.xlu0 %1812
        %1814 = vrot.lane.b32.xlu0 %v1497, 4
        %v1815 = vpop.permute.xlu0 %1814
        %1816 = vrot.lane.b32.xlu0 %v1509, 4
        %v1817 = vpop.permute.xlu0 %1816
        %1818 = vrot.lane.b32.xlu0 %v1521, 4
        %v1819 = vpop.permute.xlu0 %1818
        %1820 = vrot.lane.b32.xlu0 %v1533, 4
        %v1821 = vpop.permute.xlu0 %1820
        %1822 = vrot.lane.b32.xlu0 %v1545, 4
        %v1823 = vpop.permute.xlu0 %1822
        %1824 = vrot.lane.b32.xlu0 %v1557, 4
        %v1825 = vpop.permute.xlu0 %1824
        %1826 = vrot.lane.b32.xlu0 %v1569, 4
        %v1827 = vpop.permute.xlu0 %1826
        %1828 = vrot.lane.b32.xlu0 %v1581, 4
        %v1829 = vpop.permute.xlu0 %1828
        %1830 = vrot.lane.b32.xlu0 %v1593, 4
        %v1831 = vpop.permute.xlu0 %1830
        %1832 = vrot.lane.b32.xlu0 %v1605, 4
        %v1833 = vpop.permute.xlu0 %1832
        %1834 = vrot.lane.b32.xlu0 %v1617, 4
        %v1835 = vpop.permute.xlu0 %1834
        %1836 = vrot.lane.b32.xlu0 %v1629, 4
        %v1837 = vpop.permute.xlu0 %1836
        %1838 = vrot.lane.b32.xlu0 %v1641, 4
        %v1839 = vpop.permute.xlu0 %1838
        %1840 = vrot.lane.b32.xlu0 %v1653, 4
        %v1841 = vpop.permute.xlu0 %1840
        %1842 = vrot.lane.b32.xlu0 %v1665, 4
        %v1843 = vpop.permute.xlu0 %1842
        %1844 = vrot.lane.b32.xlu0 %v1677, 4
        %v1845 = vpop.permute.xlu0 %1844
        %1846 = vrot.lane.b32.xlu0 %v1689, 4
        %v1847 = vpop.permute.xlu0 %1846
        %1848 = vrot.lane.b32.xlu0 %v1701, 4
        %v1849 = vpop.permute.xlu0 %1848
        %1850 = vrot.lane.b32.xlu0 %v1713, 4
        %v1851 = vpop.permute.xlu0 %1850
        %1852 = vrot.lane.b32.xlu0 %v1725, 4
        %v1853 = vpop.permute.xlu0 %1852
        %vm1854 = vcmask 1046528
        %v1855 = vrot.slane %v701, 1
        %v1856 = vrot.slane %v893, 1
        %v1857 = vsel %vm1854, %v1855, %v1856
        %v1858 = vrot.slane %v702, 1
        %v1859 = vrot.slane %v894, 1
        %v1860 = vsel %vm1854, %v1858, %v1859
        %v1861 = vrot.slane %v703, 1
        %v1862 = vrot.slane %v895, 1
        %v1863 = vsel %vm1854, %v1861, %v1862
        %v1864 = vrot.slane %v704, 1
        %v1865 = vrot.slane %v896, 1
        %v1866 = vsel %vm1854, %v1864, %v1865
        %v1867 = vrot.slane %v705, 1
        %v1868 = vrot.slane %v897, 1
        %v1869 = vsel %vm1854, %v1867, %v1868
        %v1870 = vrot.slane %v706, 1
        %v1871 = vrot.slane %v898, 1
        %v1872 = vsel %vm1854, %v1870, %v1871
        %v1873 = vrot.slane %v707, 1
        %v1874 = vrot.slane %v899, 1
        %v1875 = vsel %vm1854, %v1873, %v1874
        %v1876 = vrot.slane %v708, 1
        %v1877 = vrot.slane %v900, 1
        %v1878 = vsel %vm1854, %v1876, %v1877
        %v1879 = vrot.slane %v709, 1
        %v1880 = vrot.slane %v901, 1
        %v1881 = vsel %vm1854, %v1879, %v1880
        %v1882 = vrot.slane %v710, 1
        %v1883 = vrot.slane %v902, 1
        %v1884 = vsel %vm1854, %v1882, %v1883
        %v1885 = vrot.slane %v711, 1
        %v1886 = vrot.slane %v903, 1
        %v1887 = vsel %vm1854, %v1885, %v1886
        %v1888 = vrot.slane %v712, 1
        %v1889 = vrot.slane %v904, 1
        %v1890 = vsel %vm1854, %v1888, %v1889
        %v1891 = vrot.slane %v713, 1
        %v1892 = vrot.slane %v905, 1
        %v1893 = vsel %vm1854, %v1891, %v1892
        %v1894 = vrot.slane %v714, 1
        %v1895 = vrot.slane %v906, 1
        %v1896 = vsel %vm1854, %v1894, %v1895
        %v1897 = vrot.slane %v715, 1
        %v1898 = vrot.slane %v907, 1
        %v1899 = vsel %vm1854, %v1897, %v1898
        %v1900 = vrot.slane %v716, 1
        %v1901 = vrot.slane %v908, 1
        %v1902 = vsel %vm1854, %v1900, %v1901
        %v1903 = vrot.slane %v717, 1
        %v1904 = vrot.slane %v909, 1
        %v1905 = vsel %vm1854, %v1903, %v1904
        %v1906 = vrot.slane %v718, 1
        %v1907 = vrot.slane %v910, 1
        %v1908 = vsel %vm1854, %v1906, %v1907
        %v1909 = vrot.slane %v719, 1
        %v1910 = vrot.slane %v911, 1
        %v1911 = vsel %vm1854, %v1909, %v1910
        %v1912 = vrot.slane %v720, 1
        %v1913 = vrot.slane %v912, 1
        %v1914 = vsel %vm1854, %v1912, %v1913
        %v1915 = vrot.slane %v721, 1
        %v1916 = vrot.slane %v913, 1
        %v1917 = vsel %vm1854, %v1915, %v1916
        %v1918 = vrot.slane %v722, 1
        %v1919 = vrot.slane %v914, 1
        %v1920 = vsel %vm1854, %v1918, %v1919
        %v1921 = vrot.slane %v723, 1
        %v1922 = vrot.slane %v915, 1
        %v1923 = vsel %vm1854, %v1921, %v1922
        %v1924 = vrot.slane %v724, 1
        %v1925 = vrot.slane %v916, 1
        %v1926 = vsel %vm1854, %v1924, %v1925
        %v1927 = vrot.slane %v725, 1
        %v1928 = vrot.slane %v917, 1
        %v1929 = vsel %vm1854, %v1927, %v1928
        %v1930 = vrot.slane %v726, 1
        %v1931 = vrot.slane %v918, 1
        %v1932 = vsel %vm1854, %v1930, %v1931
        %v1933 = vrot.slane %v727, 1
        %v1934 = vrot.slane %v919, 1
        %v1935 = vsel %vm1854, %v1933, %v1934
        %v1936 = vrot.slane %v728, 1
        %v1937 = vrot.slane %v920, 1
        %v1938 = vsel %vm1854, %v1936, %v1937
        %v1939 = vrot.slane %v729, 1
        %v1940 = vrot.slane %v921, 1
        %v1941 = vsel %vm1854, %v1939, %v1940
        %v1942 = vrot.slane %v730, 1
        %v1943 = vrot.slane %v922, 1
        %v1944 = vsel %vm1854, %v1942, %v1943
        %v1945 = vrot.slane %v731, 1
        %v1946 = vrot.slane %v923, 1
        %v1947 = vsel %vm1854, %v1945, %v1946
        %v1948 = vrot.slane %v732, 1
        %v1949 = vrot.slane %v924, 1
        %v1950 = vsel %vm1854, %v1948, %v1949
        %v1951 = vrot.slane %v733, 1
        %v1952 = vrot.slane %v925, 1
        %v1953 = vsel %vm1854, %v1951, %v1952
        %v1954 = vrot.slane %v734, 1
        %v1955 = vrot.slane %v926, 1
        %v1956 = vsel %vm1854, %v1954, %v1955
        %v1957 = vrot.slane %v735, 1
        %v1958 = vrot.slane %v927, 1
        %v1959 = vsel %vm1854, %v1957, %v1958
        %v1960 = vrot.slane %v736, 1
        %v1961 = vrot.slane %v928, 1
        %v1962 = vsel %vm1854, %v1960, %v1961
        %v1963 = vrot.slane %v737, 1
        %v1964 = vrot.slane %v929, 1
        %v1965 = vsel %vm1854, %v1963, %v1964
        %v1966 = vrot.slane %v738, 1
        %v1967 = vrot.slane %v930, 1
        %v1968 = vsel %vm1854, %v1966, %v1967
        %v1969 = vrot.slane %v739, 1
        %v1970 = vrot.slane %v931, 1
        %v1971 = vsel %vm1854, %v1969, %v1970
        %v1972 = vrot.slane %v740, 1
        %v1973 = vrot.slane %v932, 1
        %v1974 = vsel %vm1854, %v1972, %v1973
        %v1975 = vrot.slane %v741, 1
        %v1976 = vrot.slane %v933, 1
        %v1977 = vsel %vm1854, %v1975, %v1976
        %v1978 = vrot.slane %v742, 1
        %v1979 = vrot.slane %v934, 1
        %v1980 = vsel %vm1854, %v1978, %v1979
        %v1981 = vrot.slane %v743, 1
        %v1982 = vrot.slane %v935, 1
        %v1983 = vsel %vm1854, %v1981, %v1982
        %v1984 = vrot.slane %v744, 1
        %v1985 = vrot.slane %v936, 1
        %v1986 = vsel %vm1854, %v1984, %v1985
        %v1987 = vrot.slane %v745, 1
        %v1988 = vrot.slane %v937, 1
        %v1989 = vsel %vm1854, %v1987, %v1988
        %v1990 = vrot.slane %v746, 1
        %v1991 = vrot.slane %v938, 1
        %v1992 = vsel %vm1854, %v1990, %v1991
        %v1993 = vrot.slane %v747, 1
        %v1994 = vrot.slane %v939, 1
        %v1995 = vsel %vm1854, %v1993, %v1994
        %v1996 = vrot.slane %v748, 1
        %v1997 = vrot.slane %v940, 1
        %v1998 = vsel %vm1854, %v1996, %v1997
        %v1999 = vrot.slane %v749, 1
        %v2000 = vrot.slane %v941, 1
        %v2001 = vsel %vm1854, %v1999, %v2000
        %v2002 = vrot.slane %v750, 1
        %v2003 = vrot.slane %v942, 1
        %v2004 = vsel %vm1854, %v2002, %v2003
        %v2005 = vrot.slane %v751, 1
        %v2006 = vrot.slane %v943, 1
        %v2007 = vsel %vm1854, %v2005, %v2006
        %v2008 = vrot.slane %v752, 1
        %v2009 = vrot.slane %v944, 1
        %v2010 = vsel %vm1854, %v2008, %v2009
        %v2011 = vrot.slane %v753, 1
        %v2012 = vrot.slane %v945, 1
        %v2013 = vsel %vm1854, %v2011, %v2012
        %v2014 = vrot.slane %v754, 1
        %v2015 = vrot.slane %v946, 1
        %v2016 = vsel %vm1854, %v2014, %v2015
        %v2017 = vrot.slane %v755, 1
        %v2018 = vrot.slane %v947, 1
        %v2019 = vsel %vm1854, %v2017, %v2018
        %v2020 = vrot.slane %v756, 1
        %v2021 = vrot.slane %v948, 1
        %v2022 = vsel %vm1854, %v2020, %v2021
        %v2023 = vrot.slane %v757, 1
        %v2024 = vrot.slane %v949, 1
        %v2025 = vsel %vm1854, %v2023, %v2024
        %v2026 = vrot.slane %v758, 1
        %v2027 = vrot.slane %v950, 1
        %v2028 = vsel %vm1854, %v2026, %v2027
        %v2029 = vrot.slane %v759, 1
        %v2030 = vrot.slane %v951, 1
        %v2031 = vsel %vm1854, %v2029, %v2030
        %v2032 = vrot.slane %v760, 1
        %v2033 = vrot.slane %v952, 1
        %v2034 = vsel %vm1854, %v2032, %v2033
        %v2035 = vrot.slane %v761, 1
        %v2036 = vrot.slane %v953, 1
        %v2037 = vsel %vm1854, %v2035, %v2036
        %v2038 = vrot.slane %v762, 1
        %v2039 = vrot.slane %v954, 1
        %v2040 = vsel %vm1854, %v2038, %v2039
        %v2041 = vrot.slane %v763, 1
        %v2042 = vrot.slane %v955, 1
        %v2043 = vsel %vm1854, %v2041, %v2042
        %v2044 = vrot.slane %v764, 1
        %v2045 = vrot.slane %v956, 1
        %v2046 = vsel %vm1854, %v2044, %v2045
        %2047 = vrot.lane.b32.xlu0 %v1857, 8
        %v2048 = vpop.permute.xlu0 %2047
        %2049 = vrot.lane.b32.xlu0 %v1860, 8
        %v2050 = vpop.permute.xlu0 %2049
        %2051 = vrot.lane.b32.xlu0 %v1863, 8
        %v2052 = vpop.permute.xlu0 %2051
        %2053 = vrot.lane.b32.xlu0 %v1866, 8
        %v2054 = vpop.permute.xlu0 %2053
        %2055 = vrot.lane.b32.xlu0 %v1869, 8
        %v2056 = vpop.permute.xlu0 %2055
        %2057 = vrot.lane.b32.xlu0 %v1872, 8
        %v2058 = vpop.permute.xlu0 %2057
        %2059 = vrot.lane.b32.xlu0 %v1875, 8
        %v2060 = vpop.permute.xlu0 %2059
        %2061 = vrot.lane.b32.xlu0 %v1878, 8
        %v2062 = vpop.permute.xlu0 %2061
        %2063 = vrot.lane.b32.xlu0 %v1881, 8
        %v2064 = vpop.permute.xlu0 %2063
        %2065 = vrot.lane.b32.xlu0 %v1884, 8
        %v2066 = vpop.permute.xlu0 %2065
        %2067 = vrot.lane.b32.xlu0 %v1887, 8
        %v2068 = vpop.permute.xlu0 %2067
        %2069 = vrot.lane.b32.xlu0 %v1890, 8
        %v2070 = vpop.permute.xlu0 %2069
        %2071 = vrot.lane.b32.xlu0 %v1893, 8
        %v2072 = vpop.permute.xlu0 %2071
        %2073 = vrot.lane.b32.xlu0 %v1896, 8
        %v2074 = vpop.permute.xlu0 %2073
        %2075 = vrot.lane.b32.xlu0 %v1899, 8
        %v2076 = vpop.permute.xlu0 %2075
        %2077 = vrot.lane.b32.xlu0 %v1902, 8
        %v2078 = vpop.permute.xlu0 %2077
        %2079 = vrot.lane.b32.xlu0 %v1905, 8
        %v2080 = vpop.permute.xlu0 %2079
        %2081 = vrot.lane.b32.xlu0 %v1908, 8
        %v2082 = vpop.permute.xlu0 %2081
        %2083 = vrot.lane.b32.xlu0 %v1911, 8
        %v2084 = vpop.permute.xlu0 %2083
        %2085 = vrot.lane.b32.xlu0 %v1914, 8
        %v2086 = vpop.permute.xlu0 %2085
        %2087 = vrot.lane.b32.xlu0 %v1917, 8
        %v2088 = vpop.permute.xlu0 %2087
        %2089 = vrot.lane.b32.xlu0 %v1920, 8
        %v2090 = vpop.permute.xlu0 %2089
        %2091 = vrot.lane.b32.xlu0 %v1923, 8
        %v2092 = vpop.permute.xlu0 %2091
        %2093 = vrot.lane.b32.xlu0 %v1926, 8
        %v2094 = vpop.permute.xlu0 %2093
        %2095 = vrot.lane.b32.xlu0 %v1929, 8
        %v2096 = vpop.permute.xlu0 %2095
        %2097 = vrot.lane.b32.xlu0 %v1932, 8
        %v2098 = vpop.permute.xlu0 %2097
        %2099 = vrot.lane.b32.xlu0 %v1935, 8
        %v2100 = vpop.permute.xlu0 %2099
        %2101 = vrot.lane.b32.xlu0 %v1938, 8
        %v2102 = vpop.permute.xlu0 %2101
        %2103 = vrot.lane.b32.xlu0 %v1941, 8
        %v2104 = vpop.permute.xlu0 %2103
        %2105 = vrot.lane.b32.xlu0 %v1944, 8
        %v2106 = vpop.permute.xlu0 %2105
        %2107 = vrot.lane.b32.xlu0 %v1947, 8
        %v2108 = vpop.permute.xlu0 %2107
        %2109 = vrot.lane.b32.xlu0 %v1950, 8
        %v2110 = vpop.permute.xlu0 %2109
        %2111 = vrot.lane.b32.xlu0 %v1953, 8
        %v2112 = vpop.permute.xlu0 %2111
        %2113 = vrot.lane.b32.xlu0 %v1956, 8
        %v2114 = vpop.permute.xlu0 %2113
        %2115 = vrot.lane.b32.xlu0 %v1959, 8
        %v2116 = vpop.permute.xlu0 %2115
        %2117 = vrot.lane.b32.xlu0 %v1962, 8
        %v2118 = vpop.permute.xlu0 %2117
        %2119 = vrot.lane.b32.xlu0 %v1965, 8
        %v2120 = vpop.permute.xlu0 %2119
        %2121 = vrot.lane.b32.xlu0 %v1968, 8
        %v2122 = vpop.permute.xlu0 %2121
        %2123 = vrot.lane.b32.xlu0 %v1971, 8
        %v2124 = vpop.permute.xlu0 %2123
        %2125 = vrot.lane.b32.xlu0 %v1974, 8
        %v2126 = vpop.permute.xlu0 %2125
        %2127 = vrot.lane.b32.xlu0 %v1977, 8
        %v2128 = vpop.permute.xlu0 %2127
        %2129 = vrot.lane.b32.xlu0 %v1980, 8
        %v2130 = vpop.permute.xlu0 %2129
        %2131 = vrot.lane.b32.xlu0 %v1983, 8
        %v2132 = vpop.permute.xlu0 %2131
        %2133 = vrot.lane.b32.xlu0 %v1986, 8
        %v2134 = vpop.permute.xlu0 %2133
        %2135 = vrot.lane.b32.xlu0 %v1989, 8
        %v2136 = vpop.permute.xlu0 %2135
        %2137 = vrot.lane.b32.xlu0 %v1992, 8
        %v2138 = vpop.permute.xlu0 %2137
        %2139 = vrot.lane.b32.xlu0 %v1995, 8
        %v2140 = vpop.permute.xlu0 %2139
        %2141 = vrot.lane.b32.xlu0 %v1998, 8
        %v2142 = vpop.permute.xlu0 %2141
        %2143 = vrot.lane.b32.xlu0 %v2001, 8
        %v2144 = vpop.permute.xlu0 %2143
        %2145 = vrot.lane.b32.xlu0 %v2004, 8
        %v2146 = vpop.permute.xlu0 %2145
        %2147 = vrot.lane.b32.xlu0 %v2007, 8
        %v2148 = vpop.permute.xlu0 %2147
        %2149 = vrot.lane.b32.xlu0 %v2010, 8
        %v2150 = vpop.permute.xlu0 %2149
        %2151 = vrot.lane.b32.xlu0 %v2013, 8
        %v2152 = vpop.permute.xlu0 %2151
        %2153 = vrot.lane.b32.xlu0 %v2016, 8
        %v2154 = vpop.permute.xlu0 %2153
        %2155 = vrot.lane.b32.xlu0 %v2019, 8
        %v2156 = vpop.permute.xlu0 %2155
        %2157 = vrot.lane.b32.xlu0 %v2022, 8
        %v2158 = vpop.permute.xlu0 %2157
        %2159 = vrot.lane.b32.xlu0 %v2025, 8
        %v2160 = vpop.permute.xlu0 %2159
        %2161 = vrot.lane.b32.xlu0 %v2028, 8
        %v2162 = vpop.permute.xlu0 %2161
        %2163 = vrot.lane.b32.xlu0 %v2031, 8
        %v2164 = vpop.permute.xlu0 %2163
        %2165 = vrot.lane.b32.xlu0 %v2034, 8
        %v2166 = vpop.permute.xlu0 %2165
        %2167 = vrot.lane.b32.xlu0 %v2037, 8
        %v2168 = vpop.permute.xlu0 %2167
        %2169 = vrot.lane.b32.xlu0 %v2040, 8
        %v2170 = vpop.permute.xlu0 %2169
        %2171 = vrot.lane.b32.xlu0 %v2043, 8
        %v2172 = vpop.permute.xlu0 %2171
        %2173 = vrot.lane.b32.xlu0 %v2046, 8
        %v2174 = vpop.permute.xlu0 %2173
        %v2183 = vunpack.c.l.b16 %v277
        %v2184 = vunpack.c.l.b16 %v278
        %v2185 = vunpack.c.l.b16 %v331
        %v2186 = vunpack.c.l.b16 %v332
        %v2187 = vunpack.c.l.b16 %v385
        %v2188 = vunpack.c.l.b16 %v386
        %v2189 = vunpack.c.l.b16 %v439
        %v2190 = vunpack.c.l.b16 %v440
        %v2191 = vpack.c.b16 %v2184, %v2183
        %v2192 = vpack.c.b16 %v2186, %v2185
        %v2193 = vpack.c.b16 %v2188, %v2187
        %v2194 = vpack.c.b16 %v2190, %v2189
        %2195 = vrot.lane.b32.xlu0 %v702, 12
        %v2196 = vpop.permute.xlu0 %2195
        %2197 = vrot.lane.b32.xlu0 %v703, 12
        %v2198 = vpop.permute.xlu0 %2197
        %2199 = vrot.lane.b32.xlu0 %v704, 12
        %v2200 = vpop.permute.xlu0 %2199
        %2201 = vrot.lane.b32.xlu0 %v705, 12
        %v2202 = vpop.permute.xlu0 %2201
        %2203 = vrot.lane.b32.xlu0 %v706, 12
        %v2204 = vpop.permute.xlu0 %2203
        %2205 = vrot.lane.b32.xlu0 %v707, 12
        %v2206 = vpop.permute.xlu0 %2205
        %2207 = vrot.lane.b32.xlu0 %v708, 12
        %v2208 = vpop.permute.xlu0 %2207
        %2209 = vrot.lane.b32.xlu0 %v709, 12
        %v2210 = vpop.permute.xlu0 %2209
        %2211 = vrot.lane.b32.xlu0 %v710, 12
        %v2212 = vpop.permute.xlu0 %2211
        %2213 = vrot.lane.b32.xlu0 %v711, 12
        %v2214 = vpop.permute.xlu0 %2213
        %2215 = vrot.lane.b32.xlu0 %v712, 12
        %v2216 = vpop.permute.xlu0 %2215
        %2217 = vrot.lane.b32.xlu0 %v713, 12
        %v2218 = vpop.permute.xlu0 %2217
        %2219 = vrot.lane.b32.xlu0 %v714, 12
        %v2220 = vpop.permute.xlu0 %2219
        %2221 = vrot.lane.b32.xlu0 %v715, 12
        %v2222 = vpop.permute.xlu0 %2221
        %2223 = vrot.lane.b32.xlu0 %v716, 12
        %v2224 = vpop.permute.xlu0 %2223
        %2225 = vrot.lane.b32.xlu0 %v2191, 12
        %v2226 = vpop.permute.xlu0 %2225
        %2227 = vrot.lane.b32.xlu0 %v718, 12
        %v2228 = vpop.permute.xlu0 %2227
        %2229 = vrot.lane.b32.xlu0 %v719, 12
        %v2230 = vpop.permute.xlu0 %2229
        %2231 = vrot.lane.b32.xlu0 %v720, 12
        %v2232 = vpop.permute.xlu0 %2231
        %2233 = vrot.lane.b32.xlu0 %v721, 12
        %v2234 = vpop.permute.xlu0 %2233
        %2235 = vrot.lane.b32.xlu0 %v722, 12
        %v2236 = vpop.permute.xlu0 %2235
        %2237 = vrot.lane.b32.xlu0 %v723, 12
        %v2238 = vpop.permute.xlu0 %2237
        %2239 = vrot.lane.b32.xlu0 %v724, 12
        %v2240 = vpop.permute.xlu0 %2239
        %2241 = vrot.lane.b32.xlu0 %v725, 12
        %v2242 = vpop.permute.xlu0 %2241
        %2243 = vrot.lane.b32.xlu0 %v726, 12
        %v2244 = vpop.permute.xlu0 %2243
        %2245 = vrot.lane.b32.xlu0 %v727, 12
        %v2246 = vpop.permute.xlu0 %2245
        %2247 = vrot.lane.b32.xlu0 %v728, 12
        %v2248 = vpop.permute.xlu0 %2247
        %2249 = vrot.lane.b32.xlu0 %v729, 12
        %v2250 = vpop.permute.xlu0 %2249
        %2251 = vrot.lane.b32.xlu0 %v730, 12
        %v2252 = vpop.permute.xlu0 %2251
        %2253 = vrot.lane.b32.xlu0 %v731, 12
        %v2254 = vpop.permute.xlu0 %2253
        %2255 = vrot.lane.b32.xlu0 %v732, 12
        %v2256 = vpop.permute.xlu0 %2255
        %2257 = vrot.lane.b32.xlu0 %v2192, 12
        %v2258 = vpop.permute.xlu0 %2257
        %2259 = vrot.lane.b32.xlu0 %v734, 12
        %v2260 = vpop.permute.xlu0 %2259
        %2261 = vrot.lane.b32.xlu0 %v735, 12
        %v2262 = vpop.permute.xlu0 %2261
        %2263 = vrot.lane.b32.xlu0 %v736, 12
        %v2264 = vpop.permute.xlu0 %2263
        %2265 = vrot.lane.b32.xlu0 %v737, 12
        %v2266 = vpop.permute.xlu0 %2265
        %2267 = vrot.lane.b32.xlu0 %v738, 12
        %v2268 = vpop.permute.xlu0 %2267
        %2269 = vrot.lane.b32.xlu0 %v739, 12
        %v2270 = vpop.permute.xlu0 %2269
        %2271 = vrot.lane.b32.xlu0 %v740, 12
        %v2272 = vpop.permute.xlu0 %2271
        %2273 = vrot.lane.b32.xlu0 %v741, 12
        %v2274 = vpop.permute.xlu0 %2273
        %2275 = vrot.lane.b32.xlu0 %v742, 12
        %v2276 = vpop.permute.xlu0 %2275
        %2277 = vrot.lane.b32.xlu0 %v743, 12
        %v2278 = vpop.permute.xlu0 %2277
        %2279 = vrot.lane.b32.xlu0 %v744, 12
        %v2280 = vpop.permute.xlu0 %2279
        %2281 = vrot.lane.b32.xlu0 %v745, 12
        %v2282 = vpop.permute.xlu0 %2281
        %2283 = vrot.lane.b32.xlu0 %v746, 12
        %v2284 = vpop.permute.xlu0 %2283
        %2285 = vrot.lane.b32.xlu0 %v747, 12
        %v2286 = vpop.permute.xlu0 %2285
        %2287 = vrot.lane.b32.xlu0 %v748, 12
        %v2288 = vpop.permute.xlu0 %2287
        %2289 = vrot.lane.b32.xlu0 %v2193, 12
        %v2290 = vpop.permute.xlu0 %2289
        %2291 = vrot.lane.b32.xlu0 %v750, 12
        %v2292 = vpop.permute.xlu0 %2291
        %2293 = vrot.lane.b32.xlu0 %v751, 12
        %v2294 = vpop.permute.xlu0 %2293
        %2295 = vrot.lane.b32.xlu0 %v752, 12
        %v2296 = vpop.permute.xlu0 %2295
        %2297 = vrot.lane.b32.xlu0 %v753, 12
        %v2298 = vpop.permute.xlu0 %2297
        %2299 = vrot.lane.b32.xlu0 %v754, 12
        %v2300 = vpop.permute.xlu0 %2299
        %2301 = vrot.lane.b32.xlu0 %v755, 12
        %v2302 = vpop.permute.xlu0 %2301
        %2303 = vrot.lane.b32.xlu0 %v756, 12
        %v2304 = vpop.permute.xlu0 %2303
        %2305 = vrot.lane.b32.xlu0 %v757, 12
        %v2306 = vpop.permute.xlu0 %2305
        %2307 = vrot.lane.b32.xlu0 %v758, 12
        %v2308 = vpop.permute.xlu0 %2307
        %2309 = vrot.lane.b32.xlu0 %v759, 12
        %v2310 = vpop.permute.xlu0 %2309
        %2311 = vrot.lane.b32.xlu0 %v760, 12
        %v2312 = vpop.permute.xlu0 %2311
        %2313 = vrot.lane.b32.xlu0 %v761, 12
        %v2314 = vpop.permute.xlu0 %2313
        %2315 = vrot.lane.b32.xlu0 %v762, 12
        %v2316 = vpop.permute.xlu0 %2315
        %2317 = vrot.lane.b32.xlu0 %v763, 12
        %v2318 = vpop.permute.xlu0 %2317
        %2319 = vrot.lane.b32.xlu0 %v764, 12
        %v2320 = vpop.permute.xlu0 %2319
        %2321 = vrot.lane.b32.xlu0 %v2194, 12
        %v2322 = vpop.permute.xlu0 %2321
        %v2327 = vunpack.c.l.b16 %v279
        %v2328 = vunpack.c.l.b16 %v333
        %v2329 = vunpack.c.l.b16 %v387
        %v2330 = vunpack.c.l.b16 %v441
        %v2331 = vpack.c.b16 %v2327, %v2327
        %v2332 = vpack.c.b16 %v2328, %v2328
        %v2333 = vpack.c.b16 %v2329, %v2329
        %v2334 = vpack.c.b16 %v2330, %v2330
        %v2336 = vshrl.u32 %v2191, 16
        %v2338 = vshll.u32 %v2191, 16
        %v2340 = vrot.slane %v2338, 1
        %v2341 = vor.u32 %v2336, %v2340
        %v2343 = vshll.u32 %v2331, 16
        %v2345 = vrot.slane %v2343, 1
        %v2346 = vsel %vm957, %v2341, %v2345
        %v2348 = vshrl.u32 %v2192, 16
        %v2350 = vshll.u32 %v2192, 16
        %v2352 = vrot.slane %v2350, 1
        %v2353 = vor.u32 %v2348, %v2352
        %v2355 = vshll.u32 %v2332, 16
        %v2357 = vrot.slane %v2355, 1
        %v2358 = vsel %vm957, %v2353, %v2357
        %v2360 = vshrl.u32 %v2193, 16
        %v2362 = vshll.u32 %v2193, 16
        %v2364 = vrot.slane %v2362, 1
        %v2365 = vor.u32 %v2360, %v2364
        %v2367 = vshll.u32 %v2333, 16
        %v2369 = vrot.slane %v2367, 1
        %v2370 = vsel %vm957, %v2365, %v2369
        %v2372 = vshrl.u32 %v2194, 16
        %v2374 = vshll.u32 %v2194, 16
        %v2376 = vrot.slane %v2374, 1
        %v2377 = vor.u32 %v2372, %v2376
        %v2379 = vshll.u32 %v2334, 16
        %v2381 = vrot.slane %v2379, 1
        %v2382 = vsel %vm957, %v2377, %v2381
        %2383 = vrot.lane.b32.xlu0 %v981, 16
        %v2384 = vpop.permute.xlu0 %2383
        %2385 = vrot.lane.b32.xlu0 %v993, 16
        %v2386 = vpop.permute.xlu0 %2385
        %2387 = vrot.lane.b32.xlu0 %v1005, 16
        %v2388 = vpop.permute.xlu0 %2387
        %2389 = vrot.lane.b32.xlu0 %v1017, 16
        %v2390 = vpop.permute.xlu0 %2389
        %2391 = vrot.lane.b32.xlu0 %v1029, 16
        %v2392 = vpop.permute.xlu0 %2391
        %2393 = vrot.lane.b32.xlu0 %v1041, 16
        %v2394 = vpop.permute.xlu0 %2393
        %2395 = vrot.lane.b32.xlu0 %v1053, 16
        %v2396 = vpop.permute.xlu0 %2395
        %2397 = vrot.lane.b32.xlu0 %v1065, 16
        %v2398 = vpop.permute.xlu0 %2397
        %2399 = vrot.lane.b32.xlu0 %v1077, 16
        %v2400 = vpop.permute.xlu0 %2399
        %2401 = vrot.lane.b32.xlu0 %v1089, 16
        %v2402 = vpop.permute.xlu0 %2401
        %2403 = vrot.lane.b32.xlu0 %v1101, 16
        %v2404 = vpop.permute.xlu0 %2403
        %2405 = vrot.lane.b32.xlu0 %v1113, 16
        %v2406 = vpop.permute.xlu0 %2405
        %2407 = vrot.lane.b32.xlu0 %v1125, 16
        %v2408 = vpop.permute.xlu0 %2407
        %2409 = vrot.lane.b32.xlu0 %v1137, 16
        %v2410 = vpop.permute.xlu0 %2409
        %2411 = vrot.lane.b32.xlu0 %v1149, 16
        %v2412 = vpop.permute.xlu0 %2411
        %2413 = vrot.lane.b32.xlu0 %v2346, 16
        %v2414 = vpop.permute.xlu0 %2413
        %2415 = vrot.lane.b32.xlu0 %v1173, 16
        %v2416 = vpop.permute.xlu0 %2415
        %2417 = vrot.lane.b32.xlu0 %v1185, 16
        %v2418 = vpop.permute.xlu0 %2417
        %2419 = vrot.lane.b32.xlu0 %v1197, 16
        %v2420 = vpop.permute.xlu0 %2419
        %2421 = vrot.lane.b32.xlu0 %v1209, 16
        %v2422 = vpop.permute.xlu0 %2421
        %2423 = vrot.lane.b32.xlu0 %v1221, 16
        %v2424 = vpop.permute.xlu0 %2423
        %2425 = vrot.lane.b32.xlu0 %v1233, 16
        %v2426 = vpop.permute.xlu0 %2425
        %2427 = vrot.lane.b32.xlu0 %v1245, 16
        %v2428 = vpop.permute.xlu0 %2427
        %2429 = vrot.lane.b32.xlu0 %v1257, 16
        %v2430 = vpop.permute.xlu0 %2429
        %2431 = vrot.lane.b32.xlu0 %v1269, 16
        %v2432 = vpop.permute.xlu0 %2431
        %2433 = vrot.lane.b32.xlu0 %v1281, 16
        %v2434 = vpop.permute.xlu0 %2433
        %2435 = vrot.lane.b32.xlu0 %v1293, 16
        %v2436 = vpop.permute.xlu0 %2435
        %2437 = vrot.lane.b32.xlu0 %v1305, 16
        %v2438 = vpop.permute.xlu0 %2437
        %2439 = vrot.lane.b32.xlu0 %v1317, 16
        %v2440 = vpop.permute.xlu0 %2439
        %2441 = vrot.lane.b32.xlu0 %v1329, 16
        %v2442 = vpop.permute.xlu0 %2441
        %2443 = vrot.lane.b32.xlu0 %v1341, 16
        %v2444 = vpop.permute.xlu0 %2443
        %2445 = vrot.lane.b32.xlu0 %v2358, 16
        %v2446 = vpop.permute.xlu0 %2445
        %2447 = vrot.lane.b32.xlu0 %v1365, 16
        %v2448 = vpop.permute.xlu0 %2447
        %2449 = vrot.lane.b32.xlu0 %v1377, 16
        %v2450 = vpop.permute.xlu0 %2449
        %2451 = vrot.lane.b32.xlu0 %v1389, 16
        %v2452 = vpop.permute.xlu0 %2451
        %2453 = vrot.lane.b32.xlu0 %v1401, 16
        %v2454 = vpop.permute.xlu0 %2453
        %2455 = vrot.lane.b32.xlu0 %v1413, 16
        %v2456 = vpop.permute.xlu0 %2455
        %2457 = vrot.lane.b32.xlu0 %v1425, 16
        %v2458 = vpop.permute.xlu0 %2457
        %2459 = vrot.lane.b32.xlu0 %v1437, 16
        %v2460 = vpop.permute.xlu0 %2459
        %2461 = vrot.lane.b32.xlu0 %v1449, 16
        %v2462 = vpop.permute.xlu0 %2461
        %2463 = vrot.lane.b32.xlu0 %v1461, 16
        %v2464 = vpop.permute.xlu0 %2463
        %2465 = vrot.lane.b32.xlu0 %v1473, 16
        %v2466 = vpop.permute.xlu0 %2465
        %2467 = vrot.lane.b32.xlu0 %v1485, 16
        %v2468 = vpop.permute.xlu0 %2467
        %2469 = vrot.lane.b32.xlu0 %v1497, 16
        %v2470 = vpop.permute.xlu0 %2469
        %2471 = vrot.lane.b32.xlu0 %v1509, 16
        %v2472 = vpop.permute.xlu0 %2471
        %2473 = vrot.lane.b32.xlu0 %v1521, 16
        %v2474 = vpop.permute.xlu0 %2473
        %2475 = vrot.lane.b32.xlu0 %v1533, 16
        %v2476 = vpop.permute.xlu0 %2475
        %2477 = vrot.lane.b32.xlu0 %v2370, 16
        %v2478 = vpop.permute.xlu0 %2477
        %2479 = vrot.lane.b32.xlu0 %v1557, 16
        %v2480 = vpop.permute.xlu0 %2479
        %2481 = vrot.lane.b32.xlu0 %v1569, 16
        %v2482 = vpop.permute.xlu0 %2481
        %2483 = vrot.lane.b32.xlu0 %v1581, 16
        %v2484 = vpop.permute.xlu0 %2483
        %2485 = vrot.lane.b32.xlu0 %v1593, 16
        %v2486 = vpop.permute.xlu0 %2485
        %2487 = vrot.lane.b32.xlu0 %v1605, 16
        %v2488 = vpop.permute.xlu0 %2487
        %2489 = vrot.lane.b32.xlu0 %v1617, 16
        %v2490 = vpop.permute.xlu0 %2489
        %2491 = vrot.lane.b32.xlu0 %v1629, 16
        %v2492 = vpop.permute.xlu0 %2491
        %2493 = vrot.lane.b32.xlu0 %v1641, 16
        %v2494 = vpop.permute.xlu0 %2493
        %2495 = vrot.lane.b32.xlu0 %v1653, 16
        %v2496 = vpop.permute.xlu0 %2495
        %2497 = vrot.lane.b32.xlu0 %v1665, 16
        %v2498 = vpop.permute.xlu0 %2497
        %2499 = vrot.lane.b32.xlu0 %v1677, 16
        %v2500 = vpop.permute.xlu0 %2499
        %2501 = vrot.lane.b32.xlu0 %v1689, 16
        %v2502 = vpop.permute.xlu0 %2501
        %2503 = vrot.lane.b32.xlu0 %v1701, 16
        %v2504 = vpop.permute.xlu0 %2503
        %2505 = vrot.lane.b32.xlu0 %v1713, 16
        %v2506 = vpop.permute.xlu0 %2505
        %2507 = vrot.lane.b32.xlu0 %v1725, 16
        %v2508 = vpop.permute.xlu0 %2507
        %2509 = vrot.lane.b32.xlu0 %v2382, 16
        %v2510 = vpop.permute.xlu0 %2509
        %v2511 = vrot.slane %v2191, 1
        %v2512 = vrot.slane %v2331, 1
        %v2513 = vsel %vm1854, %v2511, %v2512
        %v2514 = vrot.slane %v2192, 1
        %v2515 = vrot.slane %v2332, 1
        %v2516 = vsel %vm1854, %v2514, %v2515
        %v2517 = vrot.slane %v2193, 1
        %v2518 = vrot.slane %v2333, 1
        %v2519 = vsel %vm1854, %v2517, %v2518
        %v2520 = vrot.slane %v2194, 1
        %v2521 = vrot.slane %v2334, 1
        %v2522 = vsel %vm1854, %v2520, %v2521
        %2523 = vrot.lane.b32.xlu0 %v1860, 20
        %v2524 = vpop.permute.xlu0 %2523
        %2525 = vrot.lane.b32.xlu0 %v1863, 20
        %v2526 = vpop.permute.xlu0 %2525
        %2527 = vrot.lane.b32.xlu0 %v1866, 20
        %v2528 = vpop.permute.xlu0 %2527
        %2529 = vrot.lane.b32.xlu0 %v1869, 20
        %v2530 = vpop.permute.xlu0 %2529
        %2531 = vrot.lane.b32.xlu0 %v1872, 20
        %v2532 = vpop.permute.xlu0 %2531
        %2533 = vrot.lane.b32.xlu0 %v1875, 20
        %v2534 = vpop.permute.xlu0 %2533
        %2535 = vrot.lane.b32.xlu0 %v1878, 20
        %v2536 = vpop.permute.xlu0 %2535
        %2537 = vrot.lane.b32.xlu0 %v1881, 20
        %v2538 = vpop.permute.xlu0 %2537
        %2539 = vrot.lane.b32.xlu0 %v1884, 20
        %v2540 = vpop.permute.xlu0 %2539
        %2541 = vrot.lane.b32.xlu0 %v1887, 20
        %v2542 = vpop.permute.xlu0 %2541
        %2543 = vrot.lane.b32.xlu0 %v1890, 20
        %v2544 = vpop.permute.xlu0 %2543
        %2545 = vrot.lane.b32.xlu0 %v1893, 20
        %v2546 = vpop.permute.xlu0 %2545
        %2547 = vrot.lane.b32.xlu0 %v1896, 20
        %v2548 = vpop.permute.xlu0 %2547
        %2549 = vrot.lane.b32.xlu0 %v1899, 20
        %v2550 = vpop.permute.xlu0 %2549
        %2551 = vrot.lane.b32.xlu0 %v1902, 20
        %v2552 = vpop.permute.xlu0 %2551
        %2553 = vrot.lane.b32.xlu0 %v2513, 20
        %v2554 = vpop.permute.xlu0 %2553
        %2555 = vrot.lane.b32.xlu0 %v1908, 20
        %v2556 = vpop.permute.xlu0 %2555
        %2557 = vrot.lane.b32.xlu0 %v1911, 20
        %v2558 = vpop.permute.xlu0 %2557
        %2559 = vrot.lane.b32.xlu0 %v1914, 20
        %v2560 = vpop.permute.xlu0 %2559
        %2561 = vrot.lane.b32.xlu0 %v1917, 20
        %v2562 = vpop.permute.xlu0 %2561
        %2563 = vrot.lane.b32.xlu0 %v1920, 20
        %v2564 = vpop.permute.xlu0 %2563
        %2565 = vrot.lane.b32.xlu0 %v1923, 20
        %v2566 = vpop.permute.xlu0 %2565
        %2567 = vrot.lane.b32.xlu0 %v1926, 20
        %v2568 = vpop.permute.xlu0 %2567
        %2569 = vrot.lane.b32.xlu0 %v1929, 20
        %v2570 = vpop.permute.xlu0 %2569
        %2571 = vrot.lane.b32.xlu0 %v1932, 20
        %v2572 = vpop.permute.xlu0 %2571
        %2573 = vrot.lane.b32.xlu0 %v1935, 20
        %v2574 = vpop.permute.xlu0 %2573
        %2575 = vrot.lane.b32.xlu0 %v1938, 20
        %v2576 = vpop.permute.xlu0 %2575
        %2577 = vrot.lane.b32.xlu0 %v1941, 20
        %v2578 = vpop.permute.xlu0 %2577
        %2579 = vrot.lane.b32.xlu0 %v1944, 20
        %v2580 = vpop.permute.xlu0 %2579
        %2581 = vrot.lane.b32.xlu0 %v1947, 20
        %v2582 = vpop.permute.xlu0 %2581
        %2583 = vrot.lane.b32.xlu0 %v1950, 20
        %v2584 = vpop.permute.xlu0 %2583
        %2585 = vrot.lane.b32.xlu0 %v2516, 20
        %v2586 = vpop.permute.xlu0 %2585
        %2587 = vrot.lane.b32.xlu0 %v1956, 20
        %v2588 = vpop.permute.xlu0 %2587
        %2589 = vrot.lane.b32.xlu0 %v1959, 20
        %v2590 = vpop.permute.xlu0 %2589
        %2591 = vrot.lane.b32.xlu0 %v1962, 20
        %v2592 = vpop.permute.xlu0 %2591
        %2593 = vrot.lane.b32.xlu0 %v1965, 20
        %v2594 = vpop.permute.xlu0 %2593
        %2595 = vrot.lane.b32.xlu0 %v1968, 20
        %v2596 = vpop.permute.xlu0 %2595
        %2597 = vrot.lane.b32.xlu0 %v1971, 20
        %v2598 = vpop.permute.xlu0 %2597
        %2599 = vrot.lane.b32.xlu0 %v1974, 20
        %v2600 = vpop.permute.xlu0 %2599
        %2601 = vrot.lane.b32.xlu0 %v1977, 20
        %v2602 = vpop.permute.xlu0 %2601
        %2603 = vrot.lane.b32.xlu0 %v1980, 20
        %v2604 = vpop.permute.xlu0 %2603
        %2605 = vrot.lane.b32.xlu0 %v1983, 20
        %v2606 = vpop.permute.xlu0 %2605
        %2607 = vrot.lane.b32.xlu0 %v1986, 20
        %v2608 = vpop.permute.xlu0 %2607
        %2609 = vrot.lane.b32.xlu0 %v1989, 20
        %v2610 = vpop.permute.xlu0 %2609
        %2611 = vrot.lane.b32.xlu0 %v1992, 20
        %v2612 = vpop.permute.xlu0 %2611
        %2613 = vrot.lane.b32.xlu0 %v1995, 20
        %v2614 = vpop.permute.xlu0 %2613
        %2615 = vrot.lane.b32.xlu0 %v1998, 20
        %v2616 = vpop.permute.xlu0 %2615
        %2617 = vrot.lane.b32.xlu0 %v2519, 20
        %v2618 = vpop.permute.xlu0 %2617
        %2619 = vrot.lane.b32.xlu0 %v2004, 20
        %v2620 = vpop.permute.xlu0 %2619
        %2621 = vrot.lane.b32.xlu0 %v2007, 20
        %v2622 = vpop.permute.xlu0 %2621
        %2623 = vrot.lane.b32.xlu0 %v2010, 20
        %v2624 = vpop.permute.xlu0 %2623
        %2625 = vrot.lane.b32.xlu0 %v2013, 20
        %v2626 = vpop.permute.xlu0 %2625
        %2627 = vrot.lane.b32.xlu0 %v2016, 20
        %v2628 = vpop.permute.xlu0 %2627
        %2629 = vrot.lane.b32.xlu0 %v2019, 20
        %v2630 = vpop.permute.xlu0 %2629
        %2631 = vrot.lane.b32.xlu0 %v2022, 20
        %v2632 = vpop.permute.xlu0 %2631
        %2633 = vrot.lane.b32.xlu0 %v2025, 20
        %v2634 = vpop.permute.xlu0 %2633
        %2635 = vrot.lane.b32.xlu0 %v2028, 20
        %v2636 = vpop.permute.xlu0 %2635
        %2637 = vrot.lane.b32.xlu0 %v2031, 20
        %v2638 = vpop.permute.xlu0 %2637
        %2639 = vrot.lane.b32.xlu0 %v2034, 20
        %v2640 = vpop.permute.xlu0 %2639
        %2641 = vrot.lane.b32.xlu0 %v2037, 20
        %v2642 = vpop.permute.xlu0 %2641
        %2643 = vrot.lane.b32.xlu0 %v2040, 20
        %v2644 = vpop.permute.xlu0 %2643
        %2645 = vrot.lane.b32.xlu0 %v2043, 20
        %v2646 = vpop.permute.xlu0 %2645
        %2647 = vrot.lane.b32.xlu0 %v2046, 20
        %v2648 = vpop.permute.xlu0 %2647
        %2649 = vrot.lane.b32.xlu0 %v2522, 20
        %v2650 = vpop.permute.xlu0 %2649
        %v2659 = vunpack.c.l.b16 %v280
        %v2660 = vunpack.c.l.b16 %v281
        %v2661 = vunpack.c.l.b16 %v334
        %v2662 = vunpack.c.l.b16 %v335
        %v2663 = vunpack.c.l.b16 %v388
        %v2664 = vunpack.c.l.b16 %v389
        %v2665 = vunpack.c.l.b16 %v442
        %v2666 = vunpack.c.l.b16 %v443
        %v2667 = vpack.c.b16 %v2660, %v2659
        %v2668 = vpack.c.b16 %v2662, %v2661
        %v2669 = vpack.c.b16 %v2664, %v2663
        %v2670 = vpack.c.b16 %v2666, %v2665
        %2671 = vrot.lane.b32.xlu0 %v703, 24
        %v2672 = vpop.permute.xlu0 %2671
        %2673 = vrot.lane.b32.xlu0 %v704, 24
        %v2674 = vpop.permute.xlu0 %2673
        %2675 = vrot.lane.b32.xlu0 %v705, 24
        %v2676 = vpop.permute.xlu0 %2675
        %2677 = vrot.lane.b32.xlu0 %v706, 24
        %v2678 = vpop.permute.xlu0 %2677
        %2679 = vrot.lane.b32.xlu0 %v707, 24
        %v2680 = vpop.permute.xlu0 %2679
        %2681 = vrot.lane.b32.xlu0 %v708, 24
        %v2682 = vpop.permute.xlu0 %2681
        %2683 = vrot.lane.b32.xlu0 %v709, 24
        %v2684 = vpop.permute.xlu0 %2683
        %2685 = vrot.lane.b32.xlu0 %v710, 24
        %v2686 = vpop.permute.xlu0 %2685
        %2687 = vrot.lane.b32.xlu0 %v711, 24
        %v2688 = vpop.permute.xlu0 %2687
        %2689 = vrot.lane.b32.xlu0 %v712, 24
        %v2690 = vpop.permute.xlu0 %2689
        %2691 = vrot.lane.b32.xlu0 %v713, 24
        %v2692 = vpop.permute.xlu0 %2691
        %2693 = vrot.lane.b32.xlu0 %v714, 24
        %v2694 = vpop.permute.xlu0 %2693
        %2695 = vrot.lane.b32.xlu0 %v715, 24
        %v2696 = vpop.permute.xlu0 %2695
        %2697 = vrot.lane.b32.xlu0 %v716, 24
        %v2698 = vpop.permute.xlu0 %2697
        %2699 = vrot.lane.b32.xlu0 %v2191, 24
        %v2700 = vpop.permute.xlu0 %2699
        %2701 = vrot.lane.b32.xlu0 %v2667, 24
        %v2702 = vpop.permute.xlu0 %2701
        %2703 = vrot.lane.b32.xlu0 %v719, 24
        %v2704 = vpop.permute.xlu0 %2703
        %2705 = vrot.lane.b32.xlu0 %v720, 24
        %v2706 = vpop.permute.xlu0 %2705
        %2707 = vrot.lane.b32.xlu0 %v721, 24
        %v2708 = vpop.permute.xlu0 %2707
        %2709 = vrot.lane.b32.xlu0 %v722, 24
        %v2710 = vpop.permute.xlu0 %2709
        %2711 = vrot.lane.b32.xlu0 %v723, 24
        %v2712 = vpop.permute.xlu0 %2711
        %2713 = vrot.lane.b32.xlu0 %v724, 24
        %v2714 = vpop.permute.xlu0 %2713
        %2715 = vrot.lane.b32.xlu0 %v725, 24
        %v2716 = vpop.permute.xlu0 %2715
        %2717 = vrot.lane.b32.xlu0 %v726, 24
        %v2718 = vpop.permute.xlu0 %2717
        %2719 = vrot.lane.b32.xlu0 %v727, 24
        %v2720 = vpop.permute.xlu0 %2719
        %2721 = vrot.lane.b32.xlu0 %v728, 24
        %v2722 = vpop.permute.xlu0 %2721
        %2723 = vrot.lane.b32.xlu0 %v729, 24
        %v2724 = vpop.permute.xlu0 %2723
        %2725 = vrot.lane.b32.xlu0 %v730, 24
        %v2726 = vpop.permute.xlu0 %2725
        %2727 = vrot.lane.b32.xlu0 %v731, 24
        %v2728 = vpop.permute.xlu0 %2727
        %2729 = vrot.lane.b32.xlu0 %v732, 24
        %v2730 = vpop.permute.xlu0 %2729
        %2731 = vrot.lane.b32.xlu0 %v2192, 24
        %v2732 = vpop.permute.xlu0 %2731
        %2733 = vrot.lane.b32.xlu0 %v2668, 24
        %v2734 = vpop.permute.xlu0 %2733
        %2735 = vrot.lane.b32.xlu0 %v735, 24
        %v2736 = vpop.permute.xlu0 %2735
        %2737 = vrot.lane.b32.xlu0 %v736, 24
        %v2738 = vpop.permute.xlu0 %2737
        %2739 = vrot.lane.b32.xlu0 %v737, 24
        %v2740 = vpop.permute.xlu0 %2739
        %2741 = vrot.lane.b32.xlu0 %v738, 24
        %v2742 = vpop.permute.xlu0 %2741
        %2743 = vrot.lane.b32.xlu0 %v739, 24
        %v2744 = vpop.permute.xlu0 %2743
        %2745 = vrot.lane.b32.xlu0 %v740, 24
        %v2746 = vpop.permute.xlu0 %2745
        %2747 = vrot.lane.b32.xlu0 %v741, 24
        %v2748 = vpop.permute.xlu0 %2747
        %2749 = vrot.lane.b32.xlu0 %v742, 24
        %v2750 = vpop.permute.xlu0 %2749
        %2751 = vrot.lane.b32.xlu0 %v743, 24
        %v2752 = vpop.permute.xlu0 %2751
        %2753 = vrot.lane.b32.xlu0 %v744, 24
        %v2754 = vpop.permute.xlu0 %2753
        %2755 = vrot.lane.b32.xlu0 %v745, 24
        %v2756 = vpop.permute.xlu0 %2755
        %2757 = vrot.lane.b32.xlu0 %v746, 24
        %v2758 = vpop.permute.xlu0 %2757
        %2759 = vrot.lane.b32.xlu0 %v747, 24
        %v2760 = vpop.permute.xlu0 %2759
        %2761 = vrot.lane.b32.xlu0 %v748, 24
        %v2762 = vpop.permute.xlu0 %2761
        %2763 = vrot.lane.b32.xlu0 %v2193, 24
        %v2764 = vpop.permute.xlu0 %2763
        %2765 = vrot.lane.b32.xlu0 %v2669, 24
        %v2766 = vpop.permute.xlu0 %2765
        %2767 = vrot.lane.b32.xlu0 %v751, 24
        %v2768 = vpop.permute.xlu0 %2767
        %2769 = vrot.lane.b32.xlu0 %v752, 24
        %v2770 = vpop.permute.xlu0 %2769
        %2771 = vrot.lane.b32.xlu0 %v753, 24
        %v2772 = vpop.permute.xlu0 %2771
        %2773 = vrot.lane.b32.xlu0 %v754, 24
        %v2774 = vpop.permute.xlu0 %2773
        %2775 = vrot.lane.b32.xlu0 %v755, 24
        %v2776 = vpop.permute.xlu0 %2775
        %2777 = vrot.lane.b32.xlu0 %v756, 24
        %v2778 = vpop.permute.xlu0 %2777
        %2779 = vrot.lane.b32.xlu0 %v757, 24
        %v2780 = vpop.permute.xlu0 %2779
        %2781 = vrot.lane.b32.xlu0 %v758, 24
        %v2782 = vpop.permute.xlu0 %2781
        %2783 = vrot.lane.b32.xlu0 %v759, 24
        %v2784 = vpop.permute.xlu0 %2783
        %2785 = vrot.lane.b32.xlu0 %v760, 24
        %v2786 = vpop.permute.xlu0 %2785
        %2787 = vrot.lane.b32.xlu0 %v761, 24
        %v2788 = vpop.permute.xlu0 %2787
        %2789 = vrot.lane.b32.xlu0 %v762, 24
        %v2790 = vpop.permute.xlu0 %2789
        %2791 = vrot.lane.b32.xlu0 %v763, 24
        %v2792 = vpop.permute.xlu0 %2791
        %2793 = vrot.lane.b32.xlu0 %v764, 24
        %v2794 = vpop.permute.xlu0 %2793
        %2795 = vrot.lane.b32.xlu0 %v2194, 24
        %v2796 = vpop.permute.xlu0 %2795
        %2797 = vrot.lane.b32.xlu0 %v2670, 24
        %v2798 = vpop.permute.xlu0 %2797
        %v2803 = vunpack.c.l.b16 %v282
        %v2804 = vunpack.c.l.b16 %v336
        %v2805 = vunpack.c.l.b16 %v390
        %v2806 = vunpack.c.l.b16 %v444
        %v2807 = vpack.c.b16 %v2803, %v2803
        %v2808 = vpack.c.b16 %v2804, %v2804
        %v2809 = vpack.c.b16 %v2805, %v2805
        %v2810 = vpack.c.b16 %v2806, %v2806
        %v2812 = vshrl.u32 %v2667, 16
        %v2814 = vshll.u32 %v2667, 16
        %v2816 = vrot.slane %v2814, 1
        %v2817 = vor.u32 %v2812, %v2816
        %v2819 = vshll.u32 %v2807, 16
        %v2821 = vrot.slane %v2819, 1
        %v2822 = vsel %vm957, %v2817, %v2821
        %v2824 = vshrl.u32 %v2668, 16
        %v2826 = vshll.u32 %v2668, 16
        %v2828 = vrot.slane %v2826, 1
        %v2829 = vor.u32 %v2824, %v2828
        %v2831 = vshll.u32 %v2808, 16
        %v2833 = vrot.slane %v2831, 1
        %v2834 = vsel %vm957, %v2829, %v2833
        %v2836 = vshrl.u32 %v2669, 16
        %v2838 = vshll.u32 %v2669, 16
        %v2840 = vrot.slane %v2838, 1
        %v2841 = vor.u32 %v2836, %v2840
        %v2843 = vshll.u32 %v2809, 16
        %v2845 = vrot.slane %v2843, 1
        %v2846 = vsel %vm957, %v2841, %v2845
        %v2848 = vshrl.u32 %v2670, 16
        %v2850 = vshll.u32 %v2670, 16
        %v2852 = vrot.slane %v2850, 1
        %v2853 = vor.u32 %v2848, %v2852
        %v2855 = vshll.u32 %v2810, 16
        %v2857 = vrot.slane %v2855, 1
        %v2858 = vsel %vm957, %v2853, %v2857
        %2859 = vrot.lane.b32.xlu0 %v993, 28
        %v2860 = vpop.permute.xlu0 %2859
        %2861 = vrot.lane.b32.xlu0 %v1005, 28
        %v2862 = vpop.permute.xlu0 %2861
        %2863 = vrot.lane.b32.xlu0 %v1017, 28
        %v2864 = vpop.permute.xlu0 %2863
        %2865 = vrot.lane.b32.xlu0 %v1029, 28
        %v2866 = vpop.permute.xlu0 %2865
        %2867 = vrot.lane.b32.xlu0 %v1041, 28
        %v2868 = vpop.permute.xlu0 %2867
        %2869 = vrot.lane.b32.xlu0 %v1053, 28
        %v2870 = vpop.permute.xlu0 %2869
        %2871 = vrot.lane.b32.xlu0 %v1065, 28
        %v2872 = vpop.permute.xlu0 %2871
        %2873 = vrot.lane.b32.xlu0 %v1077, 28
        %v2874 = vpop.permute.xlu0 %2873
        %2875 = vrot.lane.b32.xlu0 %v1089, 28
        %v2876 = vpop.permute.xlu0 %2875
        %2877 = vrot.lane.b32.xlu0 %v1101, 28
        %v2878 = vpop.permute.xlu0 %2877
        %2879 = vrot.lane.b32.xlu0 %v1113, 28
        %v2880 = vpop.permute.xlu0 %2879
        %2881 = vrot.lane.b32.xlu0 %v1125, 28
        %v2882 = vpop.permute.xlu0 %2881
        %2883 = vrot.lane.b32.xlu0 %v1137, 28
        %v2884 = vpop.permute.xlu0 %2883
        %2885 = vrot.lane.b32.xlu0 %v1149, 28
        %v2886 = vpop.permute.xlu0 %2885
        %2887 = vrot.lane.b32.xlu0 %v2346, 28
        %v2888 = vpop.permute.xlu0 %2887
        %2889 = vrot.lane.b32.xlu0 %v2822, 28
        %v2890 = vpop.permute.xlu0 %2889
        %2891 = vrot.lane.b32.xlu0 %v1185, 28
        %v2892 = vpop.permute.xlu0 %2891
        %2893 = vrot.lane.b32.xlu0 %v1197, 28
        %v2894 = vpop.permute.xlu0 %2893
        %2895 = vrot.lane.b32.xlu0 %v1209, 28
        %v2896 = vpop.permute.xlu0 %2895
        %2897 = vrot.lane.b32.xlu0 %v1221, 28
        %v2898 = vpop.permute.xlu0 %2897
        %2899 = vrot.lane.b32.xlu0 %v1233, 28
        %v2900 = vpop.permute.xlu0 %2899
        %2901 = vrot.lane.b32.xlu0 %v1245, 28
        %v2902 = vpop.permute.xlu0 %2901
        %2903 = vrot.lane.b32.xlu0 %v1257, 28
        %v2904 = vpop.permute.xlu0 %2903
        %2905 = vrot.lane.b32.xlu0 %v1269, 28
        %v2906 = vpop.permute.xlu0 %2905
        %2907 = vrot.lane.b32.xlu0 %v1281, 28
        %v2908 = vpop.permute.xlu0 %2907
        %2909 = vrot.lane.b32.xlu0 %v1293, 28
        %v2910 = vpop.permute.xlu0 %2909
        %2911 = vrot.lane.b32.xlu0 %v1305, 28
        %v2912 = vpop.permute.xlu0 %2911
        %2913 = vrot.lane.b32.xlu0 %v1317, 28
        %v2914 = vpop.permute.xlu0 %2913
        %2915 = vrot.lane.b32.xlu0 %v1329, 28
        %v2916 = vpop.permute.xlu0 %2915
        %2917 = vrot.lane.b32.xlu0 %v1341, 28
        %v2918 = vpop.permute.xlu0 %2917
        %2919 = vrot.lane.b32.xlu0 %v2358, 28
        %v2920 = vpop.permute.xlu0 %2919
        %2921 = vrot.lane.b32.xlu0 %v2834, 28
        %v2922 = vpop.permute.xlu0 %2921
        %2923 = vrot.lane.b32.xlu0 %v1377, 28
        %v2924 = vpop.permute.xlu0 %2923
        %2925 = vrot.lane.b32.xlu0 %v1389, 28
        %v2926 = vpop.permute.xlu0 %2925
        %2927 = vrot.lane.b32.xlu0 %v1401, 28
        %v2928 = vpop.permute.xlu0 %2927
        %2929 = vrot.lane.b32.xlu0 %v1413, 28
        %v2930 = vpop.permute.xlu0 %2929
        %2931 = vrot.lane.b32.xlu0 %v1425, 28
        %v2932 = vpop.permute.xlu0 %2931
        %2933 = vrot.lane.b32.xlu0 %v1437, 28
        %v2934 = vpop.permute.xlu0 %2933
        %2935 = vrot.lane.b32.xlu0 %v1449, 28
        %v2936 = vpop.permute.xlu0 %2935
        %2937 = vrot.lane.b32.xlu0 %v1461, 28
        %v2938 = vpop.permute.xlu0 %2937
        %2939 = vrot.lane.b32.xlu0 %v1473, 28
        %v2940 = vpop.permute.xlu0 %2939
        %2941 = vrot.lane.b32.xlu0 %v1485, 28
        %v2942 = vpop.permute.xlu0 %2941
        %2943 = vrot.lane.b32.xlu0 %v1497, 28
        %v2944 = vpop.permute.xlu0 %2943
        %2945 = vrot.lane.b32.xlu0 %v1509, 28
        %v2946 = vpop.permute.xlu0 %2945
        %2947 = vrot.lane.b32.xlu0 %v1521, 28
        %v2948 = vpop.permute.xlu0 %2947
        %2949 = vrot.lane.b32.xlu0 %v1533, 28
        %v2950 = vpop.permute.xlu0 %2949
        %2951 = vrot.lane.b32.xlu0 %v2370, 28
        %v2952 = vpop.permute.xlu0 %2951
        %2953 = vrot.lane.b32.xlu0 %v2846, 28
        %v2954 = vpop.permute.xlu0 %2953
        %2955 = vrot.lane.b32.xlu0 %v1569, 28
        %v2956 = vpop.permute.xlu0 %2955
        %2957 = vrot.lane.b32.xlu0 %v1581, 28
        %v2958 = vpop.permute.xlu0 %2957
        %2959 = vrot.lane.b32.xlu0 %v1593, 28
        %v2960 = vpop.permute.xlu0 %2959
        %2961 = vrot.lane.b32.xlu0 %v1605, 28
        %v2962 = vpop.permute.xlu0 %2961
        %2963 = vrot.lane.b32.xlu0 %v1617, 28
        %v2964 = vpop.permute.xlu0 %2963
        %2965 = vrot.lane.b32.xlu0 %v1629, 28
        %v2966 = vpop.permute.xlu0 %2965
        %2967 = vrot.lane.b32.xlu0 %v1641, 28
        %v2968 = vpop.permute.xlu0 %2967
        %2969 = vrot.lane.b32.xlu0 %v1653, 28
        %v2970 = vpop.permute.xlu0 %2969
        %2971 = vrot.lane.b32.xlu0 %v1665, 28
        %v2972 = vpop.permute.xlu0 %2971
        %2973 = vrot.lane.b32.xlu0 %v1677, 28
        %v2974 = vpop.permute.xlu0 %2973
        %2975 = vrot.lane.b32.xlu0 %v1689, 28
        %v2976 = vpop.permute.xlu0 %2975
        %2977 = vrot.lane.b32.xlu0 %v1701, 28
        %v2978 = vpop.permute.xlu0 %2977
        %2979 = vrot.lane.b32.xlu0 %v1713, 28
        %v2980 = vpop.permute.xlu0 %2979
        %2981 = vrot.lane.b32.xlu0 %v1725, 28
        %v2982 = vpop.permute.xlu0 %2981
        %2983 = vrot.lane.b32.xlu0 %v2382, 28
        %v2984 = vpop.permute.xlu0 %2983
        %2985 = vrot.lane.b32.xlu0 %v2858, 28
        %v2986 = vpop.permute.xlu0 %2985
        %v2987 = vrot.slane %v2667, 1
        %v2988 = vrot.slane %v2807, 1
        %v2989 = vsel %vm1854, %v2987, %v2988
        %v2990 = vrot.slane %v2668, 1
        %v2991 = vrot.slane %v2808, 1
        %v2992 = vsel %vm1854, %v2990, %v2991
        %v2993 = vrot.slane %v2669, 1
        %v2994 = vrot.slane %v2809, 1
        %v2995 = vsel %vm1854, %v2993, %v2994
        %v2996 = vrot.slane %v2670, 1
        %v2997 = vrot.slane %v2810, 1
        %v2998 = vsel %vm1854, %v2996, %v2997
        %2999 = vrot.lane.b32.xlu0 %v1863, 32
        %v3000 = vpop.permute.xlu0 %2999
        %3001 = vrot.lane.b32.xlu0 %v1866, 32
        %v3002 = vpop.permute.xlu0 %3001
        %3003 = vrot.lane.b32.xlu0 %v1869, 32
        %v3004 = vpop.permute.xlu0 %3003
        %3005 = vrot.lane.b32.xlu0 %v1872, 32
        %v3006 = vpop.permute.xlu0 %3005
        %3007 = vrot.lane.b32.xlu0 %v1875, 32
        %v3008 = vpop.permute.xlu0 %3007
        %3009 = vrot.lane.b32.xlu0 %v1878, 32
        %v3010 = vpop.permute.xlu0 %3009
        %3011 = vrot.lane.b32.xlu0 %v1881, 32
        %v3012 = vpop.permute.xlu0 %3011
        %3013 = vrot.lane.b32.xlu0 %v1884, 32
        %v3014 = vpop.permute.xlu0 %3013
        %3015 = vrot.lane.b32.xlu0 %v1887, 32
        %v3016 = vpop.permute.xlu0 %3015
        %3017 = vrot.lane.b32.xlu0 %v1890, 32
        %v3018 = vpop.permute.xlu0 %3017
        %3019 = vrot.lane.b32.xlu0 %v1893, 32
        %v3020 = vpop.permute.xlu0 %3019
        %3021 = vrot.lane.b32.xlu0 %v1896, 32
        %v3022 = vpop.permute.xlu0 %3021
        %3023 = vrot.lane.b32.xlu0 %v1899, 32
        %v3024 = vpop.permute.xlu0 %3023
        %3025 = vrot.lane.b32.xlu0 %v1902, 32
        %v3026 = vpop.permute.xlu0 %3025
        %3027 = vrot.lane.b32.xlu0 %v2513, 32
        %v3028 = vpop.permute.xlu0 %3027
        %3029 = vrot.lane.b32.xlu0 %v2989, 32
        %v3030 = vpop.permute.xlu0 %3029
        %3031 = vrot.lane.b32.xlu0 %v1911, 32
        %v3032 = vpop.permute.xlu0 %3031
        %3033 = vrot.lane.b32.xlu0 %v1914, 32
        %v3034 = vpop.permute.xlu0 %3033
        %3035 = vrot.lane.b32.xlu0 %v1917, 32
        %v3036 = vpop.permute.xlu0 %3035
        %3037 = vrot.lane.b32.xlu0 %v1920, 32
        %v3038 = vpop.permute.xlu0 %3037
        %3039 = vrot.lane.b32.xlu0 %v1923, 32
        %v3040 = vpop.permute.xlu0 %3039
        %3041 = vrot.lane.b32.xlu0 %v1926, 32
        %v3042 = vpop.permute.xlu0 %3041
        %3043 = vrot.lane.b32.xlu0 %v1929, 32
        %v3044 = vpop.permute.xlu0 %3043
        %3045 = vrot.lane.b32.xlu0 %v1932, 32
        %v3046 = vpop.permute.xlu0 %3045
        %3047 = vrot.lane.b32.xlu0 %v1935, 32
        %v3048 = vpop.permute.xlu0 %3047
        %3049 = vrot.lane.b32.xlu0 %v1938, 32
        %v3050 = vpop.permute.xlu0 %3049
        %3051 = vrot.lane.b32.xlu0 %v1941, 32
        %v3052 = vpop.permute.xlu0 %3051
        %3053 = vrot.lane.b32.xlu0 %v1944, 32
        %v3054 = vpop.permute.xlu0 %3053
        %3055 = vrot.lane.b32.xlu0 %v1947, 32
        %v3056 = vpop.permute.xlu0 %3055
        %3057 = vrot.lane.b32.xlu0 %v1950, 32
        %v3058 = vpop.permute.xlu0 %3057
        %3059 = vrot.lane.b32.xlu0 %v2516, 32
        %v3060 = vpop.permute.xlu0 %3059
        %3061 = vrot.lane.b32.xlu0 %v2992, 32
        %v3062 = vpop.permute.xlu0 %3061
        %3063 = vrot.lane.b32.xlu0 %v1959, 32
        %v3064 = vpop.permute.xlu0 %3063
        %3065 = vrot.lane.b32.xlu0 %v1962, 32
        %v3066 = vpop.permute.xlu0 %3065
        %3067 = vrot.lane.b32.xlu0 %v1965, 32
        %v3068 = vpop.permute.xlu0 %3067
        %3069 = vrot.lane.b32.xlu0 %v1968, 32
        %v3070 = vpop.permute.xlu0 %3069
        %3071 = vrot.lane.b32.xlu0 %v1971, 32
        %v3072 = vpop.permute.xlu0 %3071
        %3073 = vrot.lane.b32.xlu0 %v1974, 32
        %v3074 = vpop.permute.xlu0 %3073
        %3075 = vrot.lane.b32.xlu0 %v1977, 32
        %v3076 = vpop.permute.xlu0 %3075
        %3077 = vrot.lane.b32.xlu0 %v1980, 32
        %v3078 = vpop.permute.xlu0 %3077
        %3079 = vrot.lane.b32.xlu0 %v1983, 32
        %v3080 = vpop.permute.xlu0 %3079
        %3081 = vrot.lane.b32.xlu0 %v1986, 32
        %v3082 = vpop.permute.xlu0 %3081
        %3083 = vrot.lane.b32.xlu0 %v1989, 32
        %v3084 = vpop.permute.xlu0 %3083
        %3085 = vrot.lane.b32.xlu0 %v1992, 32
        %v3086 = vpop.permute.xlu0 %3085
        %3087 = vrot.lane.b32.xlu0 %v1995, 32
        %v3088 = vpop.permute.xlu0 %3087
        %3089 = vrot.lane.b32.xlu0 %v1998, 32
        %v3090 = vpop.permute.xlu0 %3089
        %3091 = vrot.lane.b32.xlu0 %v2519, 32
        %v3092 = vpop.permute.xlu0 %3091
        %3093 = vrot.lane.b32.xlu0 %v2995, 32
        %v3094 = vpop.permute.xlu0 %3093
        %3095 = vrot.lane.b32.xlu0 %v2007, 32
        %v3096 = vpop.permute.xlu0 %3095
        %3097 = vrot.lane.b32.xlu0 %v2010, 32
        %v3098 = vpop.permute.xlu0 %3097
        %3099 = vrot.lane.b32.xlu0 %v2013, 32
        %v3100 = vpop.permute.xlu0 %3099
        %3101 = vrot.lane.b32.xlu0 %v2016, 32
        %v3102 = vpop.permute.xlu0 %3101
        %3103 = vrot.lane.b32.xlu0 %v2019, 32
        %v3104 = vpop.permute.xlu0 %3103
        %3105 = vrot.lane.b32.xlu0 %v2022, 32
        %v3106 = vpop.permute.xlu0 %3105
        %3107 = vrot.lane.b32.xlu0 %v2025, 32
        %v3108 = vpop.permute.xlu0 %3107
        %3109 = vrot.lane.b32.xlu0 %v2028, 32
        %v3110 = vpop.permute.xlu0 %3109
        %3111 = vrot.lane.b32.xlu0 %v2031, 32
        %v3112 = vpop.permute.xlu0 %3111
        %3113 = vrot.lane.b32.xlu0 %v2034, 32
        %v3114 = vpop.permute.xlu0 %3113
        %3115 = vrot.lane.b32.xlu0 %v2037, 32
        %v3116 = vpop.permute.xlu0 %3115
        %3117 = vrot.lane.b32.xlu0 %v2040, 32
        %v3118 = vpop.permute.xlu0 %3117
        %3119 = vrot.lane.b32.xlu0 %v2043, 32
        %v3120 = vpop.permute.xlu0 %3119
        %3121 = vrot.lane.b32.xlu0 %v2046, 32
        %v3122 = vpop.permute.xlu0 %3121
        %3123 = vrot.lane.b32.xlu0 %v2522, 32
        %v3124 = vpop.permute.xlu0 %3123
        %3125 = vrot.lane.b32.xlu0 %v2998, 32
        %v3126 = vpop.permute.xlu0 %3125
        %vm3127 = vcmask 31744
        %v3129 = vsel %vm3127, %v701, %v1727
        %v3131 = vsel %vm3127, %v702, %v1729
        %v3133 = vsel %vm3127, %v703, %v1731
        %v3135 = vsel %vm3127, %v704, %v1733
        %v3137 = vsel %vm3127, %v705, %v1735
        %v3139 = vsel %vm3127, %v706, %v1737
        %v3141 = vsel %vm3127, %v707, %v1739
        %v3143 = vsel %vm3127, %v708, %v1741
        %v3145 = vsel %vm3127, %v709, %v1743
        %v3147 = vsel %vm3127, %v710, %v1745
        %v3149 = vsel %vm3127, %v711, %v1747
        %v3151 = vsel %vm3127, %v712, %v1749
        %v3153 = vsel %vm3127, %v713, %v1751
        %v3155 = vsel %vm3127, %v714, %v1753
        %v3157 = vsel %vm3127, %v715, %v1755
        %v3159 = vsel %vm3127, %v716, %v1757
        %v3161 = vsel %vm3127, %v717, %v1759
        %v3163 = vsel %vm3127, %v718, %v1761
        %v3165 = vsel %vm3127, %v719, %v1763
        %v3167 = vsel %vm3127, %v720, %v1765
        %v3169 = vsel %vm3127, %v721, %v1767
        %v3171 = vsel %vm3127, %v722, %v1769
        %v3173 = vsel %vm3127, %v723, %v1771
        %v3175 = vsel %vm3127, %v724, %v1773
        %v3177 = vsel %vm3127, %v725, %v1775
        %v3179 = vsel %vm3127, %v726, %v1777
        %v3181 = vsel %vm3127, %v727, %v1779
        %v3183 = vsel %vm3127, %v728, %v1781
        %v3185 = vsel %vm3127, %v729, %v1783
        %v3187 = vsel %vm3127, %v730, %v1785
        %v3189 = vsel %vm3127, %v731, %v1787
        %v3191 = vsel %vm3127, %v732, %v1789
        %v3193 = vsel %vm3127, %v733, %v1791
        %v3195 = vsel %vm3127, %v734, %v1793
        %v3197 = vsel %vm3127, %v735, %v1795
        %v3199 = vsel %vm3127, %v736, %v1797
        %v3201 = vsel %vm3127, %v737, %v1799
        %v3203 = vsel %vm3127, %v738, %v1801
        %v3205 = vsel %vm3127, %v739, %v1803
        %v3207 = vsel %vm3127, %v740, %v1805
        %v3209 = vsel %vm3127, %v741, %v1807
        %v3211 = vsel %vm3127, %v742, %v1809
        %v3213 = vsel %vm3127, %v743, %v1811
        %v3215 = vsel %vm3127, %v744, %v1813
        %v3217 = vsel %vm3127, %v745, %v1815
        %v3219 = vsel %vm3127, %v746, %v1817
        %v3221 = vsel %vm3127, %v747, %v1819
        %v3223 = vsel %vm3127, %v748, %v1821
        %v3225 = vsel %vm3127, %v749, %v1823
        %v3227 = vsel %vm3127, %v750, %v1825
        %v3229 = vsel %vm3127, %v751, %v1827
        %v3231 = vsel %vm3127, %v752, %v1829
        %v3233 = vsel %vm3127, %v753, %v1831
        %v3235 = vsel %vm3127, %v754, %v1833
        %v3237 = vsel %vm3127, %v755, %v1835
        %v3239 = vsel %vm3127, %v756, %v1837
        %v3241 = vsel %vm3127, %v757, %v1839
        %v3243 = vsel %vm3127, %v758, %v1841
        %v3245 = vsel %vm3127, %v759, %v1843
        %v3247 = vsel %vm3127, %v760, %v1845
        %v3249 = vsel %vm3127, %v761, %v1847
        %v3251 = vsel %vm3127, %v762, %v1849
        %v3253 = vsel %vm3127, %v763, %v1851
        %v3255 = vsel %vm3127, %v764, %v1853
        %vm3256 = vcmask 64512
        %v3258 = vsel %vm3256, %v3129, %v2048
        %v3260 = vsel %vm3256, %v3131, %v2050
        %v3262 = vsel %vm3256, %v3133, %v2052
        %v3264 = vsel %vm3256, %v3135, %v2054
        %v3266 = vsel %vm3256, %v3137, %v2056
        %v3268 = vsel %vm3256, %v3139, %v2058
        %v3270 = vsel %vm3256, %v3141, %v2060
        %v3272 = vsel %vm3256, %v3143, %v2062
        %v3274 = vsel %vm3256, %v3145, %v2064
        %v3276 = vsel %vm3256, %v3147, %v2066
        %v3278 = vsel %vm3256, %v3149, %v2068
        %v3280 = vsel %vm3256, %v3151, %v2070
        %v3282 = vsel %vm3256, %v3153, %v2072
        %v3284 = vsel %vm3256, %v3155, %v2074
        %v3286 = vsel %vm3256, %v3157, %v2076
        %v3288 = vsel %vm3256, %v3159, %v2078
        %v3290 = vsel %vm3256, %v3161, %v2080
        %v3292 = vsel %vm3256, %v3163, %v2082
        %v3294 = vsel %vm3256, %v3165, %v2084
        %v3296 = vsel %vm3256, %v3167, %v2086
        %v3298 = vsel %vm3256, %v3169, %v2088
        %v3300 = vsel %vm3256, %v3171, %v2090
        %v3302 = vsel %vm3256, %v3173, %v2092
        %v3304 = vsel %vm3256, %v3175, %v2094
        %v3306 = vsel %vm3256, %v3177, %v2096
        %v3308 = vsel %vm3256, %v3179, %v2098
        %v3310 = vsel %vm3256, %v3181, %v2100
        %v3312 = vsel %vm3256, %v3183, %v2102
        %v3314 = vsel %vm3256, %v3185, %v2104
        %v3316 = vsel %vm3256, %v3187, %v2106
        %v3318 = vsel %vm3256, %v3189, %v2108
        %v3320 = vsel %vm3256, %v3191, %v2110
        %v3322 = vsel %vm3256, %v3193, %v2112
        %v3324 = vsel %vm3256, %v3195, %v2114
        %v3326 = vsel %vm3256, %v3197, %v2116
        %v3328 = vsel %vm3256, %v3199, %v2118
        %v3330 = vsel %vm3256, %v3201, %v2120
        %v3332 = vsel %vm3256, %v3203, %v2122
        %v3334 = vsel %vm3256, %v3205, %v2124
        %v3336 = vsel %vm3256, %v3207, %v2126
        %v3338 = vsel %vm3256, %v3209, %v2128
        %v3340 = vsel %vm3256, %v3211, %v2130
        %v3342 = vsel %vm3256, %v3213, %v2132
        %v3344 = vsel %vm3256, %v3215, %v2134
        %v3346 = vsel %vm3256, %v3217, %v2136
        %v3348 = vsel %vm3256, %v3219, %v2138
        %v3350 = vsel %vm3256, %v3221, %v2140
        %v3352 = vsel %vm3256, %v3223, %v2142
        %v3354 = vsel %vm3256, %v3225, %v2144
        %v3356 = vsel %vm3256, %v3227, %v2146
        %v3358 = vsel %vm3256, %v3229, %v2148
        %v3360 = vsel %vm3256, %v3231, %v2150
        %v3362 = vsel %vm3256, %v3233, %v2152
        %v3364 = vsel %vm3256, %v3235, %v2154
        %v3366 = vsel %vm3256, %v3237, %v2156
        %v3368 = vsel %vm3256, %v3239, %v2158
        %v3370 = vsel %vm3256, %v3241, %v2160
        %v3372 = vsel %vm3256, %v3243, %v2162
        %v3374 = vsel %vm3256, %v3245, %v2164
        %v3376 = vsel %vm3256, %v3247, %v2166
        %v3378 = vsel %vm3256, %v3249, %v2168
        %v3380 = vsel %vm3256, %v3251, %v2170
        %v3382 = vsel %vm3256, %v3253, %v2172
        %v3384 = vsel %vm3256, %v3255, %v2174
        %vm3385 = vcmask 97280
        %v3387 = vsel %vm3385, %v3258, %v2196
        %v3389 = vsel %vm3385, %v3260, %v2198
        %v3391 = vsel %vm3385, %v3262, %v2200
        %v3393 = vsel %vm3385, %v3264, %v2202
        %v3395 = vsel %vm3385, %v3266, %v2204
        %v3397 = vsel %vm3385, %v3268, %v2206
        %v3399 = vsel %vm3385, %v3270, %v2208
        %v3401 = vsel %vm3385, %v3272, %v2210
        %v3403 = vsel %vm3385, %v3274, %v2212
        %v3405 = vsel %vm3385, %v3276, %v2214
        %v3407 = vsel %vm3385, %v3278, %v2216
        %v3409 = vsel %vm3385, %v3280, %v2218
        %v3411 = vsel %vm3385, %v3282, %v2220
        %v3413 = vsel %vm3385, %v3284, %v2222
        %v3415 = vsel %vm3385, %v3286, %v2224
        %v3417 = vsel %vm3385, %v3288, %v2226
        %v3419 = vsel %vm3385, %v3290, %v2228
        %v3421 = vsel %vm3385, %v3292, %v2230
        %v3423 = vsel %vm3385, %v3294, %v2232
        %v3425 = vsel %vm3385, %v3296, %v2234
        %v3427 = vsel %vm3385, %v3298, %v2236
        %v3429 = vsel %vm3385, %v3300, %v2238
        %v3431 = vsel %vm3385, %v3302, %v2240
        %v3433 = vsel %vm3385, %v3304, %v2242
        %v3435 = vsel %vm3385, %v3306, %v2244
        %v3437 = vsel %vm3385, %v3308, %v2246
        %v3439 = vsel %vm3385, %v3310, %v2248
        %v3441 = vsel %vm3385, %v3312, %v2250
        %v3443 = vsel %vm3385, %v3314, %v2252
        %v3445 = vsel %vm3385, %v3316, %v2254
        %v3447 = vsel %vm3385, %v3318, %v2256
        %v3449 = vsel %vm3385, %v3320, %v2258
        %v3451 = vsel %vm3385, %v3322, %v2260
        %v3453 = vsel %vm3385, %v3324, %v2262
        %v3455 = vsel %vm3385, %v3326, %v2264
        %v3457 = vsel %vm3385, %v3328, %v2266
        %v3459 = vsel %vm3385, %v3330, %v2268
        %v3461 = vsel %vm3385, %v3332, %v2270
        %v3463 = vsel %vm3385, %v3334, %v2272
        %v3465 = vsel %vm3385, %v3336, %v2274
        %v3467 = vsel %vm3385, %v3338, %v2276
        %v3469 = vsel %vm3385, %v3340, %v2278
        %v3471 = vsel %vm3385, %v3342, %v2280
        %v3473 = vsel %vm3385, %v3344, %v2282
        %v3475 = vsel %vm3385, %v3346, %v2284
        %v3477 = vsel %vm3385, %v3348, %v2286
        %v3479 = vsel %vm3385, %v3350, %v2288
        %v3481 = vsel %vm3385, %v3352, %v2290
        %v3483 = vsel %vm3385, %v3354, %v2292
        %v3485 = vsel %vm3385, %v3356, %v2294
        %v3487 = vsel %vm3385, %v3358, %v2296
        %v3489 = vsel %vm3385, %v3360, %v2298
        %v3491 = vsel %vm3385, %v3362, %v2300
        %v3493 = vsel %vm3385, %v3364, %v2302
        %v3495 = vsel %vm3385, %v3366, %v2304
        %v3497 = vsel %vm3385, %v3368, %v2306
        %v3499 = vsel %vm3385, %v3370, %v2308
        %v3501 = vsel %vm3385, %v3372, %v2310
        %v3503 = vsel %vm3385, %v3374, %v2312
        %v3505 = vsel %vm3385, %v3376, %v2314
        %v3507 = vsel %vm3385, %v3378, %v2316
        %v3509 = vsel %vm3385, %v3380, %v2318
        %v3511 = vsel %vm3385, %v3382, %v2320
        %v3513 = vsel %vm3385, %v3384, %v2322
        %vm3514 = vcmask 130048
        %v3516 = vsel %vm3514, %v3387, %v2384
        %v3518 = vsel %vm3514, %v3389, %v2386
        %v3520 = vsel %vm3514, %v3391, %v2388
        %v3522 = vsel %vm3514, %v3393, %v2390
        %v3524 = vsel %vm3514, %v3395, %v2392
        %v3526 = vsel %vm3514, %v3397, %v2394
        %v3528 = vsel %vm3514, %v3399, %v2396
        %v3530 = vsel %vm3514, %v3401, %v2398
        %v3532 = vsel %vm3514, %v3403, %v2400
        %v3534 = vsel %vm3514, %v3405, %v2402
        %v3536 = vsel %vm3514, %v3407, %v2404
        %v3538 = vsel %vm3514, %v3409, %v2406
        %v3540 = vsel %vm3514, %v3411, %v2408
        %v3542 = vsel %vm3514, %v3413, %v2410
        %v3544 = vsel %vm3514, %v3415, %v2412
        %v3546 = vsel %vm3514, %v3417, %v2414
        %v3548 = vsel %vm3514, %v3419, %v2416
        %v3550 = vsel %vm3514, %v3421, %v2418
        %v3552 = vsel %vm3514, %v3423, %v2420
        %v3554 = vsel %vm3514, %v3425, %v2422
        %v3556 = vsel %vm3514, %v3427, %v2424
        %v3558 = vsel %vm3514, %v3429, %v2426
        %v3560 = vsel %vm3514, %v3431, %v2428
        %v3562 = vsel %vm3514, %v3433, %v2430
        %v3564 = vsel %vm3514, %v3435, %v2432
        %v3566 = vsel %vm3514, %v3437, %v2434
        %v3568 = vsel %vm3514, %v3439, %v2436
        %v3570 = vsel %vm3514, %v3441, %v2438
        %v3572 = vsel %vm3514, %v3443, %v2440
        %v3574 = vsel %vm3514, %v3445, %v2442
        %v3576 = vsel %vm3514, %v3447, %v2444
        %v3578 = vsel %vm3514, %v3449, %v2446
        %v3580 = vsel %vm3514, %v3451, %v2448
        %v3582 = vsel %vm3514, %v3453, %v2450
        %v3584 = vsel %vm3514, %v3455, %v2452
        %v3586 = vsel %vm3514, %v3457, %v2454
        %v3588 = vsel %vm3514, %v3459, %v2456
        %v3590 = vsel %vm3514, %v3461, %v2458
        %v3592 = vsel %vm3514, %v3463, %v2460
        %v3594 = vsel %vm3514, %v3465, %v2462
        %v3596 = vsel %vm3514, %v3467, %v2464
        %v3598 = vsel %vm3514, %v3469, %v2466
        %v3600 = vsel %vm3514, %v3471, %v2468
        %v3602 = vsel %vm3514, %v3473, %v2470
        %v3604 = vsel %vm3514, %v3475, %v2472
        %v3606 = vsel %vm3514, %v3477, %v2474
        %v3608 = vsel %vm3514, %v3479, %v2476
        %v3610 = vsel %vm3514, %v3481, %v2478
        %v3612 = vsel %vm3514, %v3483, %v2480
        %v3614 = vsel %vm3514, %v3485, %v2482
        %v3616 = vsel %vm3514, %v3487, %v2484
        %v3618 = vsel %vm3514, %v3489, %v2486
        %v3620 = vsel %vm3514, %v3491, %v2488
        %v3622 = vsel %vm3514, %v3493, %v2490
        %v3624 = vsel %vm3514, %v3495, %v2492
        %v3626 = vsel %vm3514, %v3497, %v2494
        %v3628 = vsel %vm3514, %v3499, %v2496
        %v3630 = vsel %vm3514, %v3501, %v2498
        %v3632 = vsel %vm3514, %v3503, %v2500
        %v3634 = vsel %vm3514, %v3505, %v2502
        %v3636 = vsel %vm3514, %v3507, %v2504
        %v3638 = vsel %vm3514, %v3509, %v2506
        %v3640 = vsel %vm3514, %v3511, %v2508
        %v3642 = vsel %vm3514, %v3513, %v2510
        %vm3643 = vcmask 162816
        %v3645 = vsel %vm3643, %v3516, %v2524
        %v3647 = vsel %vm3643, %v3518, %v2526
        %v3649 = vsel %vm3643, %v3520, %v2528
        %v3651 = vsel %vm3643, %v3522, %v2530
        %v3653 = vsel %vm3643, %v3524, %v2532
        %v3655 = vsel %vm3643, %v3526, %v2534
        %v3657 = vsel %vm3643, %v3528, %v2536
        %v3659 = vsel %vm3643, %v3530, %v2538
        %v3661 = vsel %vm3643, %v3532, %v2540
        %v3663 = vsel %vm3643, %v3534, %v2542
        %v3665 = vsel %vm3643, %v3536, %v2544
        %v3667 = vsel %vm3643, %v3538, %v2546
        %v3669 = vsel %vm3643, %v3540, %v2548
        %v3671 = vsel %vm3643, %v3542, %v2550
        %v3673 = vsel %vm3643, %v3544, %v2552
        %v3675 = vsel %vm3643, %v3546, %v2554
        %v3677 = vsel %vm3643, %v3548, %v2556
        %v3679 = vsel %vm3643, %v3550, %v2558
        %v3681 = vsel %vm3643, %v3552, %v2560
        %v3683 = vsel %vm3643, %v3554, %v2562
        %v3685 = vsel %vm3643, %v3556, %v2564
        %v3687 = vsel %vm3643, %v3558, %v2566
        %v3689 = vsel %vm3643, %v3560, %v2568
        %v3691 = vsel %vm3643, %v3562, %v2570
        %v3693 = vsel %vm3643, %v3564, %v2572
        %v3695 = vsel %vm3643, %v3566, %v2574
        %v3697 = vsel %vm3643, %v3568, %v2576
        %v3699 = vsel %vm3643, %v3570, %v2578
        %v3701 = vsel %vm3643, %v3572, %v2580
        %v3703 = vsel %vm3643, %v3574, %v2582
        %v3705 = vsel %vm3643, %v3576, %v2584
        %v3707 = vsel %vm3643, %v3578, %v2586
        %v3709 = vsel %vm3643, %v3580, %v2588
        %v3711 = vsel %vm3643, %v3582, %v2590
        %v3713 = vsel %vm3643, %v3584, %v2592
        %v3715 = vsel %vm3643, %v3586, %v2594
        %v3717 = vsel %vm3643, %v3588, %v2596
        %v3719 = vsel %vm3643, %v3590, %v2598
        %v3721 = vsel %vm3643, %v3592, %v2600
        %v3723 = vsel %vm3643, %v3594, %v2602
        %v3725 = vsel %vm3643, %v3596, %v2604
        %v3727 = vsel %vm3643, %v3598, %v2606
        %v3729 = vsel %vm3643, %v3600, %v2608
        %v3731 = vsel %vm3643, %v3602, %v2610
        %v3733 = vsel %vm3643, %v3604, %v2612
        %v3735 = vsel %vm3643, %v3606, %v2614
        %v3737 = vsel %vm3643, %v3608, %v2616
        %v3739 = vsel %vm3643, %v3610, %v2618
        %v3741 = vsel %vm3643, %v3612, %v2620
        %v3743 = vsel %vm3643, %v3614, %v2622
        %v3745 = vsel %vm3643, %v3616, %v2624
        %v3747 = vsel %vm3643, %v3618, %v2626
        %v3749 = vsel %vm3643, %v3620, %v2628
        %v3751 = vsel %vm3643, %v3622, %v2630
        %v3753 = vsel %vm3643, %v3624, %v2632
        %v3755 = vsel %vm3643, %v3626, %v2634
        %v3757 = vsel %vm3643, %v3628, %v2636
        %v3759 = vsel %vm3643, %v3630, %v2638
        %v3761 = vsel %vm3643, %v3632, %v2640
        %v3763 = vsel %vm3643, %v3634, %v2642
        %v3765 = vsel %vm3643, %v3636, %v2644
        %v3767 = vsel %vm3643, %v3638, %v2646
        %v3769 = vsel %vm3643, %v3640, %v2648
        %v3771 = vsel %vm3643, %v3642, %v2650
        %vm3772 = vcmask 195584
        %v3774 = vsel %vm3772, %v3645, %v2672
        %v3776 = vsel %vm3772, %v3647, %v2674
        %v3778 = vsel %vm3772, %v3649, %v2676
        %v3780 = vsel %vm3772, %v3651, %v2678
        %v3782 = vsel %vm3772, %v3653, %v2680
        %v3784 = vsel %vm3772, %v3655, %v2682
        %v3786 = vsel %vm3772, %v3657, %v2684
        %v3788 = vsel %vm3772, %v3659, %v2686
        %v3790 = vsel %vm3772, %v3661, %v2688
        %v3792 = vsel %vm3772, %v3663, %v2690
        %v3794 = vsel %vm3772, %v3665, %v2692
        %v3796 = vsel %vm3772, %v3667, %v2694
        %v3798 = vsel %vm3772, %v3669, %v2696
        %v3800 = vsel %vm3772, %v3671, %v2698
        %v3802 = vsel %vm3772, %v3673, %v2700
        %v3804 = vsel %vm3772, %v3675, %v2702
        %v3806 = vsel %vm3772, %v3677, %v2704
        %v3808 = vsel %vm3772, %v3679, %v2706
        %v3810 = vsel %vm3772, %v3681, %v2708
        %v3812 = vsel %vm3772, %v3683, %v2710
        %v3814 = vsel %vm3772, %v3685, %v2712
        %v3816 = vsel %vm3772, %v3687, %v2714
        %v3818 = vsel %vm3772, %v3689, %v2716
        %v3820 = vsel %vm3772, %v3691, %v2718
        %v3822 = vsel %vm3772, %v3693, %v2720
        %v3824 = vsel %vm3772, %v3695, %v2722
        %v3826 = vsel %vm3772, %v3697, %v2724
        %v3828 = vsel %vm3772, %v3699, %v2726
        %v3830 = vsel %vm3772, %v3701, %v2728
        %v3832 = vsel %vm3772, %v3703, %v2730
        %v3834 = vsel %vm3772, %v3705, %v2732
        %v3836 = vsel %vm3772, %v3707, %v2734
        %v3838 = vsel %vm3772, %v3709, %v2736
        %v3840 = vsel %vm3772, %v3711, %v2738
        %v3842 = vsel %vm3772, %v3713, %v2740
        %v3844 = vsel %vm3772, %v3715, %v2742
        %v3846 = vsel %vm3772, %v3717, %v2744
        %v3848 = vsel %vm3772, %v3719, %v2746
        %v3850 = vsel %vm3772, %v3721, %v2748
        %v3852 = vsel %vm3772, %v3723, %v2750
        %v3854 = vsel %vm3772, %v3725, %v2752
        %v3856 = vsel %vm3772, %v3727, %v2754
        %v3858 = vsel %vm3772, %v3729, %v2756
        %v3860 = vsel %vm3772, %v3731, %v2758
        %v3862 = vsel %vm3772, %v3733, %v2760
        %v3864 = vsel %vm3772, %v3735, %v2762
        %v3866 = vsel %vm3772, %v3737, %v2764
        %v3868 = vsel %vm3772, %v3739, %v2766
        %v3870 = vsel %vm3772, %v3741, %v2768
        %v3872 = vsel %vm3772, %v3743, %v2770
        %v3874 = vsel %vm3772, %v3745, %v2772
        %v3876 = vsel %vm3772, %v3747, %v2774
        %v3878 = vsel %vm3772, %v3749, %v2776
        %v3880 = vsel %vm3772, %v3751, %v2778
        %v3882 = vsel %vm3772, %v3753, %v2780
        %v3884 = vsel %vm3772, %v3755, %v2782
        %v3886 = vsel %vm3772, %v3757, %v2784
        %v3888 = vsel %vm3772, %v3759, %v2786
        %v3890 = vsel %vm3772, %v3761, %v2788
        %v3892 = vsel %vm3772, %v3763, %v2790
        %v3894 = vsel %vm3772, %v3765, %v2792
        %v3896 = vsel %vm3772, %v3767, %v2794
        %v3898 = vsel %vm3772, %v3769, %v2796
        %v3900 = vsel %vm3772, %v3771, %v2798
        %vm3901 = vcmask 228352
        %v3903 = vsel %vm3901, %v3774, %v2860
        %v3905 = vsel %vm3901, %v3776, %v2862
        %v3907 = vsel %vm3901, %v3778, %v2864
        %v3909 = vsel %vm3901, %v3780, %v2866
        %v3911 = vsel %vm3901, %v3782, %v2868
        %v3913 = vsel %vm3901, %v3784, %v2870
        %v3915 = vsel %vm3901, %v3786, %v2872
        %v3917 = vsel %vm3901, %v3788, %v2874
        %v3919 = vsel %vm3901, %v3790, %v2876
        %v3921 = vsel %vm3901, %v3792, %v2878
        %v3923 = vsel %vm3901, %v3794, %v2880
        %v3925 = vsel %vm3901, %v3796, %v2882
        %v3927 = vsel %vm3901, %v3798, %v2884
        %v3929 = vsel %vm3901, %v3800, %v2886
        %v3931 = vsel %vm3901, %v3802, %v2888
        %v3933 = vsel %vm3901, %v3804, %v2890
        %v3935 = vsel %vm3901, %v3806, %v2892
        %v3937 = vsel %vm3901, %v3808, %v2894
        %v3939 = vsel %vm3901, %v3810, %v2896
        %v3941 = vsel %vm3901, %v3812, %v2898
        %v3943 = vsel %vm3901, %v3814, %v2900
        %v3945 = vsel %vm3901, %v3816, %v2902
        %v3947 = vsel %vm3901, %v3818, %v2904
        %v3949 = vsel %vm3901, %v3820, %v2906
        %v3951 = vsel %vm3901, %v3822, %v2908
        %v3953 = vsel %vm3901, %v3824, %v2910
        %v3955 = vsel %vm3901, %v3826, %v2912
        %v3957 = vsel %vm3901, %v3828, %v2914
        %v3959 = vsel %vm3901, %v3830, %v2916
        %v3961 = vsel %vm3901, %v3832, %v2918
        %v3963 = vsel %vm3901, %v3834, %v2920
        %v3965 = vsel %vm3901, %v3836, %v2922
        %v3967 = vsel %vm3901, %v3838, %v2924
        %v3969 = vsel %vm3901, %v3840, %v2926
        %v3971 = vsel %vm3901, %v3842, %v2928
        %v3973 = vsel %vm3901, %v3844, %v2930
        %v3975 = vsel %vm3901, %v3846, %v2932
        %v3977 = vsel %vm3901, %v3848, %v2934
        %v3979 = vsel %vm3901, %v3850, %v2936
        %v3981 = vsel %vm3901, %v3852, %v2938
        %v3983 = vsel %vm3901, %v3854, %v2940
        %v3985 = vsel %vm3901, %v3856, %v2942
        %v3987 = vsel %vm3901, %v3858, %v2944
        %v3989 = vsel %vm3901, %v3860, %v2946
        %v3991 = vsel %vm3901, %v3862, %v2948
        %v3993 = vsel %vm3901, %v3864, %v2950
        %v3995 = vsel %vm3901, %v3866, %v2952
        %v3997 = vsel %vm3901, %v3868, %v2954
        %v3999 = vsel %vm3901, %v3870, %v2956
        %v4001 = vsel %vm3901, %v3872, %v2958
        %v4003 = vsel %vm3901, %v3874, %v2960
        %v4005 = vsel %vm3901, %v3876, %v2962
        %v4007 = vsel %vm3901, %v3878, %v2964
        %v4009 = vsel %vm3901, %v3880, %v2966
        %v4011 = vsel %vm3901, %v3882, %v2968
        %v4013 = vsel %vm3901, %v3884, %v2970
        %v4015 = vsel %vm3901, %v3886, %v2972
        %v4017 = vsel %vm3901, %v3888, %v2974
        %v4019 = vsel %vm3901, %v3890, %v2976
        %v4021 = vsel %vm3901, %v3892, %v2978
        %v4023 = vsel %vm3901, %v3894, %v2980
        %v4025 = vsel %vm3901, %v3896, %v2982
        %v4027 = vsel %vm3901, %v3898, %v2984
        %v4029 = vsel %vm3901, %v3900, %v2986
        %vm4030 = vcmask 261120
        %v4032 = vsel %vm4030, %v3903, %v3000
        %v4034 = vsel %vm4030, %v3905, %v3002
        %v4036 = vsel %vm4030, %v3907, %v3004
        %v4038 = vsel %vm4030, %v3909, %v3006
        %v4040 = vsel %vm4030, %v3911, %v3008
        %v4042 = vsel %vm4030, %v3913, %v3010
        %v4044 = vsel %vm4030, %v3915, %v3012
        %v4046 = vsel %vm4030, %v3917, %v3014
        %v4048 = vsel %vm4030, %v3919, %v3016
        %v4050 = vsel %vm4030, %v3921, %v3018
        %v4052 = vsel %vm4030, %v3923, %v3020
        %v4054 = vsel %vm4030, %v3925, %v3022
        %v4056 = vsel %vm4030, %v3927, %v3024
        %v4058 = vsel %vm4030, %v3929, %v3026
        %v4060 = vsel %vm4030, %v3931, %v3028
        %v4062 = vsel %vm4030, %v3933, %v3030
        %v4064 = vsel %vm4030, %v3935, %v3032
        %v4066 = vsel %vm4030, %v3937, %v3034
        %v4068 = vsel %vm4030, %v3939, %v3036
        %v4070 = vsel %vm4030, %v3941, %v3038
        %v4072 = vsel %vm4030, %v3943, %v3040
        %v4074 = vsel %vm4030, %v3945, %v3042
        %v4076 = vsel %vm4030, %v3947, %v3044
        %v4078 = vsel %vm4030, %v3949, %v3046
        %v4080 = vsel %vm4030, %v3951, %v3048
        %v4082 = vsel %vm4030, %v3953, %v3050
        %v4084 = vsel %vm4030, %v3955, %v3052
        %v4086 = vsel %vm4030, %v3957, %v3054
        %v4088 = vsel %vm4030, %v3959, %v3056
        %v4090 = vsel %vm4030, %v3961, %v3058
        %v4092 = vsel %vm4030, %v3963, %v3060
        %v4094 = vsel %vm4030, %v3965, %v3062
        %v4096 = vsel %vm4030, %v3967, %v3064
        %v4098 = vsel %vm4030, %v3969, %v3066
        %v4100 = vsel %vm4030, %v3971, %v3068
        %v4102 = vsel %vm4030, %v3973, %v3070
        %v4104 = vsel %vm4030, %v3975, %v3072
        %v4106 = vsel %vm4030, %v3977, %v3074
        %v4108 = vsel %vm4030, %v3979, %v3076
        %v4110 = vsel %vm4030, %v3981, %v3078
        %v4112 = vsel %vm4030, %v3983, %v3080
        %v4114 = vsel %vm4030, %v3985, %v3082
        %v4116 = vsel %vm4030, %v3987, %v3084
        %v4118 = vsel %vm4030, %v3989, %v3086
        %v4120 = vsel %vm4030, %v3991, %v3088
        %v4122 = vsel %vm4030, %v3993, %v3090
        %v4124 = vsel %vm4030, %v3995, %v3092
        %v4126 = vsel %vm4030, %v3997, %v3094
        %v4128 = vsel %vm4030, %v3999, %v3096
        %v4130 = vsel %vm4030, %v4001, %v3098
        %v4132 = vsel %vm4030, %v4003, %v3100
        %v4134 = vsel %vm4030, %v4005, %v3102
        %v4136 = vsel %vm4030, %v4007, %v3104
        %v4138 = vsel %vm4030, %v4009, %v3106
        %v4140 = vsel %vm4030, %v4011, %v3108
        %v4142 = vsel %vm4030, %v4013, %v3110
        %v4144 = vsel %vm4030, %v4015, %v3112
        %v4146 = vsel %vm4030, %v4017, %v3114
        %v4148 = vsel %vm4030, %v4019, %v3116
        %v4150 = vsel %vm4030, %v4021, %v3118
        %v4152 = vsel %vm4030, %v4023, %v3120
        %v4154 = vsel %vm4030, %v4025, %v3122
        %v4156 = vsel %vm4030, %v4027, %v3124
        %v4158 = vsel %vm4030, %v4029, %v3126
        %v4159 = vld [vmem:[%s1] sm:$0xf]
        %v4160 = vld [vmem:[%s1 + $0x4] sm:$0xf]
        %v4161 = vld [vmem:[%s1 + $0x8] sm:$0xf]
        %v4162 = vld [vmem:[%s1 + $0xc] sm:$0xf]
        %v4163 = vld [vmem:[%s1 + $0x10] sm:$0x3]
        %v4164 = vld [vmem:[%s2] sm:$0x1]
        %v4166 = vlaneseq
        %v4167 = vshrl.u32 %v4166, 7
        %v4168 = vsub.s32 0, %v4167
        %v4169 = vrot.slane %v4164, %v4168
        %v4176 = vunpack.c.l.b16 %v4159
        %v4177 = vunpack.c.l.b16 %v4160
        %v4178 = vunpack.c.l.b16 %v4161
        %v4179 = vunpack.c.l.b16 %v4162
        %v4180 = vunpack.c.l.b16 %v4163
        %v4181 = vpack.c.b16 %v4177, %v4176
        %v4182 = vpack.c.b16 %v4179, %v4178
        %v4183 = vpack.c.b16 %v4180, %v4180
        %vm4186 = vcmask 293888
        %v4187 = vsel %vm4186, %v4032, 0
        %v4189 = vsel %vm4186, %v4034, 0
        %v4191 = vsel %vm4186, %v4036, 0
        %v4193 = vsel %vm4186, %v4038, 0
        %v4195 = vsel %vm4186, %v4040, 0
        %v4197 = vsel %vm4186, %v4042, 0
        %v4199 = vsel %vm4186, %v4044, 0
        %v4201 = vsel %vm4186, %v4046, 0
        %v4203 = vsel %vm4186, %v4048, 0
        %v4205 = vsel %vm4186, %v4050, 0
        %v4207 = vsel %vm4186, %v4052, 0
        %v4209 = vsel %vm4186, %v4054, 0
        %v4211 = vsel %vm4186, %v4056, 0
        %v4213 = vsel %vm4186, %v4058, 0
        %v4215 = vsel %vm4186, %v4060, 0
        %v4217 = vsel %vm4186, %v4062, 0
        %v4219 = vsel %vm4186, %v4064, 0
        %v4221 = vsel %vm4186, %v4066, 0
        %v4223 = vsel %vm4186, %v4068, 0
        %v4225 = vsel %vm4186, %v4070, 0
        %v4227 = vsel %vm4186, %v4072, 0
        %v4229 = vsel %vm4186, %v4074, 0
        %v4231 = vsel %vm4186, %v4076, 0
        %v4233 = vsel %vm4186, %v4078, 0
        %v4235 = vsel %vm4186, %v4080, 0
        %v4237 = vsel %vm4186, %v4082, 0
        %v4239 = vsel %vm4186, %v4084, 0
        %v4241 = vsel %vm4186, %v4086, 0
        %v4243 = vsel %vm4186, %v4088, 0
        %v4245 = vsel %vm4186, %v4090, 0
        %v4247 = vsel %vm4186, %v4092, 0
        %v4249 = vsel %vm4186, %v4094, 0
        %v4251 = vsel %vm4186, %v4096, 0
        %v4253 = vsel %vm4186, %v4098, 0
        %v4255 = vsel %vm4186, %v4100, 0
        %v4257 = vsel %vm4186, %v4102, 0
        %v4259 = vsel %vm4186, %v4104, 0
        %v4261 = vsel %vm4186, %v4106, 0
        %v4263 = vsel %vm4186, %v4108, 0
        %v4265 = vsel %vm4186, %v4110, 0
        %v4267 = vsel %vm4186, %v4112, 0
        %v4269 = vsel %vm4186, %v4114, 0
        %v4271 = vsel %vm4186, %v4116, 0
        %v4273 = vsel %vm4186, %v4118, 0
        %v4275 = vsel %vm4186, %v4120, 0
        %v4277 = vsel %vm4186, %v4122, 0
        %v4279 = vsel %vm4186, %v4124, 0
        %v4281 = vsel %vm4186, %v4126, 0
        %v4283 = vsel %vm4186, %v4128, 0
        %v4285 = vsel %vm4186, %v4130, 0
        %v4287 = vsel %vm4186, %v4132, 0
        %v4289 = vsel %vm4186, %v4134, 0
        %v4291 = vsel %vm4186, %v4136, 0
        %v4293 = vsel %vm4186, %v4138, 0
        %v4295 = vsel %vm4186, %v4140, 0
        %v4297 = vsel %vm4186, %v4142, 0
        %v4299 = vsel %vm4186, %v4144, 0
        %v4301 = vsel %vm4186, %v4146, 0
        %v4303 = vsel %vm4186, %v4148, 0
        %v4305 = vsel %vm4186, %v4150, 0
        %v4307 = vsel %vm4186, %v4152, 0
        %v4309 = vsel %vm4186, %v4154, 0
        %v4311 = vsel %vm4186, %v4156, 0
        %v4313 = vsel %vm4186, %v4158, 0
        %vm4315 = vcmask 1041408
        %v4317 = vsel %vm4315, %v4183, 0
        %4319 = vmatprep.subr.bf16.mxu0 0
        %4320 = vmatpush1.bf16.msra.mxu0 0
        %4321 = vmatprep.subr.bf16.mxu0 0
        %4322 = vmatpush1.bf16.msra.mxu0 0
        %4323 = vmatprep.subr.bf16.mxu0 0
        %4324 = vmatpush1.bf16.msra.mxu0 0
        %4325 = vmatprep.subr.bf16.mxu0 0
        %4326 = vmatpush1.bf16.msra.mxu0 0
        %4327 = vmatprep.subr.bf16.mxu0 0
        %4328 = vmatpush1.bf16.msra.mxu0 0
        %4329 = vmatprep.subr.bf16.mxu0 0
        %4330 = vmatpush1.bf16.msra.mxu0 %v4317
        %4331 = vmatprep.subr.bf16.mxu0 0
        %4332 = vmatpush1.bf16.msra.mxu0 %v4182
        %4333 = vmatprep.subr.bf16.mxu0 0
        %4334 = vmatpush1.bf16.msra.mxu0 %v4181
        %4335 = vmatprep.subr.bf16.mxu0 0
        %4336 = vmatpush2.bf16.msra.mxu0 0
        %4337 = vmatprep.subr.bf16.mxu0 0
        %4338 = vmatpush2.bf16.msra.mxu0 0
        %4339 = vmatprep.subr.bf16.mxu0 0
        %4340 = vmatpush2.bf16.msra.mxu0 0
        %4341 = vmatprep.subr.bf16.mxu0 0
        %4342 = vmatpush2.bf16.msra.mxu0 0
        %4343 = vmatprep.subr.bf16.mxu0 0
        %4344 = vmatpush2.bf16.msra.mxu0 0
        %4345 = vmatprep.subr.bf16.mxu0 0
        %4346 = vmatpush2.bf16.msra.mxu0 0
        %4347 = vmatprep.subr.bf16.mxu0 0
        %4348 = vmatpush2.bf16.msra.mxu0 0
        %4349 = vmatprep.subr.bf16.mxu0 0
        %4350 = vmatpush2.bf16.msra.mxu0 0
        %4351 = vmatprep.mubr.bf16.mxu0 0
        %4352 = vmatmul.mubr.bf16.gmra.mxu0 %v4187
        %v4353 = vpop.f32.mrf.mxu0
        %v4354 = vadd.f32 %v4169, %v4353
        %v4355 = vpop.f32.mrf.mxu0
        %v4356 = vpop.f32.mrf.mxu0
        %v4357 = vadd.f32 %v4169, %v4356
        %v4358 = vpop.f32.mrf.mxu0
        %4359 = vmatprep.mubr.bf16.mxu0 0
        %4360 = vmatmul.mubr.bf16.gmra.mxu0 %v4189
        %v4361 = vpop.f32.mrf.mxu0
        %v4362 = vadd.f32 %v4169, %v4361
        %v4363 = vpop.f32.mrf.mxu0
        %v4364 = vpop.f32.mrf.mxu0
        %v4365 = vadd.f32 %v4169, %v4364
        %v4366 = vpop.f32.mrf.mxu0
        %4367 = vmatprep.mubr.bf16.mxu0 0
        %4368 = vmatmul.mubr.bf16.gmra.mxu0 %v4191
        %v4369 = vpop.f32.mrf.mxu0
        %v4370 = vadd.f32 %v4169, %v4369
        %v4371 = vpop.f32.mrf.mxu0
        %v4372 = vpop.f32.mrf.mxu0
        %v4373 = vadd.f32 %v4169, %v4372
        %v4374 = vpop.f32.mrf.mxu0
        %4375 = vmatprep.mubr.bf16.mxu0 0
        %4376 = vmatmul.mubr.bf16.gmra.mxu0 %v4193
        %v4377 = vpop.f32.mrf.mxu0
        %v4378 = vadd.f32 %v4169, %v4377
        %v4379 = vpop.f32.mrf.mxu0
        %v4380 = vpop.f32.mrf.mxu0
        %v4381 = vadd.f32 %v4169, %v4380
        %v4382 = vpop.f32.mrf.mxu0
        %4383 = vmatprep.mubr.bf16.mxu0 0
        %4384 = vmatmul.mubr.bf16.gmra.mxu0 %v4195
        %v4385 = vpop.f32.mrf.mxu0
        %v4386 = vadd.f32 %v4169, %v4385
        %v4387 = vpop.f32.mrf.mxu0
        %v4388 = vpop.f32.mrf.mxu0
        %v4389 = vadd.f32 %v4169, %v4388
        %v4390 = vpop.f32.mrf.mxu0
        %4391 = vmatprep.mubr.bf16.mxu0 0
        %4392 = vmatmul.mubr.bf16.gmra.mxu0 %v4197
        %v4393 = vpop.f32.mrf.mxu0
        %v4394 = vadd.f32 %v4169, %v4393
        %v4395 = vpop.f32.mrf.mxu0
        %v4396 = vpop.f32.mrf.mxu0
        %v4397 = vadd.f32 %v4169, %v4396
        %v4398 = vpop.f32.mrf.mxu0
        %4399 = vmatprep.mubr.bf16.mxu0 0
        %4400 = vmatmul.mubr.bf16.gmra.mxu0 %v4199
        %v4401 = vpop.f32.mrf.mxu0
        %v4402 = vadd.f32 %v4169, %v4401
        %v4403 = vpop.f32.mrf.mxu0
        %v4404 = vpop.f32.mrf.mxu0
        %v4405 = vadd.f32 %v4169, %v4404
        %v4406 = vpop.f32.mrf.mxu0
        %4407 = vmatprep.mubr.bf16.mxu0 0
        %4408 = vmatmul.mubr.bf16.gmra.mxu0 %v4201
        %v4409 = vpop.f32.mrf.mxu0
        %v4410 = vadd.f32 %v4169, %v4409
        %v4411 = vpop.f32.mrf.mxu0
        %v4412 = vpop.f32.mrf.mxu0
        %v4413 = vadd.f32 %v4169, %v4412
        %v4414 = vpop.f32.mrf.mxu0
        %4415 = vmatprep.mubr.bf16.mxu0 0
        %4416 = vmatmul.mubr.bf16.gmra.mxu0 %v4203
        %v4417 = vpop.f32.mrf.mxu0
        %v4418 = vadd.f32 %v4169, %v4417
        %v4419 = vpop.f32.mrf.mxu0
        %v4420 = vpop.f32.mrf.mxu0
        %v4421 = vadd.f32 %v4169, %v4420
        %v4422 = vpop.f32.mrf.mxu0
        %4423 = vmatprep.mubr.bf16.mxu0 0
        %4424 = vmatmul.mubr.bf16.gmra.mxu0 %v4205
        %v4425 = vpop.f32.mrf.mxu0
        %v4426 = vadd.f32 %v4169, %v4425
        %v4427 = vpop.f32.mrf.mxu0
        %v4428 = vpop.f32.mrf.mxu0
        %v4429 = vadd.f32 %v4169, %v4428
        %v4430 = vpop.f32.mrf.mxu0
        %4431 = vmatprep.mubr.bf16.mxu0 0
        %4432 = vmatmul.mubr.bf16.gmra.mxu0 %v4207
        %v4433 = vpop.f32.mrf.mxu0
        %v4434 = vadd.f32 %v4169, %v4433
        %v4435 = vpop.f32.mrf.mxu0
        %v4436 = vpop.f32.mrf.mxu0
        %v4437 = vadd.f32 %v4169, %v4436
        %v4438 = vpop.f32.mrf.mxu0
        %4439 = vmatprep.mubr.bf16.mxu0 0
        %4440 = vmatmul.mubr.bf16.gmra.mxu0 %v4209
        %v4441 = vpop.f32.mrf.mxu0
        %v4442 = vadd.f32 %v4169, %v4441
        %v4443 = vpop.f32.mrf.mxu0
        %v4444 = vpop.f32.mrf.mxu0
        %v4445 = vadd.f32 %v4169, %v4444
        %v4446 = vpop.f32.mrf.mxu0
        %4447 = vmatprep.mubr.bf16.mxu0 0
        %4448 = vmatmul.mubr.bf16.gmra.mxu0 %v4211
        %v4449 = vpop.f32.mrf.mxu0
        %v4450 = vadd.f32 %v4169, %v4449
        %v4451 = vpop.f32.mrf.mxu0
        %v4452 = vpop.f32.mrf.mxu0
        %v4453 = vadd.f32 %v4169, %v4452
        %v4454 = vpop.f32.mrf.mxu0
        %4455 = vmatprep.mubr.bf16.mxu0 0
        %4456 = vmatmul.mubr.bf16.gmra.mxu0 %v4213
        %v4457 = vpop.f32.mrf.mxu0
        %v4458 = vadd.f32 %v4169, %v4457
        %v4459 = vpop.f32.mrf.mxu0
        %v4460 = vpop.f32.mrf.mxu0
        %v4461 = vadd.f32 %v4169, %v4460
        %v4462 = vpop.f32.mrf.mxu0
        %4463 = vmatprep.mubr.bf16.mxu0 0
        %4464 = vmatmul.mubr.bf16.gmra.mxu0 %v4215
        %v4465 = vpop.f32.mrf.mxu0
        %v4466 = vadd.f32 %v4169, %v4465
        %v4467 = vpop.f32.mrf.mxu0
        %v4468 = vpop.f32.mrf.mxu0
        %v4469 = vadd.f32 %v4169, %v4468
        %v4470 = vpop.f32.mrf.mxu0
        %4471 = vmatprep.mubr.bf16.mxu0 0
        %4472 = vmatmul.mubr.bf16.gmra.mxu0 %v4217
        %v4473 = vpop.f32.mrf.mxu0
        %v4474 = vadd.f32 %v4169, %v4473
        %v4475 = vpop.f32.mrf.mxu0
        %v4476 = vpop.f32.mrf.mxu0
        %v4477 = vadd.f32 %v4169, %v4476
        %v4478 = vpop.f32.mrf.mxu0
        %4479 = vmatprep.mubr.bf16.mxu0 0
        %4480 = vmatmul.mubr.bf16.gmra.mxu0 %v4219
        %v4481 = vpop.f32.mrf.mxu0
        %v4482 = vadd.f32 %v4169, %v4481
        %v4483 = vpop.f32.mrf.mxu0
        %v4484 = vpop.f32.mrf.mxu0
        %v4485 = vadd.f32 %v4169, %v4484
        %v4486 = vpop.f32.mrf.mxu0
        %4487 = vmatprep.mubr.bf16.mxu0 0
        %4488 = vmatmul.mubr.bf16.gmra.mxu0 %v4221
        %v4489 = vpop.f32.mrf.mxu0
        %v4490 = vadd.f32 %v4169, %v4489
        %v4491 = vpop.f32.mrf.mxu0
        %v4492 = vpop.f32.mrf.mxu0
        %v4493 = vadd.f32 %v4169, %v4492
        %v4494 = vpop.f32.mrf.mxu0
        %4495 = vmatprep.mubr.bf16.mxu0 0
        %4496 = vmatmul.mubr.bf16.gmra.mxu0 %v4223
        %v4497 = vpop.f32.mrf.mxu0
        %v4498 = vadd.f32 %v4169, %v4497
        %v4499 = vpop.f32.mrf.mxu0
        %v4500 = vpop.f32.mrf.mxu0
        %v4501 = vadd.f32 %v4169, %v4500
        %v4502 = vpop.f32.mrf.mxu0
        %4503 = vmatprep.mubr.bf16.mxu0 0
        %4504 = vmatmul.mubr.bf16.gmra.mxu0 %v4225
        %v4505 = vpop.f32.mrf.mxu0
        %v4506 = vadd.f32 %v4169, %v4505
        %v4507 = vpop.f32.mrf.mxu0
        %v4508 = vpop.f32.mrf.mxu0
        %v4509 = vadd.f32 %v4169, %v4508
        %v4510 = vpop.f32.mrf.mxu0
        %4511 = vmatprep.mubr.bf16.mxu0 0
        %4512 = vmatmul.mubr.bf16.gmra.mxu0 %v4227
        %v4513 = vpop.f32.mrf.mxu0
        %v4514 = vadd.f32 %v4169, %v4513
        %v4515 = vpop.f32.mrf.mxu0
        %v4516 = vpop.f32.mrf.mxu0
        %v4517 = vadd.f32 %v4169, %v4516
        %v4518 = vpop.f32.mrf.mxu0
        %4519 = vmatprep.mubr.bf16.mxu0 0
        %4520 = vmatmul.mubr.bf16.gmra.mxu0 %v4229
        %v4521 = vpop.f32.mrf.mxu0
        %v4522 = vadd.f32 %v4169, %v4521
        %v4523 = vpop.f32.mrf.mxu0
        %v4524 = vpop.f32.mrf.mxu0
        %v4525 = vadd.f32 %v4169, %v4524
        %v4526 = vpop.f32.mrf.mxu0
        %4527 = vmatprep.mubr.bf16.mxu0 0
        %4528 = vmatmul.mubr.bf16.gmra.mxu0 %v4231
        %v4529 = vpop.f32.mrf.mxu0
        %v4530 = vadd.f32 %v4169, %v4529
        %v4531 = vpop.f32.mrf.mxu0
        %v4532 = vpop.f32.mrf.mxu0
        %v4533 = vadd.f32 %v4169, %v4532
        %v4534 = vpop.f32.mrf.mxu0
        %4535 = vmatprep.mubr.bf16.mxu0 0
        %4536 = vmatmul.mubr.bf16.gmra.mxu0 %v4233
        %v4537 = vpop.f32.mrf.mxu0
        %v4538 = vadd.f32 %v4169, %v4537
        %v4539 = vpop.f32.mrf.mxu0
        %v4540 = vpop.f32.mrf.mxu0
        %v4541 = vadd.f32 %v4169, %v4540
        %v4542 = vpop.f32.mrf.mxu0
        %4543 = vmatprep.mubr.bf16.mxu0 0
        %4544 = vmatmul.mubr.bf16.gmra.mxu0 %v4235
        %v4545 = vpop.f32.mrf.mxu0
        %v4546 = vadd.f32 %v4169, %v4545
        %v4547 = vpop.f32.mrf.mxu0
        %v4548 = vpop.f32.mrf.mxu0
        %v4549 = vadd.f32 %v4169, %v4548
        %v4550 = vpop.f32.mrf.mxu0
        %4551 = vmatprep.mubr.bf16.mxu0 0
        %4552 = vmatmul.mubr.bf16.gmra.mxu0 %v4237
        %v4553 = vpop.f32.mrf.mxu0
        %v4554 = vadd.f32 %v4169, %v4553
        %v4555 = vpop.f32.mrf.mxu0
        %v4556 = vpop.f32.mrf.mxu0
        %v4557 = vadd.f32 %v4169, %v4556
        %v4558 = vpop.f32.mrf.mxu0
        %4559 = vmatprep.mubr.bf16.mxu0 0
        %4560 = vmatmul.mubr.bf16.gmra.mxu0 %v4239
        %v4561 = vpop.f32.mrf.mxu0
        %v4562 = vadd.f32 %v4169, %v4561
        %v4563 = vpop.f32.mrf.mxu0
        %v4564 = vpop.f32.mrf.mxu0
        %v4565 = vadd.f32 %v4169, %v4564
        %v4566 = vpop.f32.mrf.mxu0
        %4567 = vmatprep.mubr.bf16.mxu0 0
        %4568 = vmatmul.mubr.bf16.gmra.mxu0 %v4241
        %v4569 = vpop.f32.mrf.mxu0
        %v4570 = vadd.f32 %v4169, %v4569
        %v4571 = vpop.f32.mrf.mxu0
        %v4572 = vpop.f32.mrf.mxu0
        %v4573 = vadd.f32 %v4169, %v4572
        %v4574 = vpop.f32.mrf.mxu0
        %4575 = vmatprep.mubr.bf16.mxu0 0
        %4576 = vmatmul.mubr.bf16.gmra.mxu0 %v4243
        %v4577 = vpop.f32.mrf.mxu0
        %v4578 = vadd.f32 %v4169, %v4577
        %v4579 = vpop.f32.mrf.mxu0
        %v4580 = vpop.f32.mrf.mxu0
        %v4581 = vadd.f32 %v4169, %v4580
        %v4582 = vpop.f32.mrf.mxu0
        %4583 = vmatprep.mubr.bf16.mxu0 0
        %4584 = vmatmul.mubr.bf16.gmra.mxu0 %v4245
        %v4585 = vpop.f32.mrf.mxu0
        %v4586 = vadd.f32 %v4169, %v4585
        %v4587 = vpop.f32.mrf.mxu0
        %v4588 = vpop.f32.mrf.mxu0
        %v4589 = vadd.f32 %v4169, %v4588
        %v4590 = vpop.f32.mrf.mxu0
        %4591 = vmatprep.mubr.bf16.mxu0 0
        %4592 = vmatmul.mubr.bf16.gmra.mxu0 %v4247
        %v4593 = vpop.f32.mrf.mxu0
        %v4594 = vadd.f32 %v4169, %v4593
        %v4595 = vpop.f32.mrf.mxu0
        %v4596 = vpop.f32.mrf.mxu0
        %v4597 = vadd.f32 %v4169, %v4596
        %v4598 = vpop.f32.mrf.mxu0
        %4599 = vmatprep.mubr.bf16.mxu0 0
        %4600 = vmatmul.mubr.bf16.gmra.mxu0 %v4249
        %v4601 = vpop.f32.mrf.mxu0
        %v4602 = vadd.f32 %v4169, %v4601
        %v4603 = vpop.f32.mrf.mxu0
        %v4604 = vpop.f32.mrf.mxu0
        %v4605 = vadd.f32 %v4169, %v4604
        %v4606 = vpop.f32.mrf.mxu0
        %4607 = vmatprep.mubr.bf16.mxu0 0
        %4608 = vmatmul.mubr.bf16.gmra.mxu0 %v4251
        %v4609 = vpop.f32.mrf.mxu0
        %v4610 = vadd.f32 %v4169, %v4609
        %v4611 = vpop.f32.mrf.mxu0
        %v4612 = vpop.f32.mrf.mxu0
        %v4613 = vadd.f32 %v4169, %v4612
        %v4614 = vpop.f32.mrf.mxu0
        %4615 = vmatprep.mubr.bf16.mxu0 0
        %4616 = vmatmul.mubr.bf16.gmra.mxu0 %v4253
        %v4617 = vpop.f32.mrf.mxu0
        %v4618 = vadd.f32 %v4169, %v4617
        %v4619 = vpop.f32.mrf.mxu0
        %v4620 = vpop.f32.mrf.mxu0
        %v4621 = vadd.f32 %v4169, %v4620
        %v4622 = vpop.f32.mrf.mxu0
        %4623 = vmatprep.mubr.bf16.mxu0 0
        %4624 = vmatmul.mubr.bf16.gmra.mxu0 %v4255
        %v4625 = vpop.f32.mrf.mxu0
        %v4626 = vadd.f32 %v4169, %v4625
        %v4627 = vpop.f32.mrf.mxu0
        %v4628 = vpop.f32.mrf.mxu0
        %v4629 = vadd.f32 %v4169, %v4628
        %v4630 = vpop.f32.mrf.mxu0
        %4631 = vmatprep.mubr.bf16.mxu0 0
        %4632 = vmatmul.mubr.bf16.gmra.mxu0 %v4257
        %v4633 = vpop.f32.mrf.mxu0
        %v4634 = vadd.f32 %v4169, %v4633
        %v4635 = vpop.f32.mrf.mxu0
        %v4636 = vpop.f32.mrf.mxu0
        %v4637 = vadd.f32 %v4169, %v4636
        %v4638 = vpop.f32.mrf.mxu0
        %4639 = vmatprep.mubr.bf16.mxu0 0
        %4640 = vmatmul.mubr.bf16.gmra.mxu0 %v4259
        %v4641 = vpop.f32.mrf.mxu0
        %v4642 = vadd.f32 %v4169, %v4641
        %v4643 = vpop.f32.mrf.mxu0
        %v4644 = vpop.f32.mrf.mxu0
        %v4645 = vadd.f32 %v4169, %v4644
        %v4646 = vpop.f32.mrf.mxu0
        %4647 = vmatprep.mubr.bf16.mxu0 0
        %4648 = vmatmul.mubr.bf16.gmra.mxu0 %v4261
        %v4649 = vpop.f32.mrf.mxu0
        %v4650 = vadd.f32 %v4169, %v4649
        %v4651 = vpop.f32.mrf.mxu0
        %v4652 = vpop.f32.mrf.mxu0
        %v4653 = vadd.f32 %v4169, %v4652
        %v4654 = vpop.f32.mrf.mxu0
        %4655 = vmatprep.mubr.bf16.mxu0 0
        %4656 = vmatmul.mubr.bf16.gmra.mxu0 %v4263
        %v4657 = vpop.f32.mrf.mxu0
        %v4658 = vadd.f32 %v4169, %v4657
        %v4659 = vpop.f32.mrf.mxu0
        %v4660 = vpop.f32.mrf.mxu0
        %v4661 = vadd.f32 %v4169, %v4660
        %v4662 = vpop.f32.mrf.mxu0
        %4663 = vmatprep.mubr.bf16.mxu0 0
        %4664 = vmatmul.mubr.bf16.gmra.mxu0 %v4265
        %v4665 = vpop.f32.mrf.mxu0
        %v4666 = vadd.f32 %v4169, %v4665
        %v4667 = vpop.f32.mrf.mxu0
        %v4668 = vpop.f32.mrf.mxu0
        %v4669 = vadd.f32 %v4169, %v4668
        %v4670 = vpop.f32.mrf.mxu0
        %4671 = vmatprep.mubr.bf16.mxu0 0
        %4672 = vmatmul.mubr.bf16.gmra.mxu0 %v4267
        %v4673 = vpop.f32.mrf.mxu0
        %v4674 = vadd.f32 %v4169, %v4673
        %v4675 = vpop.f32.mrf.mxu0
        %v4676 = vpop.f32.mrf.mxu0
        %v4677 = vadd.f32 %v4169, %v4676
        %v4678 = vpop.f32.mrf.mxu0
        %4679 = vmatprep.mubr.bf16.mxu0 0
        %4680 = vmatmul.mubr.bf16.gmra.mxu0 %v4269
        %v4681 = vpop.f32.mrf.mxu0
        %v4682 = vadd.f32 %v4169, %v4681
        %v4683 = vpop.f32.mrf.mxu0
        %v4684 = vpop.f32.mrf.mxu0
        %v4685 = vadd.f32 %v4169, %v4684
        %v4686 = vpop.f32.mrf.mxu0
        %4687 = vmatprep.mubr.bf16.mxu0 0
        %4688 = vmatmul.mubr.bf16.gmra.mxu0 %v4271
        %v4689 = vpop.f32.mrf.mxu0
        %v4690 = vadd.f32 %v4169, %v4689
        %v4691 = vpop.f32.mrf.mxu0
        %v4692 = vpop.f32.mrf.mxu0
        %v4693 = vadd.f32 %v4169, %v4692
        %v4694 = vpop.f32.mrf.mxu0
        %4695 = vmatprep.mubr.bf16.mxu0 0
        %4696 = vmatmul.mubr.bf16.gmra.mxu0 %v4273
        %v4697 = vpop.f32.mrf.mxu0
        %v4698 = vadd.f32 %v4169, %v4697
        %v4699 = vpop.f32.mrf.mxu0
        %v4700 = vpop.f32.mrf.mxu0
        %v4701 = vadd.f32 %v4169, %v4700
        %v4702 = vpop.f32.mrf.mxu0
        %4703 = vmatprep.mubr.bf16.mxu0 0
        %4704 = vmatmul.mubr.bf16.gmra.mxu0 %v4275
        %v4705 = vpop.f32.mrf.mxu0
        %v4706 = vadd.f32 %v4169, %v4705
        %v4707 = vpop.f32.mrf.mxu0
        %v4708 = vpop.f32.mrf.mxu0
        %v4709 = vadd.f32 %v4169, %v4708
        %v4710 = vpop.f32.mrf.mxu0
        %4711 = vmatprep.mubr.bf16.mxu0 0
        %4712 = vmatmul.mubr.bf16.gmra.mxu0 %v4277
        %v4713 = vpop.f32.mrf.mxu0
        %v4714 = vadd.f32 %v4169, %v4713
        %v4715 = vpop.f32.mrf.mxu0
        %v4716 = vpop.f32.mrf.mxu0
        %v4717 = vadd.f32 %v4169, %v4716
        %v4718 = vpop.f32.mrf.mxu0
        %4719 = vmatprep.mubr.bf16.mxu0 0
        %4720 = vmatmul.mubr.bf16.gmra.mxu0 %v4279
        %v4721 = vpop.f32.mrf.mxu0
        %v4722 = vadd.f32 %v4169, %v4721
        %v4723 = vpop.f32.mrf.mxu0
        %v4724 = vpop.f32.mrf.mxu0
        %v4725 = vadd.f32 %v4169, %v4724
        %v4726 = vpop.f32.mrf.mxu0
        %4727 = vmatprep.mubr.bf16.mxu0 0
        %4728 = vmatmul.mubr.bf16.gmra.mxu0 %v4281
        %v4729 = vpop.f32.mrf.mxu0
        %v4730 = vadd.f32 %v4169, %v4729
        %v4731 = vpop.f32.mrf.mxu0
        %v4732 = vpop.f32.mrf.mxu0
        %v4733 = vadd.f32 %v4169, %v4732
        %v4734 = vpop.f32.mrf.mxu0
        %4735 = vmatprep.mubr.bf16.mxu0 0
        %4736 = vmatmul.mubr.bf16.gmra.mxu0 %v4283
        %v4737 = vpop.f32.mrf.mxu0
        %v4738 = vadd.f32 %v4169, %v4737
        %v4739 = vpop.f32.mrf.mxu0
        %v4740 = vpop.f32.mrf.mxu0
        %v4741 = vadd.f32 %v4169, %v4740
        %v4742 = vpop.f32.mrf.mxu0
        %4743 = vmatprep.mubr.bf16.mxu0 0
        %4744 = vmatmul.mubr.bf16.gmra.mxu0 %v4285
        %v4745 = vpop.f32.mrf.mxu0
        %v4746 = vadd.f32 %v4169, %v4745
        %v4747 = vpop.f32.mrf.mxu0
        %v4748 = vpop.f32.mrf.mxu0
        %v4749 = vadd.f32 %v4169, %v4748
        %v4750 = vpop.f32.mrf.mxu0
        %4751 = vmatprep.mubr.bf16.mxu0 0
        %4752 = vmatmul.mubr.bf16.gmra.mxu0 %v4287
        %v4753 = vpop.f32.mrf.mxu0
        %v4754 = vadd.f32 %v4169, %v4753
        %v4755 = vpop.f32.mrf.mxu0
        %v4756 = vpop.f32.mrf.mxu0
        %v4757 = vadd.f32 %v4169, %v4756
        %v4758 = vpop.f32.mrf.mxu0
        %4759 = vmatprep.mubr.bf16.mxu0 0
        %4760 = vmatmul.mubr.bf16.gmra.mxu0 %v4289
        %v4761 = vpop.f32.mrf.mxu0
        %v4762 = vadd.f32 %v4169, %v4761
        %v4763 = vpop.f32.mrf.mxu0
        %v4764 = vpop.f32.mrf.mxu0
        %v4765 = vadd.f32 %v4169, %v4764
        %v4766 = vpop.f32.mrf.mxu0
        %4767 = vmatprep.mubr.bf16.mxu0 0
        %4768 = vmatmul.mubr.bf16.gmra.mxu0 %v4291
        %v4769 = vpop.f32.mrf.mxu0
        %v4770 = vadd.f32 %v4169, %v4769
        %v4771 = vpop.f32.mrf.mxu0
        %v4772 = vpop.f32.mrf.mxu0
        %v4773 = vadd.f32 %v4169, %v4772
        %v4774 = vpop.f32.mrf.mxu0
        %4775 = vmatprep.mubr.bf16.mxu0 0
        %4776 = vmatmul.mubr.bf16.gmra.mxu0 %v4293
        %v4777 = vpop.f32.mrf.mxu0
        %v4778 = vadd.f32 %v4169, %v4777
        %v4779 = vpop.f32.mrf.mxu0
        %v4780 = vpop.f32.mrf.mxu0
        %v4781 = vadd.f32 %v4169, %v4780
        %v4782 = vpop.f32.mrf.mxu0
        %4783 = vmatprep.mubr.bf16.mxu0 0
        %4784 = vmatmul.mubr.bf16.gmra.mxu0 %v4295
        %v4785 = vpop.f32.mrf.mxu0
        %v4786 = vadd.f32 %v4169, %v4785
        %v4787 = vpop.f32.mrf.mxu0
        %v4788 = vpop.f32.mrf.mxu0
        %v4789 = vadd.f32 %v4169, %v4788
        %v4790 = vpop.f32.mrf.mxu0
        %4791 = vmatprep.mubr.bf16.mxu0 0
        %4792 = vmatmul.mubr.bf16.gmra.mxu0 %v4297
        %v4793 = vpop.f32.mrf.mxu0
        %v4794 = vadd.f32 %v4169, %v4793
        %v4795 = vpop.f32.mrf.mxu0
        %v4796 = vpop.f32.mrf.mxu0
        %v4797 = vadd.f32 %v4169, %v4796
        %v4798 = vpop.f32.mrf.mxu0
        %4799 = vmatprep.mubr.bf16.mxu0 0
        %4800 = vmatmul.mubr.bf16.gmra.mxu0 %v4299
        %v4801 = vpop.f32.mrf.mxu0
        %v4802 = vadd.f32 %v4169, %v4801
        %v4803 = vpop.f32.mrf.mxu0
        %v4804 = vpop.f32.mrf.mxu0
        %v4805 = vadd.f32 %v4169, %v4804
        %v4806 = vpop.f32.mrf.mxu0
        %4807 = vmatprep.mubr.bf16.mxu0 0
        %4808 = vmatmul.mubr.bf16.gmra.mxu0 %v4301
        %v4809 = vpop.f32.mrf.mxu0
        %v4810 = vadd.f32 %v4169, %v4809
        %v4811 = vpop.f32.mrf.mxu0
        %v4812 = vpop.f32.mrf.mxu0
        %v4813 = vadd.f32 %v4169, %v4812
        %v4814 = vpop.f32.mrf.mxu0
        %4815 = vmatprep.mubr.bf16.mxu0 0
        %4816 = vmatmul.mubr.bf16.gmra.mxu0 %v4303
        %v4817 = vpop.f32.mrf.mxu0
        %v4818 = vadd.f32 %v4169, %v4817
        %v4819 = vpop.f32.mrf.mxu0
        %v4820 = vpop.f32.mrf.mxu0
        %v4821 = vadd.f32 %v4169, %v4820
        %v4822 = vpop.f32.mrf.mxu0
        %4823 = vmatprep.mubr.bf16.mxu0 0
        %4824 = vmatmul.mubr.bf16.gmra.mxu0 %v4305
        %v4825 = vpop.f32.mrf.mxu0
        %v4826 = vadd.f32 %v4169, %v4825
        %v4827 = vpop.f32.mrf.mxu0
        %v4828 = vpop.f32.mrf.mxu0
        %v4829 = vadd.f32 %v4169, %v4828
        %v4830 = vpop.f32.mrf.mxu0
        %4831 = vmatprep.mubr.bf16.mxu0 0
        %4832 = vmatmul.mubr.bf16.gmra.mxu0 %v4307
        %v4833 = vpop.f32.mrf.mxu0
        %v4834 = vadd.f32 %v4169, %v4833
        %v4835 = vpop.f32.mrf.mxu0
        %v4836 = vpop.f32.mrf.mxu0
        %v4837 = vadd.f32 %v4169, %v4836
        %v4838 = vpop.f32.mrf.mxu0
        %4839 = vmatprep.mubr.bf16.mxu0 0
        %4840 = vmatmul.mubr.bf16.gmra.mxu0 %v4309
        %v4841 = vpop.f32.mrf.mxu0
        %v4842 = vadd.f32 %v4169, %v4841
        %v4843 = vpop.f32.mrf.mxu0
        %v4844 = vpop.f32.mrf.mxu0
        %v4845 = vadd.f32 %v4169, %v4844
        %v4846 = vpop.f32.mrf.mxu0
        %4847 = vmatprep.mubr.bf16.mxu0 0
        %4848 = vmatmul.mubr.bf16.gmra.mxu0 %v4311
        %v4849 = vpop.f32.mrf.mxu0
        %v4850 = vadd.f32 %v4169, %v4849
        %v4851 = vpop.f32.mrf.mxu0
        %v4852 = vpop.f32.mrf.mxu0
        %v4853 = vadd.f32 %v4169, %v4852
        %v4854 = vpop.f32.mrf.mxu0
        %4855 = vmatprep.mubr.bf16.mxu0 0
        %4856 = vmatmul.mubr.bf16.gmra.mxu0 %v4313
        %v4857 = vpop.f32.mrf.mxu0
        %v4858 = vadd.f32 %v4169, %v4857
        %v4859 = vpop.f32.mrf.mxu0
        %v4860 = vpop.f32.mrf.mxu0
        %v4861 = vadd.f32 %v4169, %v4860
        %v4862 = vpop.f32.mrf.mxu0
        %4863 = vdwg.mxu0
        %v4864 = vmax.f32 %v4354, 0.0
        %v4865 = vmax.f32 %v4357, 0.0
        %v4866 = vmax.f32 %v4362, 0.0
        %v4867 = vmax.f32 %v4365, 0.0
        %v4868 = vmax.f32 %v4370, 0.0
        %v4869 = vmax.f32 %v4373, 0.0
        %v4870 = vmax.f32 %v4378, 0.0
        %v4871 = vmax.f32 %v4381, 0.0
        %v4872 = vmax.f32 %v4386, 0.0
        %v4873 = vmax.f32 %v4389, 0.0
        %v4874 = vmax.f32 %v4394, 0.0
        %v4875 = vmax.f32 %v4397, 0.0
        %v4876 = vmax.f32 %v4402, 0.0
        %v4877 = vmax.f32 %v4405, 0.0
        %v4878 = vmax.f32 %v4410, 0.0
        %v4879 = vmax.f32 %v4413, 0.0
        %v4880 = vmax.f32 %v4418, 0.0
        %v4881 = vmax.f32 %v4421, 0.0
        %v4882 = vmax.f32 %v4426, 0.0
        %v4883 = vmax.f32 %v4429, 0.0
        %v4884 = vmax.f32 %v4434, 0.0
        %v4885 = vmax.f32 %v4437, 0.0
        %v4886 = vmax.f32 %v4442, 0.0
        %v4887 = vmax.f32 %v4445, 0.0
        %v4888 = vmax.f32 %v4450, 0.0
        %v4889 = vmax.f32 %v4453, 0.0
        %v4890 = vmax.f32 %v4458, 0.0
        %v4891 = vmax.f32 %v4461, 0.0
        %v4892 = vmax.f32 %v4466, 0.0
        %v4893 = vmax.f32 %v4469, 0.0
        %v4894 = vmax.f32 %v4474, 0.0
        %v4895 = vmax.f32 %v4477, 0.0
        %v4896 = vmax.f32 %v4482, 0.0
        %v4897 = vmax.f32 %v4485, 0.0
        %v4898 = vmax.f32 %v4490, 0.0
        %v4899 = vmax.f32 %v4493, 0.0
        %v4900 = vmax.f32 %v4498, 0.0
        %v4901 = vmax.f32 %v4501, 0.0
        %v4902 = vmax.f32 %v4506, 0.0
        %v4903 = vmax.f32 %v4509, 0.0
        %v4904 = vmax.f32 %v4514, 0.0
        %v4905 = vmax.f32 %v4517, 0.0
        %v4906 = vmax.f32 %v4522, 0.0
        %v4907 = vmax.f32 %v4525, 0.0
        %v4908 = vmax.f32 %v4530, 0.0
        %v4909 = vmax.f32 %v4533, 0.0
        %v4910 = vmax.f32 %v4538, 0.0
        %v4911 = vmax.f32 %v4541, 0.0
        %v4912 = vmax.f32 %v4546, 0.0
        %v4913 = vmax.f32 %v4549, 0.0
        %v4914 = vmax.f32 %v4554, 0.0
        %v4915 = vmax.f32 %v4557, 0.0
        %v4916 = vmax.f32 %v4562, 0.0
        %v4917 = vmax.f32 %v4565, 0.0
        %v4918 = vmax.f32 %v4570, 0.0
        %v4919 = vmax.f32 %v4573, 0.0
        %v4920 = vmax.f32 %v4578, 0.0
        %v4921 = vmax.f32 %v4581, 0.0
        %v4922 = vmax.f32 %v4586, 0.0
        %v4923 = vmax.f32 %v4589, 0.0
        %v4924 = vmax.f32 %v4594, 0.0
        %v4925 = vmax.f32 %v4597, 0.0
        %v4926 = vmax.f32 %v4602, 0.0
        %v4927 = vmax.f32 %v4605, 0.0
        %v4928 = vmax.f32 %v4610, 0.0
        %v4929 = vmax.f32 %v4613, 0.0
        %v4930 = vmax.f32 %v4618, 0.0
        %v4931 = vmax.f32 %v4621, 0.0
        %v4932 = vmax.f32 %v4626, 0.0
        %v4933 = vmax.f32 %v4629, 0.0
        %v4934 = vmax.f32 %v4634, 0.0
        %v4935 = vmax.f32 %v4637, 0.0
        %v4936 = vmax.f32 %v4642, 0.0
        %v4937 = vmax.f32 %v4645, 0.0
        %v4938 = vmax.f32 %v4650, 0.0
        %v4939 = vmax.f32 %v4653, 0.0
        %v4940 = vmax.f32 %v4658, 0.0
        %v4941 = vmax.f32 %v4661, 0.0
        %v4942 = vmax.f32 %v4666, 0.0
        %v4943 = vmax.f32 %v4669, 0.0
        %v4944 = vmax.f32 %v4674, 0.0
        %v4945 = vmax.f32 %v4677, 0.0
        %v4946 = vmax.f32 %v4682, 0.0
        %v4947 = vmax.f32 %v4685, 0.0
        %v4948 = vmax.f32 %v4690, 0.0
        %v4949 = vmax.f32 %v4693, 0.0
        %v4950 = vmax.f32 %v4698, 0.0
        %v4951 = vmax.f32 %v4701, 0.0
        %v4952 = vmax.f32 %v4706, 0.0
        %v4953 = vmax.f32 %v4709, 0.0
        %v4954 = vmax.f32 %v4714, 0.0
        %v4955 = vmax.f32 %v4717, 0.0
        %v4956 = vmax.f32 %v4722, 0.0
        %v4957 = vmax.f32 %v4725, 0.0
        %v4958 = vmax.f32 %v4730, 0.0
        %v4959 = vmax.f32 %v4733, 0.0
        %v4960 = vmax.f32 %v4738, 0.0
        %v4961 = vmax.f32 %v4741, 0.0
        %v4962 = vmax.f32 %v4746, 0.0
        %v4963 = vmax.f32 %v4749, 0.0
        %v4964 = vmax.f32 %v4754, 0.0
        %v4965 = vmax.f32 %v4757, 0.0
        %v4966 = vmax.f32 %v4762, 0.0
        %v4967 = vmax.f32 %v4765, 0.0
        %v4968 = vmax.f32 %v4770, 0.0
        %v4969 = vmax.f32 %v4773, 0.0
        %v4970 = vmax.f32 %v4778, 0.0
        %v4971 = vmax.f32 %v4781, 0.0
        %v4972 = vmax.f32 %v4786, 0.0
        %v4973 = vmax.f32 %v4789, 0.0
        %v4974 = vmax.f32 %v4794, 0.0
        %v4975 = vmax.f32 %v4797, 0.0
        %v4976 = vmax.f32 %v4802, 0.0
        %v4977 = vmax.f32 %v4805, 0.0
        %v4978 = vmax.f32 %v4810, 0.0
        %v4979 = vmax.f32 %v4813, 0.0
        %v4980 = vmax.f32 %v4818, 0.0
        %v4981 = vmax.f32 %v4821, 0.0
        %v4982 = vmax.f32 %v4826, 0.0
        %v4983 = vmax.f32 %v4829, 0.0
        %v4984 = vmax.f32 %v4834, 0.0
        %v4985 = vmax.f32 %v4837, 0.0
        %v4986 = vmax.f32 %v4842, 0.0
        %v4987 = vmax.f32 %v4845, 0.0
        %v4988 = vmax.f32 %v4850, 0.0
        %v4989 = vmax.f32 %v4853, 0.0
        %v4990 = vmax.f32 %v4858, 0.0
        %v4991 = vmax.f32 %v4861, 0.0
        %v4992 = vsel %vm4030, %v4864, 0.0
        %v4993 = vsel %vm4030, %v4865, 0.0
        %v4994 = vadd.f32 %v4992, %v4993
        %v4995 = vsel %vm4030, %v4866, 0.0
        %v4996 = vadd.f32 %v4994, %v4995
        %v4997 = vsel %vm4030, %v4867, 0.0
        %v4998 = vadd.f32 %v4996, %v4997
        %v4999 = vsel %vm4030, %v4868, 0.0
        %v5000 = vadd.f32 %v4998, %v4999
        %v5001 = vsel %vm4030, %v4869, 0.0
        %v5002 = vadd.f32 %v5000, %v5001
        %v5003 = vsel %vm4030, %v4870, 0.0
        %v5004 = vadd.f32 %v5002, %v5003
        %v5005 = vsel %vm4030, %v4871, 0.0
        %v5006 = vadd.f32 %v5004, %v5005
        %v5007 = vsel %vm4030, %v4872, 0.0
        %v5008 = vadd.f32 %v5006, %v5007
        %v5009 = vsel %vm4030, %v4873, 0.0
        %v5010 = vadd.f32 %v5008, %v5009
        %v5011 = vsel %vm4030, %v4874, 0.0
        %v5012 = vadd.f32 %v5010, %v5011
        %v5013 = vsel %vm4030, %v4875, 0.0
        %v5014 = vadd.f32 %v5012, %v5013
        %v5015 = vsel %vm4030, %v4876, 0.0
        %v5016 = vadd.f32 %v5014, %v5015
        %v5017 = vsel %vm4030, %v4877, 0.0
        %v5018 = vadd.f32 %v5016, %v5017
        %v5019 = vsel %vm4030, %v4878, 0.0
        %v5020 = vadd.f32 %v5018, %v5019
        %v5021 = vsel %vm4030, %v4879, 0.0
        %v5022 = vadd.f32 %v5020, %v5021
        %v5023 = vsel %vm4030, %v4880, 0.0
        %v5024 = vadd.f32 %v5022, %v5023
        %v5025 = vsel %vm4030, %v4881, 0.0
        %v5026 = vadd.f32 %v5024, %v5025
        %v5027 = vsel %vm4030, %v4882, 0.0
        %v5028 = vadd.f32 %v5026, %v5027
        %v5029 = vsel %vm4030, %v4883, 0.0
        %v5030 = vadd.f32 %v5028, %v5029
        %v5031 = vsel %vm4030, %v4884, 0.0
        %v5032 = vadd.f32 %v5030, %v5031
        %v5033 = vsel %vm4030, %v4885, 0.0
        %v5034 = vadd.f32 %v5032, %v5033
        %v5035 = vsel %vm4030, %v4886, 0.0
        %v5036 = vadd.f32 %v5034, %v5035
        %v5037 = vsel %vm4030, %v4887, 0.0
        %v5038 = vadd.f32 %v5036, %v5037
        %v5039 = vsel %vm4030, %v4888, 0.0
        %v5040 = vadd.f32 %v5038, %v5039
        %v5041 = vsel %vm4030, %v4889, 0.0
        %v5042 = vadd.f32 %v5040, %v5041
        %v5043 = vsel %vm4030, %v4890, 0.0
        %v5044 = vadd.f32 %v5042, %v5043
        %v5045 = vsel %vm4030, %v4891, 0.0
        %v5046 = vadd.f32 %v5044, %v5045
        %v5047 = vsel %vm4030, %v4892, 0.0
        %v5048 = vadd.f32 %v5046, %v5047
        %v5049 = vsel %vm4030, %v4893, 0.0
        %v5050 = vadd.f32 %v5048, %v5049
        %v5051 = vsel %vm4030, %v4894, 0.0
        %v5052 = vadd.f32 %v5050, %v5051
        %v5053 = vsel %vm4030, %v4895, 0.0
        %v5054 = vadd.f32 %v5052, %v5053
        %v5055 = vrot.slane %v5054, 4
        %v5056 = vadd.f32 %v5054, %v5055
        %v5057 = vrot.slane %v5056, 2
        %v5058 = vadd.f32 %v5056, %v5057
        %v5059 = vrot.slane %v5058, 1
        %v5060 = vadd.f32 %v5058, %v5059
        %v5061 = vsel %vm4030, %v4896, 0.0
        %v5062 = vsel %vm4030, %v4897, 0.0
        %v5063 = vadd.f32 %v5061, %v5062
        %v5064 = vsel %vm4030, %v4898, 0.0
        %v5065 = vadd.f32 %v5063, %v5064
        %v5066 = vsel %vm4030, %v4899, 0.0
        %v5067 = vadd.f32 %v5065, %v5066
        %v5068 = vsel %vm4030, %v4900, 0.0
        %v5069 = vadd.f32 %v5067, %v5068
        %v5070 = vsel %vm4030, %v4901, 0.0
        %v5071 = vadd.f32 %v5069, %v5070
        %v5072 = vsel %vm4030, %v4902, 0.0
        %v5073 = vadd.f32 %v5071, %v5072
        %v5074 = vsel %vm4030, %v4903, 0.0
        %v5075 = vadd.f32 %v5073, %v5074
        %v5076 = vsel %vm4030, %v4904, 0.0
        %v5077 = vadd.f32 %v5075, %v5076
        %v5078 = vsel %vm4030, %v4905, 0.0
        %v5079 = vadd.f32 %v5077, %v5078
        %v5080 = vsel %vm4030, %v4906, 0.0
        %v5081 = vadd.f32 %v5079, %v5080
        %v5082 = vsel %vm4030, %v4907, 0.0
        %v5083 = vadd.f32 %v5081, %v5082
        %v5084 = vsel %vm4030, %v4908, 0.0
        %v5085 = vadd.f32 %v5083, %v5084
        %v5086 = vsel %vm4030, %v4909, 0.0
        %v5087 = vadd.f32 %v5085, %v5086
        %v5088 = vsel %vm4030, %v4910, 0.0
        %v5089 = vadd.f32 %v5087, %v5088
        %v5090 = vsel %vm4030, %v4911, 0.0
        %v5091 = vadd.f32 %v5089, %v5090
        %v5092 = vsel %vm4030, %v4912, 0.0
        %v5093 = vadd.f32 %v5091, %v5092
        %v5094 = vsel %vm4030, %v4913, 0.0
        %v5095 = vadd.f32 %v5093, %v5094
        %v5096 = vsel %vm4030, %v4914, 0.0
        %v5097 = vadd.f32 %v5095, %v5096
        %v5098 = vsel %vm4030, %v4915, 0.0
        %v5099 = vadd.f32 %v5097, %v5098
        %v5100 = vsel %vm4030, %v4916, 0.0
        %v5101 = vadd.f32 %v5099, %v5100
        %v5102 = vsel %vm4030, %v4917, 0.0
        %v5103 = vadd.f32 %v5101, %v5102
        %v5104 = vsel %vm4030, %v4918, 0.0
        %v5105 = vadd.f32 %v5103, %v5104
        %v5106 = vsel %vm4030, %v4919, 0.0
        %v5107 = vadd.f32 %v5105, %v5106
        %v5108 = vsel %vm4030, %v4920, 0.0
        %v5109 = vadd.f32 %v5107, %v5108
        %v5110 = vsel %vm4030, %v4921, 0.0
        %v5111 = vadd.f32 %v5109, %v5110
        %v5112 = vsel %vm4030, %v4922, 0.0
        %v5113 = vadd.f32 %v5111, %v5112
        %v5114 = vsel %vm4030, %v4923, 0.0
        %v5115 = vadd.f32 %v5113, %v5114
        %v5116 = vsel %vm4030, %v4924, 0.0
        %v5117 = vadd.f32 %v5115, %v5116
        %v5118 = vsel %vm4030, %v4925, 0.0
        %v5119 = vadd.f32 %v5117, %v5118
        %v5120 = vsel %vm4030, %v4926, 0.0
        %v5121 = vadd.f32 %v5119, %v5120
        %v5122 = vsel %vm4030, %v4927, 0.0
        %v5123 = vadd.f32 %v5121, %v5122
        %v5124 = vrot.slane %v5123, 4
        %v5125 = vadd.f32 %v5123, %v5124
        %v5126 = vrot.slane %v5125, 2
        %v5127 = vadd.f32 %v5125, %v5126
        %v5128 = vrot.slane %v5127, 1
        %v5129 = vadd.f32 %v5127, %v5128
        %v5130 = vsel %vm4030, %v4928, 0.0
        %v5131 = vsel %vm4030, %v4929, 0.0
        %v5132 = vadd.f32 %v5130, %v5131
        %v5133 = vsel %vm4030, %v4930, 0.0
        %v5134 = vadd.f32 %v5132, %v5133
        %v5135 = vsel %vm4030, %v4931, 0.0
        %v5136 = vadd.f32 %v5134, %v5135
        %v5137 = vsel %vm4030, %v4932, 0.0
        %v5138 = vadd.f32 %v5136, %v5137
        %v5139 = vsel %vm4030, %v4933, 0.0
        %v5140 = vadd.f32 %v5138, %v5139
        %v5141 = vsel %vm4030, %v4934, 0.0
        %v5142 = vadd.f32 %v5140, %v5141
        %v5143 = vsel %vm4030, %v4935, 0.0
        %v5144 = vadd.f32 %v5142, %v5143
        %v5145 = vsel %vm4030, %v4936, 0.0
        %v5146 = vadd.f32 %v5144, %v5145
        %v5147 = vsel %vm4030, %v4937, 0.0
        %v5148 = vadd.f32 %v5146, %v5147
        %v5149 = vsel %vm4030, %v4938, 0.0
        %v5150 = vadd.f32 %v5148, %v5149
        %v5151 = vsel %vm4030, %v4939, 0.0
        %v5152 = vadd.f32 %v5150, %v5151
        %v5153 = vsel %vm4030, %v4940, 0.0
        %v5154 = vadd.f32 %v5152, %v5153
        %v5155 = vsel %vm4030, %v4941, 0.0
        %v5156 = vadd.f32 %v5154, %v5155
        %v5157 = vsel %vm4030, %v4942, 0.0
        %v5158 = vadd.f32 %v5156, %v5157
        %v5159 = vsel %vm4030, %v4943, 0.0
        %v5160 = vadd.f32 %v5158, %v5159
        %v5161 = vsel %vm4030, %v4944, 0.0
        %v5162 = vadd.f32 %v5160, %v5161
        %v5163 = vsel %vm4030, %v4945, 0.0
        %v5164 = vadd.f32 %v5162, %v5163
        %v5165 = vsel %vm4030, %v4946, 0.0
        %v5166 = vadd.f32 %v5164, %v5165
        %v5167 = vsel %vm4030, %v4947, 0.0
        %v5168 = vadd.f32 %v5166, %v5167
        %v5169 = vsel %vm4030, %v4948, 0.0
        %v5170 = vadd.f32 %v5168, %v5169
        %v5171 = vsel %vm4030, %v4949, 0.0
        %v5172 = vadd.f32 %v5170, %v5171
        %v5173 = vsel %vm4030, %v4950, 0.0
        %v5174 = vadd.f32 %v5172, %v5173
        %v5175 = vsel %vm4030, %v4951, 0.0
        %v5176 = vadd.f32 %v5174, %v5175
        %v5177 = vsel %vm4030, %v4952, 0.0
        %v5178 = vadd.f32 %v5176, %v5177
        %v5179 = vsel %vm4030, %v4953, 0.0
        %v5180 = vadd.f32 %v5178, %v5179
        %v5181 = vsel %vm4030, %v4954, 0.0
        %v5182 = vadd.f32 %v5180, %v5181
        %v5183 = vsel %vm4030, %v4955, 0.0
        %v5184 = vadd.f32 %v5182, %v5183
        %v5185 = vsel %vm4030, %v4956, 0.0
        %v5186 = vadd.f32 %v5184, %v5185
        %v5187 = vsel %vm4030, %v4957, 0.0
        %v5188 = vadd.f32 %v5186, %v5187
        %v5189 = vsel %vm4030, %v4958, 0.0
        %v5190 = vadd.f32 %v5188, %v5189
        %v5191 = vsel %vm4030, %v4959, 0.0
        %v5192 = vadd.f32 %v5190, %v5191
        %v5193 = vrot.slane %v5192, 4
        %v5194 = vadd.f32 %v5192, %v5193
        %v5195 = vrot.slane %v5194, 2
        %v5196 = vadd.f32 %v5194, %v5195
        %v5197 = vrot.slane %v5196, 1
        %v5198 = vadd.f32 %v5196, %v5197
        %v5199 = vsel %vm4030, %v4960, 0.0
        %v5200 = vsel %vm4030, %v4961, 0.0
        %v5201 = vadd.f32 %v5199, %v5200
        %v5202 = vsel %vm4030, %v4962, 0.0
        %v5203 = vadd.f32 %v5201, %v5202
        %v5204 = vsel %vm4030, %v4963, 0.0
        %v5205 = vadd.f32 %v5203, %v5204
        %v5206 = vsel %vm4030, %v4964, 0.0
        %v5207 = vadd.f32 %v5205, %v5206
        %v5208 = vsel %vm4030, %v4965, 0.0
        %v5209 = vadd.f32 %v5207, %v5208
        %v5210 = vsel %vm4030, %v4966, 0.0
        %v5211 = vadd.f32 %v5209, %v5210
        %v5212 = vsel %vm4030, %v4967, 0.0
        %v5213 = vadd.f32 %v5211, %v5212
        %v5214 = vsel %vm4030, %v4968, 0.0
        %v5215 = vadd.f32 %v5213, %v5214
        %v5216 = vsel %vm4030, %v4969, 0.0
        %v5217 = vadd.f32 %v5215, %v5216
        %v5218 = vsel %vm4030, %v4970, 0.0
        %v5219 = vadd.f32 %v5217, %v5218
        %v5220 = vsel %vm4030, %v4971, 0.0
        %v5221 = vadd.f32 %v5219, %v5220
        %v5222 = vsel %vm4030, %v4972, 0.0
        %v5223 = vadd.f32 %v5221, %v5222
        %v5224 = vsel %vm4030, %v4973, 0.0
        %v5225 = vadd.f32 %v5223, %v5224
        %v5226 = vsel %vm4030, %v4974, 0.0
        %v5227 = vadd.f32 %v5225, %v5226
        %v5228 = vsel %vm4030, %v4975, 0.0
        %v5229 = vadd.f32 %v5227, %v5228
        %v5230 = vsel %vm4030, %v4976, 0.0
        %v5231 = vadd.f32 %v5229, %v5230
        %v5232 = vsel %vm4030, %v4977, 0.0
        %v5233 = vadd.f32 %v5231, %v5232
        %v5234 = vsel %vm4030, %v4978, 0.0
        %v5235 = vadd.f32 %v5233, %v5234
        %v5236 = vsel %vm4030, %v4979, 0.0
        %v5237 = vadd.f32 %v5235, %v5236
        %v5238 = vsel %vm4030, %v4980, 0.0
        %v5239 = vadd.f32 %v5237, %v5238
        %v5240 = vsel %vm4030, %v4981, 0.0
        %v5241 = vadd.f32 %v5239, %v5240
        %v5242 = vsel %vm4030, %v4982, 0.0
        %v5243 = vadd.f32 %v5241, %v5242
        %v5244 = vsel %vm4030, %v4983, 0.0
        %v5245 = vadd.f32 %v5243, %v5244
        %v5246 = vsel %vm4030, %v4984, 0.0
        %v5247 = vadd.f32 %v5245, %v5246
        %v5248 = vsel %vm4030, %v4985, 0.0
        %v5249 = vadd.f32 %v5247, %v5248
        %v5250 = vsel %vm4030, %v4986, 0.0
        %v5251 = vadd.f32 %v5249, %v5250
        %v5252 = vsel %vm4030, %v4987, 0.0
        %v5253 = vadd.f32 %v5251, %v5252
        %v5254 = vsel %vm4030, %v4988, 0.0
        %v5255 = vadd.f32 %v5253, %v5254
        %v5256 = vsel %vm4030, %v4989, 0.0
        %v5257 = vadd.f32 %v5255, %v5256
        %v5258 = vsel %vm4030, %v4990, 0.0
        %v5259 = vadd.f32 %v5257, %v5258
        %v5260 = vsel %vm4030, %v4991, 0.0
        %v5261 = vadd.f32 %v5259, %v5260
        %v5262 = vrot.slane %v5261, 4
        %v5263 = vadd.f32 %v5261, %v5262
        %v5264 = vrot.slane %v5263, 2
        %v5265 = vadd.f32 %v5263, %v5264
        %v5266 = vrot.slane %v5265, 1
        %v5267 = vadd.f32 %v5265, %v5266
        %v5268 = vld [vmem:[%s3] sm:$0xf]
        %v5269 = vld [vmem:[%s3 + $0x4] sm:$0xf]
        %v5270 = vld [vmem:[%s3 + $0x8] sm:$0xf]
        %v5271 = vld [vmem:[%s3 + $0xc] sm:$0xf]
        %v5272 = vunpack.c.l.bf16 %v5268
        %v5273 = vunpack.c.l.bf16 %v5269
        %v5274 = vunpack.c.l.bf16 %v5270
        %v5275 = vunpack.c.l.bf16 %v5271
        %v5276 = vld [vmem:[%s4] sm:$0x1]
        %v5278 = vlaneseq
        %v5279 = vshrl.u32 %v5278, 7
        %v5280 = vsub.s32 0, %v5279
        %v5281 = vrot.slane %v5276, %v5280
        %vm5287 = vcmask 1041409
        %v5288 = vsel %vm5287, %v5129, %v5060
        %vm5289 = vcmask 1042434
        %v5290 = vsel %vm5289, %v5198, %v5288
        %vm5291 = vcmask 1043459
        %v5292 = vsel %vm5291, %v5267, %v5290
        %v5293 = vsel %vm4030, %v5292, 0
        %5295 = vmatprep.subr.mxu0 0.0
        %5296 = vmatpush1.msra.mxu0 0.0
        %5297 = vmatprep.subr.mxu0 0.0
        %5298 = vmatpush1.msra.mxu0 0.0
        %5299 = vmatprep.subr.mxu0 0.0
        %5300 = vmatpush1.msra.mxu0 0.0
        %5301 = vmatprep.subr.mxu0 0.0
        %5302 = vmatpush1.msra.mxu0 0.0
        %5303 = vmatprep.subr.mxu0 0.0
        %5304 = vmatpush1.msra.mxu0 0.0
        %5305 = vmatprep.subr.mxu0 0.0
        %5306 = vmatpush1.msra.mxu0 0.0
        %5307 = vmatprep.subr.mxu0 0.0
        %5308 = vmatpush1.msra.mxu0 0.0
        %5309 = vmatprep.subr.mxu0 0.0
        %5310 = vmatpush1.msra.mxu0 0.0
        %5311 = vmatprep.subr.mxu0 0.0
        %5312 = vmatpush1.msra.mxu0 0.0
        %5313 = vmatprep.subr.mxu0 0.0
        %5314 = vmatpush1.msra.mxu0 0.0
        %5315 = vmatprep.subr.mxu0 0.0
        %5316 = vmatpush1.msra.mxu0 0.0
        %5317 = vmatprep.subr.mxu0 0.0
        %5318 = vmatpush1.msra.mxu0 0.0
        %5319 = vmatprep.subr.mxu0 0.0
        %5320 = vmatpush1.msra.mxu0 %v5275
        %5321 = vmatprep.subr.mxu0 0.0
        %5322 = vmatpush1.msra.mxu0 %v5274
        %5323 = vmatprep.subr.mxu0 0.0
        %5324 = vmatpush1.msra.mxu0 %v5273
        %5325 = vmatprep.subr.mxu0 0.0
        %5326 = vmatpush1.msra.mxu0 %v5272
        %5327 = vmatprep.subr.mxu0 0.0
        %5328 = vmatpush2.msra.mxu0 0.0
        %5329 = vmatprep.subr.mxu0 0.0
        %5330 = vmatpush2.msra.mxu0 0.0
        %5331 = vmatprep.subr.mxu0 0.0
        %5332 = vmatpush2.msra.mxu0 0.0
        %5333 = vmatprep.subr.mxu0 0.0
        %5334 = vmatpush2.msra.mxu0 0.0
        %5335 = vmatprep.subr.mxu0 0.0
        %5336 = vmatpush2.msra.mxu0 0.0
        %5337 = vmatprep.subr.mxu0 0.0
        %5338 = vmatpush2.msra.mxu0 0.0
        %5339 = vmatprep.subr.mxu0 0.0
        %5340 = vmatpush2.msra.mxu0 0.0
        %5341 = vmatprep.subr.mxu0 0.0
        %5342 = vmatpush2.msra.mxu0 0.0
        %5343 = vmatprep.subr.mxu0 0.0
        %5344 = vmatpush2.msra.mxu0 0.0
        %5345 = vmatprep.subr.mxu0 0.0
        %5346 = vmatpush2.msra.mxu0 0.0
        %5347 = vmatprep.subr.mxu0 0.0
        %5348 = vmatpush2.msra.mxu0 0.0
        %5349 = vmatprep.subr.mxu0 0.0
        %5350 = vmatpush2.msra.mxu0 0.0
        %5351 = vmatprep.subr.mxu0 0.0
        %5352 = vmatpush2.msra.mxu0 0.0
        %5353 = vmatprep.subr.mxu0 0.0
        %5354 = vmatpush2.msra.mxu0 0.0
        %5355 = vmatprep.subr.mxu0 0.0
        %5356 = vmatpush2.msra.mxu0 0.0
        %5357 = vmatprep.subr.mxu0 0.0
        %5358 = vmatpush2.msra.mxu0 0.0
        %5359 = vmatprep.mubr.f32.mxu0 0.0
        %5360 = vmatmul.mubr.f32.gmra.mxu0 %v5293
        %v5361 = vpop.f32.mrf.mxu0
        %v5362 = vadd.f32 %v5281, %v5361
        %v5363 = vpop.f32.mrf.mxu0
        %5364 = vdwg.mxu0
        %5365 = vst [vmem:[%s220] sm:$0xf] %v5362
        %s5366 = sand.u32 %s137, 1
        %s5367 = scalar_lea.sflag [#allocation3], %s5366
        %s5368 = sand.u32 %s137, 1
        %s5369 = smul.addr %s5368, 4
        %s5370 = scalar_lea.vmem [#allocation2], %s5369
        // Predicated region
        $region41: #{tpu_custom_call.1} parent=39 // pred_check
          %p5371 = pneg %p147
        $region42: #{tpu_custom_call.1} parent=39 // pred_check_branch
          %5373 = sbr.rel (%p5371) target = $region44
        $region43: #{tpu_custom_call.1} parent=39 // pred_region
          %s5375 = ssub.s32 64, 64
          %5376 = vsyncadd %s5367, %s5375
          %s5377 = smul.addr %s19, 64
          %s5378 = scalar_lea.hbm %s5, %s5377
          %s5380 = sshll.u32 %s5370, 4
          %s5381 = int_to_ptr.vmem [resolvable:$true] %s5380
          %5383 = dma.vmem_to_hbm [thread:$0]  %s5381, 64, %s5378, %s5367
        $region44: #{tpu_custom_call.1} parent=39 // pred_fallthru
          _
      $region40: #{tpu_custom_call.1} parent=5 // pred_fallthru
        _
      %p5384 = scmp.le.s32.totalorder 2, %s14
      // Predicated region
      $region45: #{tpu_custom_call.1} parent=5 // pred_check
        %p5385 = pneg %p5384
      $region46: #{tpu_custom_call.1} parent=5 // pred_check_branch
        %5387 = sbr.rel (%p5385) target = $region48
      $region47: #{tpu_custom_call.1} parent=5 // pred_region
        %s5388 = ssub.s32 %s14, 2
        // Predicated region
        $region49: #{tpu_custom_call.1} parent=47 // pred_check
          %p5389 = pneg %p153
        $region50: #{tpu_custom_call.1} parent=47 // pred_check_branch
          %5391 = sbr.rel (%p5389) target = $region52
        $region51: #{tpu_custom_call.1} parent=47 // pred_region
          %s5392 = sand.u32 %s138, 1
          %s5393 = scalar_lea.sflag [#allocation3], %s5392
          %s5394 = sand.u32 %s138, 1
          %s5395 = smul.addr %s5394, 4
          %s5396 = scalar_lea.vmem [#allocation2], %s5395
          %5397 = dma.done %s5393, 64
        $region52: #{tpu_custom_call.1} parent=47 // pred_fallthru
          _
      $region48: #{tpu_custom_call.1} parent=5 // pred_fallthru
        _
    $region6: #{tpu_custom_call.1} parent=1 // loop_footer
      %s18 = sadd.s32 1, %s14
    $region7: #{tpu_custom_call.1} parent=1 // loop_footer_branch
      %13 = sbr.rel target = $region3
    $region8: #{tpu_custom_call.1} parent=1 // loop_exit
      _
    %5398 = vsyncpa [#allocation3], 1
    %s5399 = scalar_lea.sflag [#allocation3], 1
    %5400 = vsyncpa %s5399, 1

</llo_original>
